<compile_context>
chip_gen: v7x
topology: tpu7x:2x2x1
jax: 0.10.0
libtpu: 0.0.40
codegen_flags: <defaults>
</compile_context>

<pallas_src>
import functools
import sys

import jax
import jax.numpy as jnp
from jax.experimental import pallas as pl
from jax.experimental.pallas import tpu as pltpu


def _round_up(x, m):
    return ((x + m - 1) // m) * m


def _make_conv_bn_relu_kernel(h, w, cin, chunk_rows, k_pad, fuse_taps):
    """One grid step = one batch image.

    x_ref:     (1, h+2, w+2, cin)    zero-padded NHWC image (compute dtype)
    w_ref:     (k_pad, cout_pad)     3x3 weight, BN scale folded, K & Cout zero-padded
    shift_ref: (1, cout_pad)         folded BN shift (f32)
    o_ref:     (1, h*w, cout_pad)    lane-dense output image
    """
    k = 9 * cin

    def kernel(x_ref, w_ref, shift_ref, o_ref):
        w_mat = w_ref[...]                           # resident weight (small)
        shift = shift_ref[...]                       # (1, cout_pad) f32
        # Cast once, right after the load, before any tap slicing (no-op for f32).
        x = x_ref[0].astype(w_mat.dtype)             # (h+2, w+2, cin)

        # In-kernel row chunking only bounds the LHS temporary; every chunk reuses
        # the same resident input block (no halo duplication in HBM).
        for r0 in range(0, h, chunk_rows):
            xc = x[r0:r0 + chunk_rows + 2]           # (chunk+2, w+2, cin)
            taps = [xc[kh:kh + chunk_rows, kw:kw + w, :]     # (chunk, w, cin)
                    for kh in range(3) for kw in range(3)]
            m = chunk_rows * w

            if fuse_taps:
                # Fuse the 9 taps into the contraction dim; zero-pad K so the MXU
                # sees an aligned, unmasked K = k_pad contraction.
                if k_pad > k:
                    taps.append(jnp.zeros((chunk_rows, w, k_pad - k), w_mat.dtype))
                lhs = jnp.concatenate(taps, axis=-1).reshape(m, k_pad)
                acc = jnp.dot(lhs, w_mat, preferred_element_type=jnp.float32)
            else:
                # Fallback: 9 accumulated K=cin matmuls (always lowers).
                acc = jnp.zeros((m, w_mat.shape[-1]), jnp.float32)
                for t in range(9):
                    lhs_t = taps[t].reshape(m, cin)
                    acc += jnp.dot(lhs_t, w_mat[t * cin:(t + 1) * cin, :],
                                   preferred_element_type=jnp.float32)

            # Folded-BN epilogue in f32 (native path on v5e), one cast at the store.
            y = jnp.maximum(acc + shift, 0.0)
            o_ref[0, r0 * w:(r0 + chunk_rows) * w, :] = y.astype(o_ref.dtype)

    return kernel


def _pick_chunk_rows(h, w, k_pad, cout_pad, cdt_bytes, temp_budget=8 * 1024 * 1024):
    """Largest divisor of H whose per-chunk temporaries (fused LHS + taps + f32 acc)
    stay under `temp_budget` -> big matmul M per chunk, few fat chunks."""
    best = 1
    for chunk in range(1, h + 1):
        if h % chunk:
            continue
        temp = chunk * w * (2 * k_pad * cdt_bytes + cout_pad * 4)
        if temp <= temp_budget:
            best = chunk
    return best


def _vmem_limit_bytes(h, w, cin, k_pad, cout_pad, chunk_rows, cdt_bytes, out_bytes):
    """Raw footprint of the pipelined blocks (x2 double-buffer) + resident weight /
    shift + per-chunk temporaries.  A 4x fudge covers Mosaic's (8,128) tile padding
    of skinny trailing dims; the cap keeps v7x (64 MiB VMEM/TC) safe."""
    in_blk = (h + 2) * (w + 2) * cin * cdt_bytes
    out_blk = h * w * cout_pad * out_bytes
    wgt = k_pad * cout_pad * cdt_bytes
    temps = chunk_rows * w * (2 * k_pad * cdt_bytes + cout_pad * 4)
    raw = 2 * (in_blk + out_blk + wgt + cout_pad * 4) + temps
    limit = min(max(4 * raw, 16 * 1024 * 1024), 48 * 1024 * 1024)
    return int(limit), raw


def conv_layer_forward_nhwc(x_nhwc, w_oihw, gamma, beta, running_mean, running_var,
                            eps=1e-5, *, compute_dtype=None, fuse_taps=True,
                            keep_cout_pad=False):
    """Core ConvLayer forward in NHWC (no layout transposes). Returns NHWC."""
    n, h, w, cin = x_nhwc.shape
    cout = w_oihw.shape[0]
    out_dtype = x_nhwc.dtype
    cdt = jnp.dtype(compute_dtype) if compute_dtype is not None else jnp.dtype(out_dtype)

    # Lane-dense output channels.
    cout_pad = _round_up(cout, 128)

    # Contraction dim K = 9*cin, zero-padded so the RHS needs no masked sublanes.
    k = 9 * cin
    sub_q = 16 if cdt == jnp.bfloat16 else 8
    k_pad = 128 if k <= 128 else _round_up(k, sub_q)

    # ---- fold inference-mode BatchNorm: scale into the weight, shift as a bias ----
    inv_std = jax.lax.rsqrt(running_var.astype(jnp.float32) + eps)
    scale = gamma.astype(jnp.float32) * inv_std                               # (cout,)
    shift = beta.astype(jnp.float32) - running_mean.astype(jnp.float32) * scale

    # (Cout, Cin, 3, 3) -> (9*Cin, Cout); row index = (kh*3 + kw)*Cin + ci
    w_mat = jnp.transpose(w_oihw.astype(jnp.float32), (2, 3, 1, 0)).reshape(k, cout)
    w_mat = w_mat * scale[None, :]
    w_mat = jnp.pad(w_mat, ((0, k_pad - k), (0, cout_pad - cout)))            # neutral zeros
    w_mat = w_mat.astype(cdt)
    shift_pad = jnp.pad(shift, (0, cout_pad - cout)).reshape(1, cout_pad)     # stays f32

    # ---- activations: cast ONCE on the host (halves HBM reads for bf16), then a
    #      single 1-pixel spatial zero pad (the only extra input-side pass). ----
    x_c = x_nhwc if jnp.dtype(x_nhwc.dtype) == cdt else x_nhwc.astype(cdt)
    x_pad = jnp.pad(x_c, ((0, 0), (1, 1), (1, 1), (0, 0)))                    # (n,h+2,w+2,cin)

    cdt_b = jnp.dtype(cdt).itemsize
    out_b = jnp.dtype(out_dtype).itemsize
    chunk_rows = _pick_chunk_rows(h, w, k_pad, cout_pad, cdt_b)
    vmem_limit, raw = _vmem_limit_bytes(h, w, cin, k_pad, cout_pad, chunk_rows,
                                        cdt_b, out_b)
    if raw > 40 * 1024 * 1024:
        # TODO(synk): very large images need an H-tiled variant with in-kernel halo
        # DMA (memory_space=pl.ANY + pltpu.make_async_copy, double-buffered).
        raise NotImplementedError("image too large for the whole-image-per-step kernel")

    kernel = _make_conv_bn_relu_kernel(h, w, cin, chunk_rows, k_pad, fuse_taps)

    out = pl.pallas_call(
        kernel,
        out_shape=jax.ShapeDtypeStruct((n, h * w, cout_pad), out_dtype),
        # One image per step; on v7x (2 TCs sharing the grid) keep n >= 2 or split
        # the batch/width further rather than shrinking the per-step block.
        grid=(n,),
        in_specs=[
            pl.BlockSpec((1, h + 2, w + 2, cin), lambda b: (b, 0, 0, 0)),
            pl.BlockSpec((k_pad, cout_pad), lambda b: (0, 0)),   # resident weight
            pl.BlockSpec((1, cout_pad), lambda b: (0, 0)),       # resident shift
        ],
        out_specs=pl.BlockSpec((1, h * w, cout_pad), lambda b: (b, 0, 0)),
        compiler_params=pltpu.CompilerParams(
            dimension_semantics=("parallel",),      # megacore-shardable batch axis
            vmem_limit_bytes=vmem_limit,            # derived from block footprint
        ),
    )(x_pad, w_mat, shift_pad)

    out = out.reshape(n, h, w, cout_pad)
    if keep_cout_pad:
        return out          # skip the channel-strip pass; let the consumer slice/fuse
    return out[..., :cout]


def conv_layer_forward(x_nchw, w_oihw, gamma, beta, running_mean, running_var,
                       eps=1e-5, *, compute_dtype=None, fuse_taps=True):
    """PyTorch-parity wrapper: NCHW in, NCHW out (transposes are glue only)."""
    x = jnp.transpose(x_nchw, (0, 2, 3, 1))                                   # NHWC
    y = conv_layer_forward_nhwc(x, w_oihw, gamma, beta, running_mean, running_var,
                                eps, compute_dtype=compute_dtype, fuse_taps=fuse_taps)
    return jnp.transpose(y, (0, 3, 1, 2))                                     # NCHW


def _reference(x_nchw, w_oihw, gamma, beta, running_mean, running_var, eps=1e-5):
    y = jax.lax.conv_general_dilated(
        x_nchw, w_oihw, window_strides=(1, 1), padding="SAME",
        dimension_numbers=("NCHW", "OIHW", "NCHW"))
    inv_std = 1.0 / jnp.sqrt(running_var + eps)
    scale = (gamma * inv_std).reshape(1, -1, 1, 1)
    shift = (beta - running_mean * gamma * inv_std).reshape(1, -1, 1, 1)
    return jnp.maximum(y * scale + shift, 0.0)


def _run(args, **kw):
    """Run the fused-K kernel; if that path fails to lower on this Mosaic version
    (unaligned lane concat), fall back to per-tap accumulation.  The fallback is
    announced on stderr and the result is still verified against the reference by
    the caller, so a genuine logic bug cannot be silently masked."""
    try:
        fwd = jax.jit(functools.partial(conv_layer_forward, **kw))
        return jax.block_until_ready(fwd(*args))
    except Exception as e:  # lowering-portability guard only
        print("[conv_layer] fused-K path failed to lower (%s); using per-tap fallback."
              % type(e).__name__, file=sys.stderr)
        fwd = jax.jit(functools.partial(conv_layer_forward, fuse_taps=False, **kw))
        return jax.block_until_ready(fwd(*args))


if __name__ == "__main__":
    key = jax.random.PRNGKey(0)
    ks = jax.random.split(key, 6)

    N, C_in, C_out, H, W = 2, 4, 8, 16, 16
    x = jax.random.normal(ks[0], (N, C_in, H, W), dtype=jnp.float32)
    w_conv = 0.1 * jax.random.normal(ks[1], (C_out, C_in, 3, 3), dtype=jnp.float32)
    # non-trivial BatchNorm running stats / affine params
    gamma = 0.5 + jax.random.uniform(ks[2], (C_out,), dtype=jnp.float32)
    beta = 0.1 * jax.random.normal(ks[3], (C_out,), dtype=jnp.float32)
    running_mean = 0.1 * jax.random.normal(ks[4], (C_out,), dtype=jnp.float32)
    running_var = 0.5 + jax.random.uniform(ks[5], (C_out,), dtype=jnp.float32)

    args = (x, w_conv, gamma, beta, running_mean, running_var)
    ref = _reference(*args)

    # 1) f32 matmul-operand path.
    out_f32 = _run(args)
    assert out_f32.shape == (N, C_out, H, W)
    assert jnp.allclose(out_f32, ref, atol=1e-4, rtol=1e-4), "f32 path mismatch vs reference"

    # 2) bf16 matmul-operand path (v6e/v7x MXU): host-side bf16 cast, f32 accumulation.
    out_bf16 = _run(args, compute_dtype=jnp.bfloat16)
    assert out_bf16.shape == (N, C_out, H, W)
    assert jnp.allclose(out_bf16, ref, atol=5e-2, rtol=5e-2), "bf16 path mismatch vs reference"

    print("KERNEL_OK")
</pallas_src>

<mosaic_0001>
module attributes {stable_mosaic.version = 11 : i64} {
  func.func @kernel(%arg0: i32, %arg1: memref<1x18x18x4xf32, #tpu.memory_space<vmem>>, %arg2: memref<128x128xf32, #tpu.memory_space<vmem>>, %arg3: memref<1x128xf32, #tpu.memory_space<vmem>>, %arg4: memref<1x256x128xf32, #tpu.memory_space<vmem>>) attributes {dimension_semantics = [#tpu.dimension_semantics<parallel>], iteration_bounds = array<i64: 2>, scalar_prefetch = 0 : i64, scratch_operands = 0 : i64, tpu.core_type = #tpu.core_type<tc>, window_params = [{transform_indices = @transform_0, window_bounds = array<i64: 1, 18, 18, 4>}, {pipeline_mode = #tpu.pipeline_mode<synchronous>, transform_indices = @transform_1, window_bounds = array<i64: 128, 128>}, {pipeline_mode = #tpu.pipeline_mode<synchronous>, transform_indices = @transform_2, window_bounds = array<i64: 1, 128>}, {transform_indices = @transform_3, window_bounds = array<i64: 1, 256, 128>}]} {
    %c0 = arith.constant 0 : index
    %c0_0 = arith.constant 0 : index
    %0 = vector.load %arg2[%c0, %c0_0] : memref<128x128xf32, #tpu.memory_space<vmem>>, vector<128x128xf32>
    %c0_1 = arith.constant 0 : index
    %c0_2 = arith.constant 0 : index
    %1 = vector.load %arg3[%c0_1, %c0_2] : memref<1x128xf32, #tpu.memory_space<vmem>>, vector<1x128xf32>
    %c0_3 = arith.constant 0 : index
    %c0_4 = arith.constant 0 : index
    %c0_5 = arith.constant 0 : index
    %c0_6 = arith.constant 0 : index
    %2 = vector.load %arg1[%c0_3, %c0_4, %c0_5, %c0_6] : memref<1x18x18x4xf32, #tpu.memory_space<vmem>>, vector<1x18x18x4xf32>
    %3 = vector.shape_cast %2 : vector<1x18x18x4xf32> to vector<18x18x4xf32>
    %4 = vector.extract_strided_slice %3 {offsets = [0, 0, 0], sizes = [16, 16, 4], strides = [1, 1, 1]} : vector<18x18x4xf32> to vector<16x16x4xf32>
    %5 = vector.extract_strided_slice %3 {offsets = [0, 1, 0], sizes = [16, 16, 4], strides = [1, 1, 1]} : vector<18x18x4xf32> to vector<16x16x4xf32>
    %6 = vector.extract_strided_slice %3 {offsets = [0, 2, 0], sizes = [16, 16, 4], strides = [1, 1, 1]} : vector<18x18x4xf32> to vector<16x16x4xf32>
    %7 = vector.extract_strided_slice %3 {offsets = [1, 0, 0], sizes = [16, 16, 4], strides = [1, 1, 1]} : vector<18x18x4xf32> to vector<16x16x4xf32>
    %8 = vector.extract_strided_slice %3 {offsets = [1, 1, 0], sizes = [16, 16, 4], strides = [1, 1, 1]} : vector<18x18x4xf32> to vector<16x16x4xf32>
    %9 = vector.extract_strided_slice %3 {offsets = [1, 2, 0], sizes = [16, 16, 4], strides = [1, 1, 1]} : vector<18x18x4xf32> to vector<16x16x4xf32>
    %10 = vector.extract_strided_slice %3 {offsets = [2, 0, 0], sizes = [16, 16, 4], strides = [1, 1, 1]} : vector<18x18x4xf32> to vector<16x16x4xf32>
    %11 = vector.extract_strided_slice %3 {offsets = [2, 1, 0], sizes = [16, 16, 4], strides = [1, 1, 1]} : vector<18x18x4xf32> to vector<16x16x4xf32>
    %12 = vector.extract_strided_slice %3 {offsets = [2, 2, 0], sizes = [16, 16, 4], strides = [1, 1, 1]} : vector<18x18x4xf32> to vector<16x16x4xf32>
    %cst = arith.constant 0.000000e+00 : f32
    %13 = vector.broadcast %cst : f32 to vector<16x16x92xf32>
    %14 = tpu.concatenate %4, %5, %6, %7, %8, %9, %10, %11, %12, %13 in 2 : vector<16x16x4xf32>, vector<16x16x4xf32>, vector<16x16x4xf32>, vector<16x16x4xf32>, vector<16x16x4xf32>, vector<16x16x4xf32>, vector<16x16x4xf32>, vector<16x16x4xf32>, vector<16x16x4xf32>, vector<16x16x92xf32> -> vector<16x16x128xf32>
    %15 = vector.shape_cast %14 : vector<16x16x128xf32> to vector<256x128xf32>
    %cst_7 = arith.constant dense<0.000000e+00> : vector<256x128xf32>
    %16 = tpu.matmul %15, %0, %cst_7 {dimension_numbers = #tpu.dot_dimension_numbers<[1], [0], [0], [1], [0, 0, 1, 1], [], []>} : vector<256x128xf32>, vector<128x128xf32>, vector<256x128xf32> -> vector<256x128xf32>
    %17 = vector.broadcast %1 : vector<1x128xf32> to vector<256x128xf32>
    %18 = arith.addf %16, %17 : vector<256x128xf32>
    %cst_8 = arith.constant 0.000000e+00 : f32
    %19 = vector.broadcast %cst_8 : f32 to vector<256x128xf32>
    %20 = arith.maximumf %18, %19 : vector<256x128xf32>
    %c0_9 = arith.constant 0 : index
    %c0_10 = arith.constant 0 : index
    %c0_11 = arith.constant 0 : index
    %21 = vector.load %arg4[%c0_9, %c0_10, %c0_11] : memref<1x256x128xf32, #tpu.memory_space<vmem>>, vector<1x256x128xf32>
    %22 = vector.shape_cast %21 : vector<1x256x128xf32> to vector<256x128xf32>
    %23 = vector.shape_cast %20 : vector<256x128xf32> to vector<1x256x128xf32>
    tpu.vector_store %arg4[%c0_9, %c0_10, %c0_11], %23 {strides = array<i32>} : memref<1x256x128xf32, #tpu.memory_space<vmem>>, vector<1x256x128xf32>,
    return
  }
  func.func @transform_0(%arg0: i32) -> (i32, i32, i32, i32) {
    %c0_i32 = arith.constant 0 : i32
    %c0_i32_0 = arith.constant 0 : i32
    %c0_i32_1 = arith.constant 0 : i32
    %c0_i32_2 = arith.constant 0 : i32
    return %arg0, %c0_i32, %c0_i32_0, %c0_i32_1 : i32, i32, i32, i32
  }
  func.func @transform_1(%arg0: i32) -> (i32, i32) {
    %c0_i32 = arith.constant 0 : i32
    %c0_i32_0 = arith.constant 0 : i32
    %c0_i32_1 = arith.constant 0 : i32
    return %c0_i32, %c0_i32_0 : i32, i32
  }
  func.func @transform_2(%arg0: i32) -> (i32, i32) {
    %c0_i32 = arith.constant 0 : i32
    %c0_i32_0 = arith.constant 0 : i32
    %c0_i32_1 = arith.constant 0 : i32
    return %c0_i32, %c0_i32_0 : i32, i32
  }
  func.func @transform_3(%arg0: i32) -> (i32, i32, i32) {
    %c0_i32 = arith.constant 0 : i32
    %c0_i32_0 = arith.constant 0 : i32
    %c0_i32_1 = arith.constant 0 : i32
    return %arg0, %c0_i32, %c0_i32_0 : i32, i32, i32
  }
}

module attributes {stable_mosaic.version = 11 : i64} {
  func.func @kernel(%arg0: i32, %arg1: memref<1x18x18x4xf32, #tpu.memory_space<vmem>>, %arg2: memref<128x128xf32, #tpu.memory_space<vmem>>, %arg3: memref<1x128xf32, #tpu.memory_space<vmem>>, %arg4: memref<1x256x128xf32, #tpu.memory_space<vmem>>) attributes {dimension_semantics = [#tpu.dimension_semantics<parallel>], iteration_bounds = array<i64: 2>, scalar_prefetch = 0 : i64, scratch_operands = 0 : i64, tpu.core_type = #tpu.core_type<tc>, window_params = [{transform_indices = @transform_0, window_bounds = array<i64: 1, 18, 18, 4>}, {pipeline_mode = #tpu.pipeline_mode<synchronous>, transform_indices = @transform_1, window_bounds = array<i64: 128, 128>}, {pipeline_mode = #tpu.pipeline_mode<synchronous>, transform_indices = @transform_2, window_bounds = array<i64: 1, 128>}, {transform_indices = @transform_3, window_bounds = array<i64: 1, 256, 128>}]} {
    %c0 = arith.constant 0 : index
    %c0_0 = arith.constant 0 : index
    %0 = vector.load %arg2[%c0, %c0_0] : memref<128x128xf32, #tpu.memory_space<vmem>>, vector<128x128xf32>
    %c0_1 = arith.constant 0 : index
    %c0_2 = arith.constant 0 : index
    %1 = vector.load %arg3[%c0_1, %c0_2] : memref<1x128xf32, #tpu.memory_space<vmem>>, vector<1x128xf32>
    %c0_3 = arith.constant 0 : index
    %c0_4 = arith.constant 0 : index
    %c0_5 = arith.constant 0 : index
    %c0_6 = arith.constant 0 : index
    %2 = vector.load %arg1[%c0_3, %c0_4, %c0_5, %c0_6] : memref<1x18x18x4xf32, #tpu.memory_space<vmem>>, vector<1x18x18x4xf32>
    %3 = vector.shape_cast %2 : vector<1x18x18x4xf32> to vector<18x18x4xf32>
    %4 = vector.extract_strided_slice %3 {offsets = [0, 0, 0], sizes = [16, 16, 4], strides = [1, 1, 1]} : vector<18x18x4xf32> to vector<16x16x4xf32>
    %5 = vector.extract_strided_slice %3 {offsets = [0, 1, 0], sizes = [16, 16, 4], strides = [1, 1, 1]} : vector<18x18x4xf32> to vector<16x16x4xf32>
    %6 = vector.extract_strided_slice %3 {offsets = [0, 2, 0], sizes = [16, 16, 4], strides = [1, 1, 1]} : vector<18x18x4xf32> to vector<16x16x4xf32>
    %7 = vector.extract_strided_slice %3 {offsets = [1, 0, 0], sizes = [16, 16, 4], strides = [1, 1, 1]} : vector<18x18x4xf32> to vector<16x16x4xf32>
    %8 = vector.extract_strided_slice %3 {offsets = [1, 1, 0], sizes = [16, 16, 4], strides = [1, 1, 1]} : vector<18x18x4xf32> to vector<16x16x4xf32>
    %9 = vector.extract_strided_slice %3 {offsets = [1, 2, 0], sizes = [16, 16, 4], strides = [1, 1, 1]} : vector<18x18x4xf32> to vector<16x16x4xf32>
    %10 = vector.extract_strided_slice %3 {offsets = [2, 0, 0], sizes = [16, 16, 4], strides = [1, 1, 1]} : vector<18x18x4xf32> to vector<16x16x4xf32>
    %11 = vector.extract_strided_slice %3 {offsets = [2, 1, 0], sizes = [16, 16, 4], strides = [1, 1, 1]} : vector<18x18x4xf32> to vector<16x16x4xf32>
    %12 = vector.extract_strided_slice %3 {offsets = [2, 2, 0], sizes = [16, 16, 4], strides = [1, 1, 1]} : vector<18x18x4xf32> to vector<16x16x4xf32>
    %cst = arith.constant 0.000000e+00 : f32
    %13 = vector.broadcast %cst : f32 to vector<256x128xf32>
    %14 = vector.shape_cast %4 : vector<16x16x4xf32> to vector<256x4xf32>
    %15 = vector.extract_strided_slice %0 {offsets = [0, 0], sizes = [4, 128], strides = [1, 1]} : vector<128x128xf32> to vector<4x128xf32>
    %cst_7 = arith.constant dense<0.000000e+00> : vector<256x128xf32>
    %16 = tpu.matmul %14, %15, %cst_7 {dimension_numbers = #tpu.dot_dimension_numbers<[1], [0], [0], [1], [0, 0, 1, 1], [], []>} : vector<256x4xf32>, vector<4x128xf32>, vector<256x128xf32> -> vector<256x128xf32>
    %17 = arith.addf %13, %16 : vector<256x128xf32>
    %18 = vector.shape_cast %5 : vector<16x16x4xf32> to vector<256x4xf32>
    %19 = vector.extract_strided_slice %0 {offsets = [4, 0], sizes = [4, 128], strides = [1, 1]} : vector<128x128xf32> to vector<4x128xf32>
    %cst_8 = arith.constant dense<0.000000e+00> : vector<256x128xf32>
    %20 = tpu.matmul %18, %19, %cst_8 {dimension_numbers = #tpu.dot_dimension_numbers<[1], [0], [0], [1], [0, 0, 1, 1], [], []>} : vector<256x4xf32>, vector<4x128xf32>, vector<256x128xf32> -> vector<256x128xf32>
    %21 = arith.addf %17, %20 : vector<256x128xf32>
    %22 = vector.shape_cast %6 : vector<16x16x4xf32> to vector<256x4xf32>
    %23 = vector.extract_strided_slice %0 {offsets = [8, 0], sizes = [4, 128], strides = [1, 1]} : vector<128x128xf32> to vector<4x128xf32>
    %cst_9 = arith.constant dense<0.000000e+00> : vector<256x128xf32>
    %24 = tpu.matmul %22, %23, %cst_9 {dimension_numbers = #tpu.dot_dimension_numbers<[1], [0], [0], [1], [0, 0, 1, 1], [], []>} : vector<256x4xf32>, vector<4x128xf32>, vector<256x128xf32> -> vector<256x128xf32>
    %25 = arith.addf %21, %24 : vector<256x128xf32>
    %26 = vector.shape_cast %7 : vector<16x16x4xf32> to vector<256x4xf32>
    %27 = vector.extract_strided_slice %0 {offsets = [12, 0], sizes = [4, 128], strides = [1, 1]} : vector<128x128xf32> to vector<4x128xf32>
    %cst_10 = arith.constant dense<0.000000e+00> : vector<256x128xf32>
    %28 = tpu.matmul %26, %27, %cst_10 {dimension_numbers = #tpu.dot_dimension_numbers<[1], [0], [0], [1], [0, 0, 1, 1], [], []>} : vector<256x4xf32>, vector<4x128xf32>, vector<256x128xf32> -> vector<256x128xf32>
    %29 = arith.addf %25, %28 : vector<256x128xf32>
    %30 = vector.shape_cast %8 : vector<16x16x4xf32> to vector<256x4xf32>
    %31 = vector.extract_strided_slice %0 {offsets = [16, 0], sizes = [4, 128], strides = [1, 1]} : vector<128x128xf32> to vector<4x128xf32>
    %cst_11 = arith.constant dense<0.000000e+00> : vector<256x128xf32>
    %32 = tpu.matmul %30, %31, %cst_11 {dimension_numbers = #tpu.dot_dimension_numbers<[1], [0], [0], [1], [0, 0, 1, 1], [], []>} : vector<256x4xf32>, vector<4x128xf32>, vector<256x128xf32> -> vector<256x128xf32>
    %33 = arith.addf %29, %32 : vector<256x128xf32>
    %34 = vector.shape_cast %9 : vector<16x16x4xf32> to vector<256x4xf32>
    %35 = vector.extract_strided_slice %0 {offsets = [20, 0], sizes = [4, 128], strides = [1, 1]} : vector<128x128xf32> to vector<4x128xf32>
    %cst_12 = arith.constant dense<0.000000e+00> : vector<256x128xf32>
    %36 = tpu.matmul %34, %35, %cst_12 {dimension_numbers = #tpu.dot_dimension_numbers<[1], [0], [0], [1], [0, 0, 1, 1], [], []>} : vector<256x4xf32>, vector<4x128xf32>, vector<256x128xf32> -> vector<256x128xf32>
    %37 = arith.addf %33, %36 : vector<256x128xf32>
    %38 = vector.shape_cast %10 : vector<16x16x4xf32> to vector<256x4xf32>
    %39 = vector.extract_strided_slice %0 {offsets = [24, 0], sizes = [4, 128], strides = [1, 1]} : vector<128x128xf32> to vector<4x128xf32>
    %cst_13 = arith.constant dense<0.000000e+00> : vector<256x128xf32>
    %40 = tpu.matmul %38, %39, %cst_13 {dimension_numbers = #tpu.dot_dimension_numbers<[1], [0], [0], [1], [0, 0, 1, 1], [], []>} : vector<256x4xf32>, vector<4x128xf32>, vector<256x128xf32> -> vector<256x128xf32>
    %41 = arith.addf %37, %40 : vector<256x128xf32>
    %42 = vector.shape_cast %11 : vector<16x16x4xf32> to vector<256x4xf32>
    %43 = vector.extract_strided_slice %0 {offsets = [28, 0], sizes = [4, 128], strides = [1, 1]} : vector<128x128xf32> to vector<4x128xf32>
    %cst_14 = arith.constant dense<0.000000e+00> : vector<256x128xf32>
    %44 = tpu.matmul %42, %43, %cst_14 {dimension_numbers = #tpu.dot_dimension_numbers<[1], [0], [0], [1], [0, 0, 1, 1], [], []>} : vector<256x4xf32>, vector<4x128xf32>, vector<256x128xf32> -> vector<256x128xf32>
    %45 = arith.addf %41, %44 : vector<256x128xf32>
    %46 = vector.shape_cast %12 : vector<16x16x4xf32> to vector<256x4xf32>
    %47 = vector.extract_strided_slice %0 {offsets = [32, 0], sizes = [4, 128], strides = [1, 1]} : vector<128x128xf32> to vector<4x128xf32>
    %cst_15 = arith.constant dense<0.000000e+00> : vector<256x128xf32>
    %48 = tpu.matmul %46, %47, %cst_15 {dimension_numbers = #tpu.dot_dimension_numbers<[1], [0], [0], [1], [0, 0, 1, 1], [], []>} : vector<256x4xf32>, vector<4x128xf32>, vector<256x128xf32> -> vector<256x128xf32>
    %49 = arith.addf %45, %48 : vector<256x128xf32>
    %50 = vector.broadcast %1 : vector<1x128xf32> to vector<256x128xf32>
    %51 = arith.addf %49, %50 : vector<256x128xf32>
    %cst_16 = arith.constant 0.000000e+00 : f32
    %52 = vector.broadcast %cst_16 : f32 to vector<256x128xf32>
    %53 = arith.maximumf %51, %52 : vector<256x128xf32>
    %c0_17 = arith.constant 0 : index
    %c0_18 = arith.constant 0 : index
    %c0_19 = arith.constant 0 : index
    %54 = vector.load %arg4[%c0_17, %c0_18, %c0_19] : memref<1x256x128xf32, #tpu.memory_space<vmem>>, vector<1x256x128xf32>
    %55 = vector.shape_cast %54 : vector<1x256x128xf32> to vector<256x128xf32>
    %56 = vector.shape_cast %53 : vector<256x128xf32> to vector<1x256x128xf32>
    tpu.vector_store %arg4[%c0_17, %c0_18, %c0_19], %56 {strides = array<i32>} : memref<1x256x128xf32, #tpu.memory_space<vmem>>, vector<1x256x128xf32>,
    return
  }
  func.func @transform_0(%arg0: i32) -> (i32, i32, i32, i32) {
    %c0_i32 = arith.constant 0 : i32
    %c0_i32_0 = arith.constant 0 : i32
    %c0_i32_1 = arith.constant 0 : i32
    %c0_i32_2 = arith.constant 0 : i32
    return %arg0, %c0_i32, %c0_i32_0, %c0_i32_1 : i32, i32, i32, i32
  }
  func.func @transform_1(%arg0: i32) -> (i32, i32) {
    %c0_i32 = arith.constant 0 : i32
    %c0_i32_0 = arith.constant 0 : i32
    %c0_i32_1 = arith.constant 0 : i32
    return %c0_i32, %c0_i32_0 : i32, i32
  }
  func.func @transform_2(%arg0: i32) -> (i32, i32) {
    %c0_i32 = arith.constant 0 : i32
    %c0_i32_0 = arith.constant 0 : i32
    %c0_i32_1 = arith.constant 0 : i32
    return %c0_i32, %c0_i32_0 : i32, i32
  }
  func.func @transform_3(%arg0: i32) -> (i32, i32, i32) {
    %c0_i32 = arith.constant 0 : i32
    %c0_i32_0 = arith.constant 0 : i32
    %c0_i32_1 = arith.constant 0 : i32
    return %arg0, %c0_i32, %c0_i32_0 : i32, i32, i32
  }
}

</mosaic_0001>

<llo_original>
// kernel: conv_layer_forward.1
$region0: #{conv_layer_forward.1}
  #allocation0 [shape = 'u32[]', space=smem, size = 0x4, offset = 0x4, fixed_abs, tag = 'smem constant byte address 0x4 - core index']
  #allocation1 [shape = 'u32[144,128]{1,0:T(1,128)}', space=vmem, size = 0x12000, scoped, tag = 'internal scratch']
  %s0 = inlined_call_operand.vmem [shape: f32[2,18,18,4], index: 0, kind: input, shape index: {}]
  %s1 = inlined_call_operand.vmem [shape: f32[128,128], index: 1, kind: input, shape index: {}]
  %s2 = inlined_call_operand.vmem [shape: f32[1,128], index: 2, kind: input, shape index: {}]
  %s3 = inlined_call_operand.vmem [shape: f32[2,256,128], index: 3, kind: output, shape index: {}]
  %s4 = sld [smem:[#allocation0]]
  $region45: #{conv_layer_forward.1} parent=0
    _
  %s6 = ssub.s32 1, %s4
  %s7 = scalar_select 0, %s6, %s4
  loop: start=0, step=1, limit=4
  $region2: #{conv_layer_forward.1} parent=0 // loop_pre_header
    _
  $region3: #{conv_layer_forward.1} parent=0 // loop_header
    %s9 = sphi 0, %s13
    %p10 = scmp.ge.s32.totalorder %s9, 4
    %s19 = sphi 0, %s21
    %s22 = sphi 0, %s19
    %s23 = sphi 0, %s22
    %s39 = sphi 0, %s23
    %s43 = sphi 0, %s43
    %s45 = sphi 0, %s43
    %s46 = sphi 0, %s45
    %s60 = sphi 0, %s46
    %s64 = sphi 0, %s64
    %s66 = sphi 0, %s64
    %s67 = sphi 0, %s66
    %s81 = sphi 0, %s67
    %s87 = sphi 0, %s89
    %s90 = sphi 0, %s87
    %s91 = sphi 0, %s90
    %s107 = sphi 0, %s91
  $region4: #{conv_layer_forward.1} parent=0 // loop_header_branch
    %12 = sbr.rel (%p10) target = $region8
  $region5: #{conv_layer_forward.1} parent=0 // loop_body
    %s14 = ssub.s32 %s9, 1
    %s15 = ssub.s32 %s9, 2
    %s16 = sadd.s32 %s9, 1
    %s17 = ssub.s32 %s9, %s16
    %p18 = scmp.eq.s32.totalorder %s17, 0
    %s20 = sadd.s32 %s19, 1
    %s21 = scalar_select %p18, %s19, %s20
    %p24 = pneg %p18
    %p25 = scmp.eq.s32.totalorder %s9, 1
    %p26 = por %p24, %p25
    %p27 = scmp.ne.s32.totalorder %s19, %s22
    %p28 = scmp.eq.s32.totalorder %s9, 0
    %p29 = por %p27, %p28
    %p30 = scmp.ne.s32.totalorder %s19, %s22
    %p31 = scmp.eq.s32.totalorder %s14, 1
    %p32 = por %p30, %p31
    %p33 = scmp.ne.s32.totalorder %s22, %s23
    %p34 = scmp.eq.s32.totalorder %s14, 0
    %p35 = por %p33, %p34
    %p36 = scmp.ne.s32.totalorder %s22, %s23
    %p37 = scmp.eq.s32.totalorder %s15, 1
    %p38 = por %p36, %p37
    %p40 = scmp.ne.s32.totalorder %s23, %s39
    %p41 = scmp.eq.s32.totalorder %s15, 0
    %p42 = por %p40, %p41
    %s44 = sadd.s32 %s43, 1
    %p47 = scmp.eq.s32.totalorder %s9, 1
    %p48 = scmp.ne.s32.totalorder %s43, %s45
    %p49 = scmp.eq.s32.totalorder %s9, 0
    %p50 = por %p48, %p49
    %p51 = scmp.ne.s32.totalorder %s43, %s45
    %p52 = scmp.eq.s32.totalorder %s14, 1
    %p53 = por %p51, %p52
    %p54 = scmp.ne.s32.totalorder %s45, %s46
    %p55 = scmp.eq.s32.totalorder %s14, 0
    %p56 = por %p54, %p55
    %p57 = scmp.ne.s32.totalorder %s45, %s46
    %p58 = scmp.eq.s32.totalorder %s15, 1
    %p59 = por %p57, %p58
    %p61 = scmp.ne.s32.totalorder %s46, %s60
    %p62 = scmp.eq.s32.totalorder %s15, 0
    %p63 = por %p61, %p62
    %s65 = sadd.s32 %s64, 1
    %p68 = scmp.eq.s32.totalorder %s9, 1
    %p69 = scmp.ne.s32.totalorder %s64, %s66
    %p70 = scmp.eq.s32.totalorder %s9, 0
    %p71 = por %p69, %p70
    %p72 = scmp.ne.s32.totalorder %s64, %s66
    %p73 = scmp.eq.s32.totalorder %s14, 1
    %p74 = por %p72, %p73
    %p75 = scmp.ne.s32.totalorder %s66, %s67
    %p76 = scmp.eq.s32.totalorder %s14, 0
    %p77 = por %p75, %p76
    %p78 = scmp.ne.s32.totalorder %s66, %s67
    %p79 = scmp.eq.s32.totalorder %s15, 1
    %p80 = por %p78, %p79
    %p82 = scmp.ne.s32.totalorder %s67, %s81
    %p83 = scmp.eq.s32.totalorder %s15, 0
    %p84 = por %p82, %p83
    %s85 = ssub.s32 %s9, %s16
    %p86 = scmp.eq.s32.totalorder %s85, 0
    %s88 = sadd.s32 %s87, 1
    %s89 = scalar_select %p86, %s87, %s88
    %p92 = pneg %p86
    %p93 = scmp.eq.s32.totalorder %s9, 1
    %p94 = por %p92, %p93
    %p95 = scmp.ne.s32.totalorder %s87, %s90
    %p96 = scmp.eq.s32.totalorder %s9, 0
    %p97 = por %p95, %p96
    %p98 = scmp.ne.s32.totalorder %s87, %s90
    %p99 = scmp.eq.s32.totalorder %s14, 1
    %p100 = por %p98, %p99
    %p101 = scmp.ne.s32.totalorder %s90, %s91
    %p102 = scmp.eq.s32.totalorder %s14, 0
    %p103 = por %p101, %p102
    %p104 = scmp.ne.s32.totalorder %s90, %s91
    %p105 = scmp.eq.s32.totalorder %s15, 1
    %p106 = por %p104, %p105
    %p108 = scmp.ne.s32.totalorder %s91, %s107
    %p109 = scmp.eq.s32.totalorder %s15, 0
    %p110 = por %p108, %p109
    %p111 = scmp.le.s32.totalorder 1, %s9
    %p112 = scmp.lt.s32.totalorder %s9, 3
    %p113 = pnand %p111, %p112
    %p114 = pneg %p113
    // Predicated region
    $region9: #{conv_layer_forward.1} parent=5 // pred_check
      _
    $region10: #{conv_layer_forward.1} parent=5 // pred_check_branch
      %116 = sbr.rel (%p113) target = $region12
    $region11: #{conv_layer_forward.1} parent=5 // pred_region
      %s117 = ssub.s32 %s9, 1
      // Predicated region
      $region13: #{conv_layer_forward.1} parent=11 // pred_check
        %p118 = pneg %p56
      $region14: #{conv_layer_forward.1} parent=11 // pred_check_branch
        %120 = sbr.rel (%p118) target = $region16
      $region15: #{conv_layer_forward.1} parent=11 // pred_region
        _
      $region16: #{conv_layer_forward.1} parent=11 // pred_fallthru
        _
      // Predicated region
      $region17: #{conv_layer_forward.1} parent=11 // pred_check
        %p121 = pneg %p77
      $region18: #{conv_layer_forward.1} parent=11 // pred_check_branch
        %123 = sbr.rel (%p121) target = $region20
      $region19: #{conv_layer_forward.1} parent=11 // pred_region
        _
      $region20: #{conv_layer_forward.1} parent=11 // pred_fallthru
        _
    $region12: #{conv_layer_forward.1} parent=5 // pred_fallthru
      _
    %p124 = scmp.lt.s32.totalorder %s9, 2
    // Predicated region
    $region21: #{conv_layer_forward.1} parent=5 // pred_check
      %p125 = pneg %p124
    $region22: #{conv_layer_forward.1} parent=5 // pred_check_branch
      %127 = sbr.rel (%p125) target = $region24
    $region23: #{conv_layer_forward.1} parent=5 // pred_region
      // Predicated region
      $region25: #{conv_layer_forward.1} parent=23 // pred_check
        %p128 = pneg %p29
      $region26: #{conv_layer_forward.1} parent=23 // pred_check_branch
        %130 = sbr.rel (%p128) target = $region28
      $region27: #{conv_layer_forward.1} parent=23 // pred_region
        %p131 = scmp.lt.s32.totalorder %s9, 1
        %s132 = scalar_select %p131, %s9, 1
        %s133 = smul.addr %s132, 54
        %s134 = smul.addr %s133, 8
        %s135 = scalar_lea.vmem %s0, %s134
      $region28: #{conv_layer_forward.1} parent=23 // pred_fallthru
        _
    $region24: #{conv_layer_forward.1} parent=5 // pred_fallthru
      _
    %p136 = scmp.le.s32.totalorder 1, %s9
    %p137 = scmp.lt.s32.totalorder %s9, 3
    %p138 = pnand %p136, %p137
    %p139 = pneg %p138
    // Predicated region
    $region29: #{conv_layer_forward.1} parent=5 // pred_check
      _
    $region30: #{conv_layer_forward.1} parent=5 // pred_check_branch
      %141 = sbr.rel (%p138) target = $region32
    $region31: #{conv_layer_forward.1} parent=5 // pred_region
      %s142 = ssub.s32 %s9, 1
      %p143 = scmp.lt.s32.totalorder %s14, 1
      %s144 = scalar_select %p143, %s14, 1
      %s145 = smul.addr %s144, 54
      %s146 = smul.addr %s145, 8
      %s147 = scalar_lea.vmem %s0, %s146
      %p148 = pneg %p35
      %p149 = pneg %p32
      %p150 = pneg %p56
      %p151 = pneg %p53
      %p152 = pneg %p77
      %p153 = pneg %p74
      %p154 = pneg %p103
      %p155 = pneg %p100
      %p156 = scmp.lt.s32.totalorder %s14, 1
      %s157 = scalar_select %p156, %s14, 1
      %s158 = smul.addr %s157, 32
      %s159 = smul.addr %s158, 8
      %s160 = scalar_lea.vmem %s3, %s159
      %p161 = scmp.lt.s32.totalorder %s14, 1
      %s162 = scalar_select %p161, %s14, 1
      %s163 = smul.addr %s162, 54
      %s164 = smul.addr %s163, 8
      %s165 = scalar_lea.vmem %s0, %s164
      %p166 = scmp.lt.s32.totalorder %s14, 1
      %s167 = scalar_select %p166, %s14, 1
      %s168 = smul.addr %s167, 32
      %s169 = smul.addr %s168, 8
      %s170 = scalar_lea.vmem %s3, %s169
      %v171 = vld [vmem:[%s1] sm:$0xff]
      %v172 = vld [vmem:[%s1 + $0x8] sm:$0xff]
      %v173 = vld [vmem:[%s1 + $0x10] sm:$0xff]
      %v174 = vld [vmem:[%s1 + $0x18] sm:$0xff]
      %v175 = vld [vmem:[%s1 + $0x20] sm:$0xff]
      %v176 = vld [vmem:[%s1 + $0x28] sm:$0xff]
      %v177 = vld [vmem:[%s1 + $0x30] sm:$0xff]
      %v178 = vld [vmem:[%s1 + $0x38] sm:$0xff]
      %v179 = vld [vmem:[%s1 + $0x40] sm:$0xff]
      %v180 = vld [vmem:[%s1 + $0x48] sm:$0xff]
      %v181 = vld [vmem:[%s1 + $0x50] sm:$0xff]
      %v182 = vld [vmem:[%s1 + $0x58] sm:$0xff]
      %v183 = vld [vmem:[%s1 + $0x60] sm:$0xff]
      %v184 = vld [vmem:[%s1 + $0x68] sm:$0xff]
      %v185 = vld [vmem:[%s1 + $0x70] sm:$0xff]
      %v186 = vld [vmem:[%s1 + $0x78] sm:$0xff]
      %v187 = vld [vmem:[%s2] sm:$0x1]
      %v188 = vld [vmem:[%s165] sm:$0xff]
      %v189 = vld [vmem:[%s165 + $0x8] sm:$0xff]
      %v190 = vld [vmem:[%s165 + $0x10] sm:$0x3]
      %v191 = vld [vmem:[%s165 + $0x18] sm:$0xff]
      %v192 = vld [vmem:[%s165 + $0x20] sm:$0xff]
      %v193 = vld [vmem:[%s165 + $0x28] sm:$0x3]
      %v194 = vld [vmem:[%s165 + $0x30] sm:$0xff]
      %v195 = vld [vmem:[%s165 + $0x38] sm:$0xff]
      %v196 = vld [vmem:[%s165 + $0x40] sm:$0x3]
      %v197 = vld [vmem:[%s165 + $0x48] sm:$0xff]
      %v198 = vld [vmem:[%s165 + $0x50] sm:$0xff]
      %v199 = vld [vmem:[%s165 + $0x58] sm:$0x3]
      %v200 = vld [vmem:[%s165 + $0x60] sm:$0xff]
      %v201 = vld [vmem:[%s165 + $0x68] sm:$0xff]
      %v202 = vld [vmem:[%s165 + $0x70] sm:$0x3]
      %v203 = vld [vmem:[%s165 + $0x78] sm:$0xff]
      %v204 = vld [vmem:[%s165 + $0x80] sm:$0xff]
      %v205 = vld [vmem:[%s165 + $0x88] sm:$0x3]
      %v206 = vld [vmem:[%s165 + $0x90] sm:$0xff]
      %v207 = vld [vmem:[%s165 + $0x98] sm:$0xff]
      %v208 = vld [vmem:[%s165 + $0xa0] sm:$0x3]
      %v209 = vld [vmem:[%s165 + $0xa8] sm:$0xff]
      %v210 = vld [vmem:[%s165 + $0xb0] sm:$0xff]
      %v211 = vld [vmem:[%s165 + $0xb8] sm:$0x3]
      %v212 = vld [vmem:[%s165 + $0xc0] sm:$0xff]
      %v213 = vld [vmem:[%s165 + $0xc8] sm:$0xff]
      %v214 = vld [vmem:[%s165 + $0xd0] sm:$0x3]
      %v215 = vld [vmem:[%s165 + $0xd8] sm:$0xff]
      %v216 = vld [vmem:[%s165 + $0xe0] sm:$0xff]
      %v217 = vld [vmem:[%s165 + $0xe8] sm:$0x3]
      %v218 = vld [vmem:[%s165 + $0xf0] sm:$0xff]
      %v219 = vld [vmem:[%s165 + $0xf8] sm:$0xff]
      %v220 = vld [vmem:[%s165 + $0x100] sm:$0x3]
      %v221 = vld [vmem:[%s165 + $0x108] sm:$0xff]
      %v222 = vld [vmem:[%s165 + $0x110] sm:$0xff]
      %v223 = vld [vmem:[%s165 + $0x118] sm:$0x3]
      %v224 = vld [vmem:[%s165 + $0x120] sm:$0xff]
      %v225 = vld [vmem:[%s165 + $0x128] sm:$0xff]
      %v226 = vld [vmem:[%s165 + $0x130] sm:$0x3]
      %v227 = vld [vmem:[%s165 + $0x138] sm:$0xff]
      %v228 = vld [vmem:[%s165 + $0x140] sm:$0xff]
      %v229 = vld [vmem:[%s165 + $0x148] sm:$0x3]
      %v230 = vld [vmem:[%s165 + $0x150] sm:$0xff]
      %v231 = vld [vmem:[%s165 + $0x158] sm:$0xff]
      %v232 = vld [vmem:[%s165 + $0x160] sm:$0x3]
      %v233 = vld [vmem:[%s165 + $0x168] sm:$0xff]
      %v234 = vld [vmem:[%s165 + $0x170] sm:$0xff]
      %v235 = vld [vmem:[%s165 + $0x178] sm:$0x3]
      %v236 = vld [vmem:[%s165 + $0x180] sm:$0xff]
      %v237 = vld [vmem:[%s165 + $0x188] sm:$0xff]
      %v238 = vld [vmem:[%s165 + $0x190] sm:$0x3]
      %v239 = vld [vmem:[%s165 + $0x198] sm:$0xff]
      %v240 = vld [vmem:[%s165 + $0x1a0] sm:$0xff]
      %v241 = vld [vmem:[%s165 + $0x1a8] sm:$0x3]
      %vm290 = vcmask 1046528
      %v291 = vrot.slane %v188, 1
      %v292 = vrot.slane %v189, 1
      %v293 = vsel %vm290, %v291, %v292
      %v294 = vrot.slane %v190, 1
      %v295 = vsel %vm290, %v292, %v294
      %v296 = vrot.slane %v191, 1
      %v297 = vrot.slane %v192, 1
      %v298 = vsel %vm290, %v296, %v297
      %v299 = vrot.slane %v193, 1
      %v300 = vsel %vm290, %v297, %v299
      %v301 = vrot.slane %v194, 1
      %v302 = vrot.slane %v195, 1
      %v303 = vsel %vm290, %v301, %v302
      %v304 = vrot.slane %v196, 1
      %v305 = vsel %vm290, %v302, %v304
      %v306 = vrot.slane %v197, 1
      %v307 = vrot.slane %v198, 1
      %v308 = vsel %vm290, %v306, %v307
      %v309 = vrot.slane %v199, 1
      %v310 = vsel %vm290, %v307, %v309
      %v311 = vrot.slane %v200, 1
      %v312 = vrot.slane %v201, 1
      %v313 = vsel %vm290, %v311, %v312
      %v314 = vrot.slane %v202, 1
      %v315 = vsel %vm290, %v312, %v314
      %v316 = vrot.slane %v203, 1
      %v317 = vrot.slane %v204, 1
      %v318 = vsel %vm290, %v316, %v317
      %v319 = vrot.slane %v205, 1
      %v320 = vsel %vm290, %v317, %v319
      %v321 = vrot.slane %v206, 1
      %v322 = vrot.slane %v207, 1
      %v323 = vsel %vm290, %v321, %v322
      %v324 = vrot.slane %v208, 1
      %v325 = vsel %vm290, %v322, %v324
      %v326 = vrot.slane %v209, 1
      %v327 = vrot.slane %v210, 1
      %v328 = vsel %vm290, %v326, %v327
      %v329 = vrot.slane %v211, 1
      %v330 = vsel %vm290, %v327, %v329
      %v331 = vrot.slane %v212, 1
      %v332 = vrot.slane %v213, 1
      %v333 = vsel %vm290, %v331, %v332
      %v334 = vrot.slane %v214, 1
      %v335 = vsel %vm290, %v332, %v334
      %v336 = vrot.slane %v215, 1
      %v337 = vrot.slane %v216, 1
      %v338 = vsel %vm290, %v336, %v337
      %v339 = vrot.slane %v217, 1
      %v340 = vsel %vm290, %v337, %v339
      %v341 = vrot.slane %v218, 1
      %v342 = vrot.slane %v219, 1
      %v343 = vsel %vm290, %v341, %v342
      %v344 = vrot.slane %v220, 1
      %v345 = vsel %vm290, %v342, %v344
      %v346 = vrot.slane %v221, 1
      %v347 = vrot.slane %v222, 1
      %v348 = vsel %vm290, %v346, %v347
      %v349 = vrot.slane %v223, 1
      %v350 = vsel %vm290, %v347, %v349
      %v351 = vrot.slane %v224, 1
      %v352 = vrot.slane %v225, 1
      %v353 = vsel %vm290, %v351, %v352
      %v354 = vrot.slane %v226, 1
      %v355 = vsel %vm290, %v352, %v354
      %v356 = vrot.slane %v227, 1
      %v357 = vrot.slane %v228, 1
      %v358 = vsel %vm290, %v356, %v357
      %v359 = vrot.slane %v229, 1
      %v360 = vsel %vm290, %v357, %v359
      %v361 = vrot.slane %v230, 1
      %v362 = vrot.slane %v231, 1
      %v363 = vsel %vm290, %v361, %v362
      %v364 = vrot.slane %v232, 1
      %v365 = vsel %vm290, %v362, %v364
      %v366 = vrot.slane %v233, 1
      %v367 = vrot.slane %v234, 1
      %v368 = vsel %vm290, %v366, %v367
      %v369 = vrot.slane %v235, 1
      %v370 = vsel %vm290, %v367, %v369
      %371 = vrot.lane.b32.xlu0 %v293, 4
      %v372 = vpop.permute.xlu0 %371
      %373 = vrot.lane.b32.xlu0 %v295, 4
      %v374 = vpop.permute.xlu0 %373
      %375 = vrot.lane.b32.xlu0 %v298, 4
      %v376 = vpop.permute.xlu0 %375
      %377 = vrot.lane.b32.xlu0 %v300, 4
      %v378 = vpop.permute.xlu0 %377
      %379 = vrot.lane.b32.xlu0 %v303, 4
      %v380 = vpop.permute.xlu0 %379
      %381 = vrot.lane.b32.xlu0 %v305, 4
      %v382 = vpop.permute.xlu0 %381
      %383 = vrot.lane.b32.xlu0 %v308, 4
      %v384 = vpop.permute.xlu0 %383
      %385 = vrot.lane.b32.xlu0 %v310, 4
      %v386 = vpop.permute.xlu0 %385
      %387 = vrot.lane.b32.xlu0 %v313, 4
      %v388 = vpop.permute.xlu0 %387
      %389 = vrot.lane.b32.xlu0 %v315, 4
      %v390 = vpop.permute.xlu0 %389
      %391 = vrot.lane.b32.xlu0 %v318, 4
      %v392 = vpop.permute.xlu0 %391
      %393 = vrot.lane.b32.xlu0 %v320, 4
      %v394 = vpop.permute.xlu0 %393
      %395 = vrot.lane.b32.xlu0 %v323, 4
      %v396 = vpop.permute.xlu0 %395
      %397 = vrot.lane.b32.xlu0 %v325, 4
      %v398 = vpop.permute.xlu0 %397
      %399 = vrot.lane.b32.xlu0 %v328, 4
      %v400 = vpop.permute.xlu0 %399
      %401 = vrot.lane.b32.xlu0 %v330, 4
      %v402 = vpop.permute.xlu0 %401
      %403 = vrot.lane.b32.xlu0 %v333, 4
      %v404 = vpop.permute.xlu0 %403
      %405 = vrot.lane.b32.xlu0 %v335, 4
      %v406 = vpop.permute.xlu0 %405
      %407 = vrot.lane.b32.xlu0 %v338, 4
      %v408 = vpop.permute.xlu0 %407
      %409 = vrot.lane.b32.xlu0 %v340, 4
      %v410 = vpop.permute.xlu0 %409
      %411 = vrot.lane.b32.xlu0 %v343, 4
      %v412 = vpop.permute.xlu0 %411
      %413 = vrot.lane.b32.xlu0 %v345, 4
      %v414 = vpop.permute.xlu0 %413
      %415 = vrot.lane.b32.xlu0 %v348, 4
      %v416 = vpop.permute.xlu0 %415
      %417 = vrot.lane.b32.xlu0 %v350, 4
      %v418 = vpop.permute.xlu0 %417
      %419 = vrot.lane.b32.xlu0 %v353, 4
      %v420 = vpop.permute.xlu0 %419
      %421 = vrot.lane.b32.xlu0 %v355, 4
      %v422 = vpop.permute.xlu0 %421
      %423 = vrot.lane.b32.xlu0 %v358, 4
      %v424 = vpop.permute.xlu0 %423
      %425 = vrot.lane.b32.xlu0 %v360, 4
      %v426 = vpop.permute.xlu0 %425
      %427 = vrot.lane.b32.xlu0 %v363, 4
      %v428 = vpop.permute.xlu0 %427
      %429 = vrot.lane.b32.xlu0 %v365, 4
      %v430 = vpop.permute.xlu0 %429
      %431 = vrot.lane.b32.xlu0 %v368, 4
      %v432 = vpop.permute.xlu0 %431
      %433 = vrot.lane.b32.xlu0 %v370, 4
      %v434 = vpop.permute.xlu0 %433
      %vm467 = vcmask 1045504
      %v468 = vrot.slane %v188, 2
      %v469 = vrot.slane %v189, 2
      %v470 = vsel %vm467, %v468, %v469
      %v471 = vrot.slane %v190, 2
      %v472 = vsel %vm467, %v469, %v471
      %v473 = vrot.slane %v191, 2
      %v474 = vrot.slane %v192, 2
      %v475 = vsel %vm467, %v473, %v474
      %v476 = vrot.slane %v193, 2
      %v477 = vsel %vm467, %v474, %v476
      %v478 = vrot.slane %v194, 2
      %v479 = vrot.slane %v195, 2
      %v480 = vsel %vm467, %v478, %v479
      %v481 = vrot.slane %v196, 2
      %v482 = vsel %vm467, %v479, %v481
      %v483 = vrot.slane %v197, 2
      %v484 = vrot.slane %v198, 2
      %v485 = vsel %vm467, %v483, %v484
      %v486 = vrot.slane %v199, 2
      %v487 = vsel %vm467, %v484, %v486
      %v488 = vrot.slane %v200, 2
      %v489 = vrot.slane %v201, 2
      %v490 = vsel %vm467, %v488, %v489
      %v491 = vrot.slane %v202, 2
      %v492 = vsel %vm467, %v489, %v491
      %v493 = vrot.slane %v203, 2
      %v494 = vrot.slane %v204, 2
      %v495 = vsel %vm467, %v493, %v494
      %v496 = vrot.slane %v205, 2
      %v497 = vsel %vm467, %v494, %v496
      %v498 = vrot.slane %v206, 2
      %v499 = vrot.slane %v207, 2
      %v500 = vsel %vm467, %v498, %v499
      %v501 = vrot.slane %v208, 2
      %v502 = vsel %vm467, %v499, %v501
      %v503 = vrot.slane %v209, 2
      %v504 = vrot.slane %v210, 2
      %v505 = vsel %vm467, %v503, %v504
      %v506 = vrot.slane %v211, 2
      %v507 = vsel %vm467, %v504, %v506
      %v508 = vrot.slane %v212, 2
      %v509 = vrot.slane %v213, 2
      %v510 = vsel %vm467, %v508, %v509
      %v511 = vrot.slane %v214, 2
      %v512 = vsel %vm467, %v509, %v511
      %v513 = vrot.slane %v215, 2
      %v514 = vrot.slane %v216, 2
      %v515 = vsel %vm467, %v513, %v514
      %v516 = vrot.slane %v217, 2
      %v517 = vsel %vm467, %v514, %v516
      %v518 = vrot.slane %v218, 2
      %v519 = vrot.slane %v219, 2
      %v520 = vsel %vm467, %v518, %v519
      %v521 = vrot.slane %v220, 2
      %v522 = vsel %vm467, %v519, %v521
      %v523 = vrot.slane %v221, 2
      %v524 = vrot.slane %v222, 2
      %v525 = vsel %vm467, %v523, %v524
      %v526 = vrot.slane %v223, 2
      %v527 = vsel %vm467, %v524, %v526
      %v528 = vrot.slane %v224, 2
      %v529 = vrot.slane %v225, 2
      %v530 = vsel %vm467, %v528, %v529
      %v531 = vrot.slane %v226, 2
      %v532 = vsel %vm467, %v529, %v531
      %v533 = vrot.slane %v227, 2
      %v534 = vrot.slane %v228, 2
      %v535 = vsel %vm467, %v533, %v534
      %v536 = vrot.slane %v229, 2
      %v537 = vsel %vm467, %v534, %v536
      %v538 = vrot.slane %v230, 2
      %v539 = vrot.slane %v231, 2
      %v540 = vsel %vm467, %v538, %v539
      %v541 = vrot.slane %v232, 2
      %v542 = vsel %vm467, %v539, %v541
      %v543 = vrot.slane %v233, 2
      %v544 = vrot.slane %v234, 2
      %v545 = vsel %vm467, %v543, %v544
      %v546 = vrot.slane %v235, 2
      %v547 = vsel %vm467, %v544, %v546
      %548 = vrot.lane.b32.xlu0 %v470, 8
      %v549 = vpop.permute.xlu0 %548
      %550 = vrot.lane.b32.xlu0 %v472, 8
      %v551 = vpop.permute.xlu0 %550
      %552 = vrot.lane.b32.xlu0 %v475, 8
      %v553 = vpop.permute.xlu0 %552
      %554 = vrot.lane.b32.xlu0 %v477, 8
      %v555 = vpop.permute.xlu0 %554
      %556 = vrot.lane.b32.xlu0 %v480, 8
      %v557 = vpop.permute.xlu0 %556
      %558 = vrot.lane.b32.xlu0 %v482, 8
      %v559 = vpop.permute.xlu0 %558
      %560 = vrot.lane.b32.xlu0 %v485, 8
      %v561 = vpop.permute.xlu0 %560
      %562 = vrot.lane.b32.xlu0 %v487, 8
      %v563 = vpop.permute.xlu0 %562
      %564 = vrot.lane.b32.xlu0 %v490, 8
      %v565 = vpop.permute.xlu0 %564
      %566 = vrot.lane.b32.xlu0 %v492, 8
      %v567 = vpop.permute.xlu0 %566
      %568 = vrot.lane.b32.xlu0 %v495, 8
      %v569 = vpop.permute.xlu0 %568
      %570 = vrot.lane.b32.xlu0 %v497, 8
      %v571 = vpop.permute.xlu0 %570
      %572 = vrot.lane.b32.xlu0 %v500, 8
      %v573 = vpop.permute.xlu0 %572
      %574 = vrot.lane.b32.xlu0 %v502, 8
      %v575 = vpop.permute.xlu0 %574
      %576 = vrot.lane.b32.xlu0 %v505, 8
      %v577 = vpop.permute.xlu0 %576
      %578 = vrot.lane.b32.xlu0 %v507, 8
      %v579 = vpop.permute.xlu0 %578
      %580 = vrot.lane.b32.xlu0 %v510, 8
      %v581 = vpop.permute.xlu0 %580
      %582 = vrot.lane.b32.xlu0 %v512, 8
      %v583 = vpop.permute.xlu0 %582
      %584 = vrot.lane.b32.xlu0 %v515, 8
      %v585 = vpop.permute.xlu0 %584
      %586 = vrot.lane.b32.xlu0 %v517, 8
      %v587 = vpop.permute.xlu0 %586
      %588 = vrot.lane.b32.xlu0 %v520, 8
      %v589 = vpop.permute.xlu0 %588
      %590 = vrot.lane.b32.xlu0 %v522, 8
      %v591 = vpop.permute.xlu0 %590
      %592 = vrot.lane.b32.xlu0 %v525, 8
      %v593 = vpop.permute.xlu0 %592
      %594 = vrot.lane.b32.xlu0 %v527, 8
      %v595 = vpop.permute.xlu0 %594
      %596 = vrot.lane.b32.xlu0 %v530, 8
      %v597 = vpop.permute.xlu0 %596
      %598 = vrot.lane.b32.xlu0 %v532, 8
      %v599 = vpop.permute.xlu0 %598
      %600 = vrot.lane.b32.xlu0 %v535, 8
      %v601 = vpop.permute.xlu0 %600
      %602 = vrot.lane.b32.xlu0 %v537, 8
      %v603 = vpop.permute.xlu0 %602
      %604 = vrot.lane.b32.xlu0 %v540, 8
      %v605 = vpop.permute.xlu0 %604
      %606 = vrot.lane.b32.xlu0 %v542, 8
      %v607 = vpop.permute.xlu0 %606
      %608 = vrot.lane.b32.xlu0 %v545, 8
      %v609 = vpop.permute.xlu0 %608
      %610 = vrot.lane.b32.xlu0 %v547, 8
      %v611 = vpop.permute.xlu0 %610
      %646 = vrot.lane.b32.xlu0 %v191, 12
      %v647 = vpop.permute.xlu0 %646
      %648 = vrot.lane.b32.xlu0 %v192, 12
      %v649 = vpop.permute.xlu0 %648
      %650 = vrot.lane.b32.xlu0 %v194, 12
      %v651 = vpop.permute.xlu0 %650
      %652 = vrot.lane.b32.xlu0 %v195, 12
      %v653 = vpop.permute.xlu0 %652
      %654 = vrot.lane.b32.xlu0 %v197, 12
      %v655 = vpop.permute.xlu0 %654
      %656 = vrot.lane.b32.xlu0 %v198, 12
      %v657 = vpop.permute.xlu0 %656
      %658 = vrot.lane.b32.xlu0 %v200, 12
      %v659 = vpop.permute.xlu0 %658
      %660 = vrot.lane.b32.xlu0 %v201, 12
      %v661 = vpop.permute.xlu0 %660
      %662 = vrot.lane.b32.xlu0 %v203, 12
      %v663 = vpop.permute.xlu0 %662
      %664 = vrot.lane.b32.xlu0 %v204, 12
      %v665 = vpop.permute.xlu0 %664
      %666 = vrot.lane.b32.xlu0 %v206, 12
      %v667 = vpop.permute.xlu0 %666
      %668 = vrot.lane.b32.xlu0 %v207, 12
      %v669 = vpop.permute.xlu0 %668
      %670 = vrot.lane.b32.xlu0 %v209, 12
      %v671 = vpop.permute.xlu0 %670
      %672 = vrot.lane.b32.xlu0 %v210, 12
      %v673 = vpop.permute.xlu0 %672
      %674 = vrot.lane.b32.xlu0 %v212, 12
      %v675 = vpop.permute.xlu0 %674
      %676 = vrot.lane.b32.xlu0 %v213, 12
      %v677 = vpop.permute.xlu0 %676
      %678 = vrot.lane.b32.xlu0 %v215, 12
      %v679 = vpop.permute.xlu0 %678
      %680 = vrot.lane.b32.xlu0 %v216, 12
      %v681 = vpop.permute.xlu0 %680
      %682 = vrot.lane.b32.xlu0 %v218, 12
      %v683 = vpop.permute.xlu0 %682
      %684 = vrot.lane.b32.xlu0 %v219, 12
      %v685 = vpop.permute.xlu0 %684
      %686 = vrot.lane.b32.xlu0 %v221, 12
      %v687 = vpop.permute.xlu0 %686
      %688 = vrot.lane.b32.xlu0 %v222, 12
      %v689 = vpop.permute.xlu0 %688
      %690 = vrot.lane.b32.xlu0 %v224, 12
      %v691 = vpop.permute.xlu0 %690
      %692 = vrot.lane.b32.xlu0 %v225, 12
      %v693 = vpop.permute.xlu0 %692
      %694 = vrot.lane.b32.xlu0 %v227, 12
      %v695 = vpop.permute.xlu0 %694
      %696 = vrot.lane.b32.xlu0 %v228, 12
      %v697 = vpop.permute.xlu0 %696
      %698 = vrot.lane.b32.xlu0 %v230, 12
      %v699 = vpop.permute.xlu0 %698
      %700 = vrot.lane.b32.xlu0 %v231, 12
      %v701 = vpop.permute.xlu0 %700
      %702 = vrot.lane.b32.xlu0 %v233, 12
      %v703 = vpop.permute.xlu0 %702
      %704 = vrot.lane.b32.xlu0 %v234, 12
      %v705 = vpop.permute.xlu0 %704
      %706 = vrot.lane.b32.xlu0 %v236, 12
      %v707 = vpop.permute.xlu0 %706
      %708 = vrot.lane.b32.xlu0 %v237, 12
      %v709 = vpop.permute.xlu0 %708
      %v743 = vrot.slane %v236, 1
      %v744 = vrot.slane %v237, 1
      %v745 = vsel %vm290, %v743, %v744
      %v746 = vrot.slane %v238, 1
      %v747 = vsel %vm290, %v744, %v746
      %748 = vrot.lane.b32.xlu0 %v298, 16
      %v749 = vpop.permute.xlu0 %748
      %750 = vrot.lane.b32.xlu0 %v300, 16
      %v751 = vpop.permute.xlu0 %750
      %752 = vrot.lane.b32.xlu0 %v303, 16
      %v753 = vpop.permute.xlu0 %752
      %754 = vrot.lane.b32.xlu0 %v305, 16
      %v755 = vpop.permute.xlu0 %754
      %756 = vrot.lane.b32.xlu0 %v308, 16
      %v757 = vpop.permute.xlu0 %756
      %758 = vrot.lane.b32.xlu0 %v310, 16
      %v759 = vpop.permute.xlu0 %758
      %760 = vrot.lane.b32.xlu0 %v313, 16
      %v761 = vpop.permute.xlu0 %760
      %762 = vrot.lane.b32.xlu0 %v315, 16
      %v763 = vpop.permute.xlu0 %762
      %764 = vrot.lane.b32.xlu0 %v318, 16
      %v765 = vpop.permute.xlu0 %764
      %766 = vrot.lane.b32.xlu0 %v320, 16
      %v767 = vpop.permute.xlu0 %766
      %768 = vrot.lane.b32.xlu0 %v323, 16
      %v769 = vpop.permute.xlu0 %768
      %770 = vrot.lane.b32.xlu0 %v325, 16
      %v771 = vpop.permute.xlu0 %770
      %772 = vrot.lane.b32.xlu0 %v328, 16
      %v773 = vpop.permute.xlu0 %772
      %774 = vrot.lane.b32.xlu0 %v330, 16
      %v775 = vpop.permute.xlu0 %774
      %776 = vrot.lane.b32.xlu0 %v333, 16
      %v777 = vpop.permute.xlu0 %776
      %778 = vrot.lane.b32.xlu0 %v335, 16
      %v779 = vpop.permute.xlu0 %778
      %780 = vrot.lane.b32.xlu0 %v338, 16
      %v781 = vpop.permute.xlu0 %780
      %782 = vrot.lane.b32.xlu0 %v340, 16
      %v783 = vpop.permute.xlu0 %782
      %784 = vrot.lane.b32.xlu0 %v343, 16
      %v785 = vpop.permute.xlu0 %784
      %786 = vrot.lane.b32.xlu0 %v345, 16
      %v787 = vpop.permute.xlu0 %786
      %788 = vrot.lane.b32.xlu0 %v348, 16
      %v789 = vpop.permute.xlu0 %788
      %790 = vrot.lane.b32.xlu0 %v350, 16
      %v791 = vpop.permute.xlu0 %790
      %792 = vrot.lane.b32.xlu0 %v353, 16
      %v793 = vpop.permute.xlu0 %792
      %794 = vrot.lane.b32.xlu0 %v355, 16
      %v795 = vpop.permute.xlu0 %794
      %796 = vrot.lane.b32.xlu0 %v358, 16
      %v797 = vpop.permute.xlu0 %796
      %798 = vrot.lane.b32.xlu0 %v360, 16
      %v799 = vpop.permute.xlu0 %798
      %800 = vrot.lane.b32.xlu0 %v363, 16
      %v801 = vpop.permute.xlu0 %800
      %802 = vrot.lane.b32.xlu0 %v365, 16
      %v803 = vpop.permute.xlu0 %802
      %804 = vrot.lane.b32.xlu0 %v368, 16
      %v805 = vpop.permute.xlu0 %804
      %806 = vrot.lane.b32.xlu0 %v370, 16
      %v807 = vpop.permute.xlu0 %806
      %808 = vrot.lane.b32.xlu0 %v745, 16
      %v809 = vpop.permute.xlu0 %808
      %810 = vrot.lane.b32.xlu0 %v747, 16
      %v811 = vpop.permute.xlu0 %810
      %v844 = vrot.slane %v236, 2
      %v845 = vrot.slane %v237, 2
      %v846 = vsel %vm467, %v844, %v845
      %v847 = vrot.slane %v238, 2
      %v848 = vsel %vm467, %v845, %v847
      %849 = vrot.lane.b32.xlu0 %v475, 20
      %v850 = vpop.permute.xlu0 %849
      %851 = vrot.lane.b32.xlu0 %v477, 20
      %v852 = vpop.permute.xlu0 %851
      %853 = vrot.lane.b32.xlu0 %v480, 20
      %v854 = vpop.permute.xlu0 %853
      %855 = vrot.lane.b32.xlu0 %v482, 20
      %v856 = vpop.permute.xlu0 %855
      %857 = vrot.lane.b32.xlu0 %v485, 20
      %v858 = vpop.permute.xlu0 %857
      %859 = vrot.lane.b32.xlu0 %v487, 20
      %v860 = vpop.permute.xlu0 %859
      %861 = vrot.lane.b32.xlu0 %v490, 20
      %v862 = vpop.permute.xlu0 %861
      %863 = vrot.lane.b32.xlu0 %v492, 20
      %v864 = vpop.permute.xlu0 %863
      %865 = vrot.lane.b32.xlu0 %v495, 20
      %v866 = vpop.permute.xlu0 %865
      %867 = vrot.lane.b32.xlu0 %v497, 20
      %v868 = vpop.permute.xlu0 %867
      %869 = vrot.lane.b32.xlu0 %v500, 20
      %v870 = vpop.permute.xlu0 %869
      %871 = vrot.lane.b32.xlu0 %v502, 20
      %v872 = vpop.permute.xlu0 %871
      %873 = vrot.lane.b32.xlu0 %v505, 20
      %v874 = vpop.permute.xlu0 %873
      %875 = vrot.lane.b32.xlu0 %v507, 20
      %v876 = vpop.permute.xlu0 %875
      %877 = vrot.lane.b32.xlu0 %v510, 20
      %v878 = vpop.permute.xlu0 %877
      %879 = vrot.lane.b32.xlu0 %v512, 20
      %v880 = vpop.permute.xlu0 %879
      %881 = vrot.lane.b32.xlu0 %v515, 20
      %v882 = vpop.permute.xlu0 %881
      %883 = vrot.lane.b32.xlu0 %v517, 20
      %v884 = vpop.permute.xlu0 %883
      %885 = vrot.lane.b32.xlu0 %v520, 20
      %v886 = vpop.permute.xlu0 %885
      %887 = vrot.lane.b32.xlu0 %v522, 20
      %v888 = vpop.permute.xlu0 %887
      %889 = vrot.lane.b32.xlu0 %v525, 20
      %v890 = vpop.permute.xlu0 %889
      %891 = vrot.lane.b32.xlu0 %v527, 20
      %v892 = vpop.permute.xlu0 %891
      %893 = vrot.lane.b32.xlu0 %v530, 20
      %v894 = vpop.permute.xlu0 %893
      %895 = vrot.lane.b32.xlu0 %v532, 20
      %v896 = vpop.permute.xlu0 %895
      %897 = vrot.lane.b32.xlu0 %v535, 20
      %v898 = vpop.permute.xlu0 %897
      %899 = vrot.lane.b32.xlu0 %v537, 20
      %v900 = vpop.permute.xlu0 %899
      %901 = vrot.lane.b32.xlu0 %v540, 20
      %v902 = vpop.permute.xlu0 %901
      %903 = vrot.lane.b32.xlu0 %v542, 20
      %v904 = vpop.permute.xlu0 %903
      %905 = vrot.lane.b32.xlu0 %v545, 20
      %v906 = vpop.permute.xlu0 %905
      %907 = vrot.lane.b32.xlu0 %v547, 20
      %v908 = vpop.permute.xlu0 %907
      %909 = vrot.lane.b32.xlu0 %v846, 20
      %v910 = vpop.permute.xlu0 %909
      %911 = vrot.lane.b32.xlu0 %v848, 20
      %v912 = vpop.permute.xlu0 %911
      %947 = vrot.lane.b32.xlu0 %v194, 24
      %v948 = vpop.permute.xlu0 %947
      %949 = vrot.lane.b32.xlu0 %v195, 24
      %v950 = vpop.permute.xlu0 %949
      %951 = vrot.lane.b32.xlu0 %v197, 24
      %v952 = vpop.permute.xlu0 %951
      %953 = vrot.lane.b32.xlu0 %v198, 24
      %v954 = vpop.permute.xlu0 %953
      %955 = vrot.lane.b32.xlu0 %v200, 24
      %v956 = vpop.permute.xlu0 %955
      %957 = vrot.lane.b32.xlu0 %v201, 24
      %v958 = vpop.permute.xlu0 %957
      %959 = vrot.lane.b32.xlu0 %v203, 24
      %v960 = vpop.permute.xlu0 %959
      %961 = vrot.lane.b32.xlu0 %v204, 24
      %v962 = vpop.permute.xlu0 %961
      %963 = vrot.lane.b32.xlu0 %v206, 24
      %v964 = vpop.permute.xlu0 %963
      %965 = vrot.lane.b32.xlu0 %v207, 24
      %v966 = vpop.permute.xlu0 %965
      %967 = vrot.lane.b32.xlu0 %v209, 24
      %v968 = vpop.permute.xlu0 %967
      %969 = vrot.lane.b32.xlu0 %v210, 24
      %v970 = vpop.permute.xlu0 %969
      %971 = vrot.lane.b32.xlu0 %v212, 24
      %v972 = vpop.permute.xlu0 %971
      %973 = vrot.lane.b32.xlu0 %v213, 24
      %v974 = vpop.permute.xlu0 %973
      %975 = vrot.lane.b32.xlu0 %v215, 24
      %v976 = vpop.permute.xlu0 %975
      %977 = vrot.lane.b32.xlu0 %v216, 24
      %v978 = vpop.permute.xlu0 %977
      %979 = vrot.lane.b32.xlu0 %v218, 24
      %v980 = vpop.permute.xlu0 %979
      %981 = vrot.lane.b32.xlu0 %v219, 24
      %v982 = vpop.permute.xlu0 %981
      %983 = vrot.lane.b32.xlu0 %v221, 24
      %v984 = vpop.permute.xlu0 %983
      %985 = vrot.lane.b32.xlu0 %v222, 24
      %v986 = vpop.permute.xlu0 %985
      %987 = vrot.lane.b32.xlu0 %v224, 24
      %v988 = vpop.permute.xlu0 %987
      %989 = vrot.lane.b32.xlu0 %v225, 24
      %v990 = vpop.permute.xlu0 %989
      %991 = vrot.lane.b32.xlu0 %v227, 24
      %v992 = vpop.permute.xlu0 %991
      %993 = vrot.lane.b32.xlu0 %v228, 24
      %v994 = vpop.permute.xlu0 %993
      %995 = vrot.lane.b32.xlu0 %v230, 24
      %v996 = vpop.permute.xlu0 %995
      %997 = vrot.lane.b32.xlu0 %v231, 24
      %v998 = vpop.permute.xlu0 %997
      %999 = vrot.lane.b32.xlu0 %v233, 24
      %v1000 = vpop.permute.xlu0 %999
      %1001 = vrot.lane.b32.xlu0 %v234, 24
      %v1002 = vpop.permute.xlu0 %1001
      %1003 = vrot.lane.b32.xlu0 %v236, 24
      %v1004 = vpop.permute.xlu0 %1003
      %1005 = vrot.lane.b32.xlu0 %v237, 24
      %v1006 = vpop.permute.xlu0 %1005
      %1007 = vrot.lane.b32.xlu0 %v239, 24
      %v1008 = vpop.permute.xlu0 %1007
      %1009 = vrot.lane.b32.xlu0 %v240, 24
      %v1010 = vpop.permute.xlu0 %1009
      %v1044 = vrot.slane %v239, 1
      %v1045 = vrot.slane %v240, 1
      %v1046 = vsel %vm290, %v1044, %v1045
      %v1047 = vrot.slane %v241, 1
      %v1048 = vsel %vm290, %v1045, %v1047
      %1049 = vrot.lane.b32.xlu0 %v303, 28
      %v1050 = vpop.permute.xlu0 %1049
      %1051 = vrot.lane.b32.xlu0 %v305, 28
      %v1052 = vpop.permute.xlu0 %1051
      %1053 = vrot.lane.b32.xlu0 %v308, 28
      %v1054 = vpop.permute.xlu0 %1053
      %1055 = vrot.lane.b32.xlu0 %v310, 28
      %v1056 = vpop.permute.xlu0 %1055
      %1057 = vrot.lane.b32.xlu0 %v313, 28
      %v1058 = vpop.permute.xlu0 %1057
      %1059 = vrot.lane.b32.xlu0 %v315, 28
      %v1060 = vpop.permute.xlu0 %1059
      %1061 = vrot.lane.b32.xlu0 %v318, 28
      %v1062 = vpop.permute.xlu0 %1061
      %1063 = vrot.lane.b32.xlu0 %v320, 28
      %v1064 = vpop.permute.xlu0 %1063
      %1065 = vrot.lane.b32.xlu0 %v323, 28
      %v1066 = vpop.permute.xlu0 %1065
      %1067 = vrot.lane.b32.xlu0 %v325, 28
      %v1068 = vpop.permute.xlu0 %1067
      %1069 = vrot.lane.b32.xlu0 %v328, 28
      %v1070 = vpop.permute.xlu0 %1069
      %1071 = vrot.lane.b32.xlu0 %v330, 28
      %v1072 = vpop.permute.xlu0 %1071
      %1073 = vrot.lane.b32.xlu0 %v333, 28
      %v1074 = vpop.permute.xlu0 %1073
      %1075 = vrot.lane.b32.xlu0 %v335, 28
      %v1076 = vpop.permute.xlu0 %1075
      %1077 = vrot.lane.b32.xlu0 %v338, 28
      %v1078 = vpop.permute.xlu0 %1077
      %1079 = vrot.lane.b32.xlu0 %v340, 28
      %v1080 = vpop.permute.xlu0 %1079
      %1081 = vrot.lane.b32.xlu0 %v343, 28
      %v1082 = vpop.permute.xlu0 %1081
      %1083 = vrot.lane.b32.xlu0 %v345, 28
      %v1084 = vpop.permute.xlu0 %1083
      %1085 = vrot.lane.b32.xlu0 %v348, 28
      %v1086 = vpop.permute.xlu0 %1085
      %1087 = vrot.lane.b32.xlu0 %v350, 28
      %v1088 = vpop.permute.xlu0 %1087
      %1089 = vrot.lane.b32.xlu0 %v353, 28
      %v1090 = vpop.permute.xlu0 %1089
      %1091 = vrot.lane.b32.xlu0 %v355, 28
      %v1092 = vpop.permute.xlu0 %1091
      %1093 = vrot.lane.b32.xlu0 %v358, 28
      %v1094 = vpop.permute.xlu0 %1093
      %1095 = vrot.lane.b32.xlu0 %v360, 28
      %v1096 = vpop.permute.xlu0 %1095
      %1097 = vrot.lane.b32.xlu0 %v363, 28
      %v1098 = vpop.permute.xlu0 %1097
      %1099 = vrot.lane.b32.xlu0 %v365, 28
      %v1100 = vpop.permute.xlu0 %1099
      %1101 = vrot.lane.b32.xlu0 %v368, 28
      %v1102 = vpop.permute.xlu0 %1101
      %1103 = vrot.lane.b32.xlu0 %v370, 28
      %v1104 = vpop.permute.xlu0 %1103
      %1105 = vrot.lane.b32.xlu0 %v745, 28
      %v1106 = vpop.permute.xlu0 %1105
      %1107 = vrot.lane.b32.xlu0 %v747, 28
      %v1108 = vpop.permute.xlu0 %1107
      %1109 = vrot.lane.b32.xlu0 %v1046, 28
      %v1110 = vpop.permute.xlu0 %1109
      %1111 = vrot.lane.b32.xlu0 %v1048, 28
      %v1112 = vpop.permute.xlu0 %1111
      %v1145 = vrot.slane %v239, 2
      %v1146 = vrot.slane %v240, 2
      %v1147 = vsel %vm467, %v1145, %v1146
      %v1148 = vrot.slane %v241, 2
      %v1149 = vsel %vm467, %v1146, %v1148
      %1150 = vrot.lane.b32.xlu0 %v480, 32
      %v1151 = vpop.permute.xlu0 %1150
      %1152 = vrot.lane.b32.xlu0 %v482, 32
      %v1153 = vpop.permute.xlu0 %1152
      %1154 = vrot.lane.b32.xlu0 %v485, 32
      %v1155 = vpop.permute.xlu0 %1154
      %1156 = vrot.lane.b32.xlu0 %v487, 32
      %v1157 = vpop.permute.xlu0 %1156
      %1158 = vrot.lane.b32.xlu0 %v490, 32
      %v1159 = vpop.permute.xlu0 %1158
      %1160 = vrot.lane.b32.xlu0 %v492, 32
      %v1161 = vpop.permute.xlu0 %1160
      %1162 = vrot.lane.b32.xlu0 %v495, 32
      %v1163 = vpop.permute.xlu0 %1162
      %1164 = vrot.lane.b32.xlu0 %v497, 32
      %v1165 = vpop.permute.xlu0 %1164
      %1166 = vrot.lane.b32.xlu0 %v500, 32
      %v1167 = vpop.permute.xlu0 %1166
      %1168 = vrot.lane.b32.xlu0 %v502, 32
      %v1169 = vpop.permute.xlu0 %1168
      %1170 = vrot.lane.b32.xlu0 %v505, 32
      %v1171 = vpop.permute.xlu0 %1170
      %1172 = vrot.lane.b32.xlu0 %v507, 32
      %v1173 = vpop.permute.xlu0 %1172
      %1174 = vrot.lane.b32.xlu0 %v510, 32
      %v1175 = vpop.permute.xlu0 %1174
      %1176 = vrot.lane.b32.xlu0 %v512, 32
      %v1177 = vpop.permute.xlu0 %1176
      %1178 = vrot.lane.b32.xlu0 %v515, 32
      %v1179 = vpop.permute.xlu0 %1178
      %1180 = vrot.lane.b32.xlu0 %v517, 32
      %v1181 = vpop.permute.xlu0 %1180
      %1182 = vrot.lane.b32.xlu0 %v520, 32
      %v1183 = vpop.permute.xlu0 %1182
      %1184 = vrot.lane.b32.xlu0 %v522, 32
      %v1185 = vpop.permute.xlu0 %1184
      %1186 = vrot.lane.b32.xlu0 %v525, 32
      %v1187 = vpop.permute.xlu0 %1186
      %1188 = vrot.lane.b32.xlu0 %v527, 32
      %v1189 = vpop.permute.xlu0 %1188
      %1190 = vrot.lane.b32.xlu0 %v530, 32
      %v1191 = vpop.permute.xlu0 %1190
      %1192 = vrot.lane.b32.xlu0 %v532, 32
      %v1193 = vpop.permute.xlu0 %1192
      %1194 = vrot.lane.b32.xlu0 %v535, 32
      %v1195 = vpop.permute.xlu0 %1194
      %1196 = vrot.lane.b32.xlu0 %v537, 32
      %v1197 = vpop.permute.xlu0 %1196
      %1198 = vrot.lane.b32.xlu0 %v540, 32
      %v1199 = vpop.permute.xlu0 %1198
      %1200 = vrot.lane.b32.xlu0 %v542, 32
      %v1201 = vpop.permute.xlu0 %1200
      %1202 = vrot.lane.b32.xlu0 %v545, 32
      %v1203 = vpop.permute.xlu0 %1202
      %1204 = vrot.lane.b32.xlu0 %v547, 32
      %v1205 = vpop.permute.xlu0 %1204
      %1206 = vrot.lane.b32.xlu0 %v846, 32
      %v1207 = vpop.permute.xlu0 %1206
      %1208 = vrot.lane.b32.xlu0 %v848, 32
      %v1209 = vpop.permute.xlu0 %1208
      %1210 = vrot.lane.b32.xlu0 %v1147, 32
      %v1211 = vpop.permute.xlu0 %1210
      %1212 = vrot.lane.b32.xlu0 %v1149, 32
      %v1213 = vpop.permute.xlu0 %1212
      %vm1246 = vcmask 31744
      %v1247 = vsel %vm1246, %v188, %v372
      %v1248 = vsel %vm1246, %v189, %v374
      %v1249 = vsel %vm1246, %v191, %v376
      %v1250 = vsel %vm1246, %v192, %v378
      %v1251 = vsel %vm1246, %v194, %v380
      %v1252 = vsel %vm1246, %v195, %v382
      %v1253 = vsel %vm1246, %v197, %v384
      %v1254 = vsel %vm1246, %v198, %v386
      %v1255 = vsel %vm1246, %v200, %v388
      %v1256 = vsel %vm1246, %v201, %v390
      %v1257 = vsel %vm1246, %v203, %v392
      %v1258 = vsel %vm1246, %v204, %v394
      %v1259 = vsel %vm1246, %v206, %v396
      %v1260 = vsel %vm1246, %v207, %v398
      %v1261 = vsel %vm1246, %v209, %v400
      %v1262 = vsel %vm1246, %v210, %v402
      %v1263 = vsel %vm1246, %v212, %v404
      %v1264 = vsel %vm1246, %v213, %v406
      %v1265 = vsel %vm1246, %v215, %v408
      %v1266 = vsel %vm1246, %v216, %v410
      %v1267 = vsel %vm1246, %v218, %v412
      %v1268 = vsel %vm1246, %v219, %v414
      %v1269 = vsel %vm1246, %v221, %v416
      %v1270 = vsel %vm1246, %v222, %v418
      %v1271 = vsel %vm1246, %v224, %v420
      %v1272 = vsel %vm1246, %v225, %v422
      %v1273 = vsel %vm1246, %v227, %v424
      %v1274 = vsel %vm1246, %v228, %v426
      %v1275 = vsel %vm1246, %v230, %v428
      %v1276 = vsel %vm1246, %v231, %v430
      %v1277 = vsel %vm1246, %v233, %v432
      %v1278 = vsel %vm1246, %v234, %v434
      %vm1279 = vcmask 64512
      %v1280 = vsel %vm1279, %v1247, %v549
      %v1281 = vsel %vm1279, %v1248, %v551
      %v1282 = vsel %vm1279, %v1249, %v553
      %v1283 = vsel %vm1279, %v1250, %v555
      %v1284 = vsel %vm1279, %v1251, %v557
      %v1285 = vsel %vm1279, %v1252, %v559
      %v1286 = vsel %vm1279, %v1253, %v561
      %v1287 = vsel %vm1279, %v1254, %v563
      %v1288 = vsel %vm1279, %v1255, %v565
      %v1289 = vsel %vm1279, %v1256, %v567
      %v1290 = vsel %vm1279, %v1257, %v569
      %v1291 = vsel %vm1279, %v1258, %v571
      %v1292 = vsel %vm1279, %v1259, %v573
      %v1293 = vsel %vm1279, %v1260, %v575
      %v1294 = vsel %vm1279, %v1261, %v577
      %v1295 = vsel %vm1279, %v1262, %v579
      %v1296 = vsel %vm1279, %v1263, %v581
      %v1297 = vsel %vm1279, %v1264, %v583
      %v1298 = vsel %vm1279, %v1265, %v585
      %v1299 = vsel %vm1279, %v1266, %v587
      %v1300 = vsel %vm1279, %v1267, %v589
      %v1301 = vsel %vm1279, %v1268, %v591
      %v1302 = vsel %vm1279, %v1269, %v593
      %v1303 = vsel %vm1279, %v1270, %v595
      %v1304 = vsel %vm1279, %v1271, %v597
      %v1305 = vsel %vm1279, %v1272, %v599
      %v1306 = vsel %vm1279, %v1273, %v601
      %v1307 = vsel %vm1279, %v1274, %v603
      %v1308 = vsel %vm1279, %v1275, %v605
      %v1309 = vsel %vm1279, %v1276, %v607
      %v1310 = vsel %vm1279, %v1277, %v609
      %v1311 = vsel %vm1279, %v1278, %v611
      %vm1312 = vcmask 97280
      %v1313 = vsel %vm1312, %v1280, %v647
      %v1314 = vsel %vm1312, %v1281, %v649
      %v1315 = vsel %vm1312, %v1282, %v651
      %v1316 = vsel %vm1312, %v1283, %v653
      %v1317 = vsel %vm1312, %v1284, %v655
      %v1318 = vsel %vm1312, %v1285, %v657
      %v1319 = vsel %vm1312, %v1286, %v659
      %v1320 = vsel %vm1312, %v1287, %v661
      %v1321 = vsel %vm1312, %v1288, %v663
      %v1322 = vsel %vm1312, %v1289, %v665
      %v1323 = vsel %vm1312, %v1290, %v667
      %v1324 = vsel %vm1312, %v1291, %v669
      %v1325 = vsel %vm1312, %v1292, %v671
      %v1326 = vsel %vm1312, %v1293, %v673
      %v1327 = vsel %vm1312, %v1294, %v675
      %v1328 = vsel %vm1312, %v1295, %v677
      %v1329 = vsel %vm1312, %v1296, %v679
      %v1330 = vsel %vm1312, %v1297, %v681
      %v1331 = vsel %vm1312, %v1298, %v683
      %v1332 = vsel %vm1312, %v1299, %v685
      %v1333 = vsel %vm1312, %v1300, %v687
      %v1334 = vsel %vm1312, %v1301, %v689
      %v1335 = vsel %vm1312, %v1302, %v691
      %v1336 = vsel %vm1312, %v1303, %v693
      %v1337 = vsel %vm1312, %v1304, %v695
      %v1338 = vsel %vm1312, %v1305, %v697
      %v1339 = vsel %vm1312, %v1306, %v699
      %v1340 = vsel %vm1312, %v1307, %v701
      %v1341 = vsel %vm1312, %v1308, %v703
      %v1342 = vsel %vm1312, %v1309, %v705
      %v1343 = vsel %vm1312, %v1310, %v707
      %v1344 = vsel %vm1312, %v1311, %v709
      %vm1345 = vcmask 130048
      %v1346 = vsel %vm1345, %v1313, %v749
      %v1347 = vsel %vm1345, %v1314, %v751
      %v1348 = vsel %vm1345, %v1315, %v753
      %v1349 = vsel %vm1345, %v1316, %v755
      %v1350 = vsel %vm1345, %v1317, %v757
      %v1351 = vsel %vm1345, %v1318, %v759
      %v1352 = vsel %vm1345, %v1319, %v761
      %v1353 = vsel %vm1345, %v1320, %v763
      %v1354 = vsel %vm1345, %v1321, %v765
      %v1355 = vsel %vm1345, %v1322, %v767
      %v1356 = vsel %vm1345, %v1323, %v769
      %v1357 = vsel %vm1345, %v1324, %v771
      %v1358 = vsel %vm1345, %v1325, %v773
      %v1359 = vsel %vm1345, %v1326, %v775
      %v1360 = vsel %vm1345, %v1327, %v777
      %v1361 = vsel %vm1345, %v1328, %v779
      %v1362 = vsel %vm1345, %v1329, %v781
      %v1363 = vsel %vm1345, %v1330, %v783
      %v1364 = vsel %vm1345, %v1331, %v785
      %v1365 = vsel %vm1345, %v1332, %v787
      %v1366 = vsel %vm1345, %v1333, %v789
      %v1367 = vsel %vm1345, %v1334, %v791
      %v1368 = vsel %vm1345, %v1335, %v793
      %v1369 = vsel %vm1345, %v1336, %v795
      %v1370 = vsel %vm1345, %v1337, %v797
      %v1371 = vsel %vm1345, %v1338, %v799
      %v1372 = vsel %vm1345, %v1339, %v801
      %v1373 = vsel %vm1345, %v1340, %v803
      %v1374 = vsel %vm1345, %v1341, %v805
      %v1375 = vsel %vm1345, %v1342, %v807
      %v1376 = vsel %vm1345, %v1343, %v809
      %v1377 = vsel %vm1345, %v1344, %v811
      %vm1378 = vcmask 162816
      %v1379 = vsel %vm1378, %v1346, %v850
      %v1380 = vsel %vm1378, %v1347, %v852
      %v1381 = vsel %vm1378, %v1348, %v854
      %v1382 = vsel %vm1378, %v1349, %v856
      %v1383 = vsel %vm1378, %v1350, %v858
      %v1384 = vsel %vm1378, %v1351, %v860
      %v1385 = vsel %vm1378, %v1352, %v862
      %v1386 = vsel %vm1378, %v1353, %v864
      %v1387 = vsel %vm1378, %v1354, %v866
      %v1388 = vsel %vm1378, %v1355, %v868
      %v1389 = vsel %vm1378, %v1356, %v870
      %v1390 = vsel %vm1378, %v1357, %v872
      %v1391 = vsel %vm1378, %v1358, %v874
      %v1392 = vsel %vm1378, %v1359, %v876
      %v1393 = vsel %vm1378, %v1360, %v878
      %v1394 = vsel %vm1378, %v1361, %v880
      %v1395 = vsel %vm1378, %v1362, %v882
      %v1396 = vsel %vm1378, %v1363, %v884
      %v1397 = vsel %vm1378, %v1364, %v886
      %v1398 = vsel %vm1378, %v1365, %v888
      %v1399 = vsel %vm1378, %v1366, %v890
      %v1400 = vsel %vm1378, %v1367, %v892
      %v1401 = vsel %vm1378, %v1368, %v894
      %v1402 = vsel %vm1378, %v1369, %v896
      %v1403 = vsel %vm1378, %v1370, %v898
      %v1404 = vsel %vm1378, %v1371, %v900
      %v1405 = vsel %vm1378, %v1372, %v902
      %v1406 = vsel %vm1378, %v1373, %v904
      %v1407 = vsel %vm1378, %v1374, %v906
      %v1408 = vsel %vm1378, %v1375, %v908
      %v1409 = vsel %vm1378, %v1376, %v910
      %v1410 = vsel %vm1378, %v1377, %v912
      %vm1411 = vcmask 195584
      %v1412 = vsel %vm1411, %v1379, %v948
      %v1413 = vsel %vm1411, %v1380, %v950
      %v1414 = vsel %vm1411, %v1381, %v952
      %v1415 = vsel %vm1411, %v1382, %v954
      %v1416 = vsel %vm1411, %v1383, %v956
      %v1417 = vsel %vm1411, %v1384, %v958
      %v1418 = vsel %vm1411, %v1385, %v960
      %v1419 = vsel %vm1411, %v1386, %v962
      %v1420 = vsel %vm1411, %v1387, %v964
      %v1421 = vsel %vm1411, %v1388, %v966
      %v1422 = vsel %vm1411, %v1389, %v968
      %v1423 = vsel %vm1411, %v1390, %v970
      %v1424 = vsel %vm1411, %v1391, %v972
      %v1425 = vsel %vm1411, %v1392, %v974
      %v1426 = vsel %vm1411, %v1393, %v976
      %v1427 = vsel %vm1411, %v1394, %v978
      %v1428 = vsel %vm1411, %v1395, %v980
      %v1429 = vsel %vm1411, %v1396, %v982
      %v1430 = vsel %vm1411, %v1397, %v984
      %v1431 = vsel %vm1411, %v1398, %v986
      %v1432 = vsel %vm1411, %v1399, %v988
      %v1433 = vsel %vm1411, %v1400, %v990
      %v1434 = vsel %vm1411, %v1401, %v992
      %v1435 = vsel %vm1411, %v1402, %v994
      %v1436 = vsel %vm1411, %v1403, %v996
      %v1437 = vsel %vm1411, %v1404, %v998
      %v1438 = vsel %vm1411, %v1405, %v1000
      %v1439 = vsel %vm1411, %v1406, %v1002
      %v1440 = vsel %vm1411, %v1407, %v1004
      %v1441 = vsel %vm1411, %v1408, %v1006
      %v1442 = vsel %vm1411, %v1409, %v1008
      %v1443 = vsel %vm1411, %v1410, %v1010
      %vm1444 = vcmask 228352
      %v1445 = vsel %vm1444, %v1412, %v1050
      %v1446 = vsel %vm1444, %v1413, %v1052
      %v1447 = vsel %vm1444, %v1414, %v1054
      %v1448 = vsel %vm1444, %v1415, %v1056
      %v1449 = vsel %vm1444, %v1416, %v1058
      %v1450 = vsel %vm1444, %v1417, %v1060
      %v1451 = vsel %vm1444, %v1418, %v1062
      %v1452 = vsel %vm1444, %v1419, %v1064
      %v1453 = vsel %vm1444, %v1420, %v1066
      %v1454 = vsel %vm1444, %v1421, %v1068
      %v1455 = vsel %vm1444, %v1422, %v1070
      %v1456 = vsel %vm1444, %v1423, %v1072
      %v1457 = vsel %vm1444, %v1424, %v1074
      %v1458 = vsel %vm1444, %v1425, %v1076
      %v1459 = vsel %vm1444, %v1426, %v1078
      %v1460 = vsel %vm1444, %v1427, %v1080
      %v1461 = vsel %vm1444, %v1428, %v1082
      %v1462 = vsel %vm1444, %v1429, %v1084
      %v1463 = vsel %vm1444, %v1430, %v1086
      %v1464 = vsel %vm1444, %v1431, %v1088
      %v1465 = vsel %vm1444, %v1432, %v1090
      %v1466 = vsel %vm1444, %v1433, %v1092
      %v1467 = vsel %vm1444, %v1434, %v1094
      %v1468 = vsel %vm1444, %v1435, %v1096
      %v1469 = vsel %vm1444, %v1436, %v1098
      %v1470 = vsel %vm1444, %v1437, %v1100
      %v1471 = vsel %vm1444, %v1438, %v1102
      %v1472 = vsel %vm1444, %v1439, %v1104
      %v1473 = vsel %vm1444, %v1440, %v1106
      %v1474 = vsel %vm1444, %v1441, %v1108
      %v1475 = vsel %vm1444, %v1442, %v1110
      %v1476 = vsel %vm1444, %v1443, %v1112
      %vm1477 = vcmask 261120
      %v1478 = vsel %vm1477, %v1445, %v1151
      %v1479 = vsel %vm1477, %v1446, %v1153
      %v1480 = vsel %vm1477, %v1447, %v1155
      %v1481 = vsel %vm1477, %v1448, %v1157
      %v1482 = vsel %vm1477, %v1449, %v1159
      %v1483 = vsel %vm1477, %v1450, %v1161
      %v1484 = vsel %vm1477, %v1451, %v1163
      %v1485 = vsel %vm1477, %v1452, %v1165
      %v1486 = vsel %vm1477, %v1453, %v1167
      %v1487 = vsel %vm1477, %v1454, %v1169
      %v1488 = vsel %vm1477, %v1455, %v1171
      %v1489 = vsel %vm1477, %v1456, %v1173
      %v1490 = vsel %vm1477, %v1457, %v1175
      %v1491 = vsel %vm1477, %v1458, %v1177
      %v1492 = vsel %vm1477, %v1459, %v1179
      %v1493 = vsel %vm1477, %v1460, %v1181
      %v1494 = vsel %vm1477, %v1461, %v1183
      %v1495 = vsel %vm1477, %v1462, %v1185
      %v1496 = vsel %vm1477, %v1463, %v1187
      %v1497 = vsel %vm1477, %v1464, %v1189
      %v1498 = vsel %vm1477, %v1465, %v1191
      %v1499 = vsel %vm1477, %v1466, %v1193
      %v1500 = vsel %vm1477, %v1467, %v1195
      %v1501 = vsel %vm1477, %v1468, %v1197
      %v1502 = vsel %vm1477, %v1469, %v1199
      %v1503 = vsel %vm1477, %v1470, %v1201
      %v1504 = vsel %vm1477, %v1471, %v1203
      %v1505 = vsel %vm1477, %v1472, %v1205
      %v1506 = vsel %vm1477, %v1473, %v1207
      %v1507 = vsel %vm1477, %v1474, %v1209
      %v1508 = vsel %vm1477, %v1475, %v1211
      %v1509 = vsel %vm1477, %v1476, %v1213
      %vm1510 = vcmask 293888
      %v1511 = vsel %vm1510, %v1478, 0.0
      %v1512 = vsel %vm1510, %v1479, 0.0
      %v1513 = vsel %vm1510, %v1480, 0.0
      %v1514 = vsel %vm1510, %v1481, 0.0
      %v1515 = vsel %vm1510, %v1482, 0.0
      %v1516 = vsel %vm1510, %v1483, 0.0
      %v1517 = vsel %vm1510, %v1484, 0.0
      %v1518 = vsel %vm1510, %v1485, 0.0
      %v1519 = vsel %vm1510, %v1486, 0.0
      %v1520 = vsel %vm1510, %v1487, 0.0
      %v1521 = vsel %vm1510, %v1488, 0.0
      %v1522 = vsel %vm1510, %v1489, 0.0
      %v1523 = vsel %vm1510, %v1490, 0.0
      %v1524 = vsel %vm1510, %v1491, 0.0
      %v1525 = vsel %vm1510, %v1492, 0.0
      %v1526 = vsel %vm1510, %v1493, 0.0
      %v1527 = vsel %vm1510, %v1494, 0.0
      %v1528 = vsel %vm1510, %v1495, 0.0
      %v1529 = vsel %vm1510, %v1496, 0.0
      %v1530 = vsel %vm1510, %v1497, 0.0
      %v1531 = vsel %vm1510, %v1498, 0.0
      %v1532 = vsel %vm1510, %v1499, 0.0
      %v1533 = vsel %vm1510, %v1500, 0.0
      %v1534 = vsel %vm1510, %v1501, 0.0
      %v1535 = vsel %vm1510, %v1502, 0.0
      %v1536 = vsel %vm1510, %v1503, 0.0
      %v1537 = vsel %vm1510, %v1504, 0.0
      %v1538 = vsel %vm1510, %v1505, 0.0
      %v1539 = vsel %vm1510, %v1506, 0.0
      %v1540 = vsel %vm1510, %v1507, 0.0
      %v1541 = vsel %vm1510, %v1508, 0.0
      %v1542 = vsel %vm1510, %v1509, 0.0
      %v1544 = vlaneseq
      %v1545 = vshrl.u32 %v1544, 7
      %v1546 = vsub.s32 0, %v1545
      %v1547 = vrot.slane %v187, %v1546
      %1549 = vmatprep.subr.mxu0 0.0
      %1550 = vmatpush1.msra.mxu0 %v171
      %1551 = vmatprep.subr.mxu0 0.0
      %1552 = vmatpush1.msra.mxu0 %v172
      %1553 = vmatprep.subr.mxu0 0.0
      %1554 = vmatpush1.msra.mxu0 %v173
      %1555 = vmatprep.subr.mxu0 0.0
      %1556 = vmatpush1.msra.mxu0 %v174
      %1557 = vmatprep.subr.mxu0 0.0
      %1558 = vmatpush1.msra.mxu0 %v175
      %1559 = vmatprep.subr.mxu0 0.0
      %1560 = vmatpush1.msra.mxu0 %v176
      %1561 = vmatprep.subr.mxu0 0.0
      %1562 = vmatpush1.msra.mxu0 %v177
      %1563 = vmatprep.subr.mxu0 0.0
      %1564 = vmatpush1.msra.mxu0 %v178
      %1565 = vmatprep.subr.mxu0 0.0
      %1566 = vmatpush1.msra.mxu0 %v179
      %1567 = vmatprep.subr.mxu0 0.0
      %1568 = vmatpush1.msra.mxu0 %v180
      %1569 = vmatprep.subr.mxu0 0.0
      %1570 = vmatpush1.msra.mxu0 %v181
      %1571 = vmatprep.subr.mxu0 0.0
      %1572 = vmatpush1.msra.mxu0 %v182
      %1573 = vmatprep.subr.mxu0 0.0
      %1574 = vmatpush1.msra.mxu0 %v183
      %1575 = vmatprep.subr.mxu0 0.0
      %1576 = vmatpush1.msra.mxu0 %v184
      %1577 = vmatprep.subr.mxu0 0.0
      %1578 = vmatpush1.msra.mxu0 %v185
      %1579 = vmatprep.subr.mxu0 0.0
      %1580 = vmatpush1.msra.mxu0 %v186
      %1581 = vmatprep.subr.mxu0 0.0
      %1582 = vmatpush1.msra.mxu0 0.0
      %1583 = vmatprep.subr.mxu0 0.0
      %1584 = vmatpush1.msra.mxu0 0.0
      %1585 = vmatprep.subr.mxu0 0.0
      %1586 = vmatpush1.msra.mxu0 0.0
      %1587 = vmatprep.subr.mxu0 0.0
      %1588 = vmatpush1.msra.mxu0 0.0
      %1589 = vmatprep.subr.mxu0 0.0
      %1590 = vmatpush1.msra.mxu0 0.0
      %1591 = vmatprep.subr.mxu0 0.0
      %1592 = vmatpush1.msra.mxu0 0.0
      %1593 = vmatprep.subr.mxu0 0.0
      %1594 = vmatpush1.msra.mxu0 0.0
      %1595 = vmatprep.subr.mxu0 0.0
      %1596 = vmatpush1.msra.mxu0 0.0
      %1597 = vmatprep.subr.mxu0 0.0
      %1598 = vmatpush1.msra.mxu0 0.0
      %1599 = vmatprep.subr.mxu0 0.0
      %1600 = vmatpush1.msra.mxu0 0.0
      %1601 = vmatprep.subr.mxu0 0.0
      %1602 = vmatpush1.msra.mxu0 0.0
      %1603 = vmatprep.subr.mxu0 0.0
      %1604 = vmatpush1.msra.mxu0 0.0
      %1605 = vmatprep.subr.mxu0 0.0
      %1606 = vmatpush1.msra.mxu0 0.0
      %1607 = vmatprep.subr.mxu0 0.0
      %1608 = vmatpush1.msra.mxu0 0.0
      %1609 = vmatprep.subr.mxu0 0.0
      %1610 = vmatpush1.msra.mxu0 0.0
      %1611 = vmatprep.subr.mxu0 0.0
      %1612 = vmatpush1.msra.mxu0 0.0
      %1613 = vmatprep.mubr.f32.mxu0 0.0
      %1614 = vmatmul.mubr.f32.gmra.mrb[0].mxu0 %v1511
      %v1615 = vpop.f32.mrb[0].mxu0
      %v1616 = vadd.f32 %v1547, %v1615
      %v1617 = vpop.f32.mrb[0].mxu0
      %1618 = vmatprep.mubr.f32.mxu0 0.0
      %1619 = vmatmul.mubr.f32.gmra.mrb[0].mxu0 %v1512
      %v1620 = vpop.f32.mrb[0].mxu0
      %v1621 = vadd.f32 %v1547, %v1620
      %v1622 = vpop.f32.mrb[0].mxu0
      %1623 = vmatprep.mubr.f32.mxu0 0.0
      %1624 = vmatmul.mubr.f32.gmra.mrb[0].mxu0 %v1513
      %v1625 = vpop.f32.mrb[0].mxu0
      %v1626 = vadd.f32 %v1547, %v1625
      %v1627 = vpop.f32.mrb[0].mxu0
      %1628 = vmatprep.mubr.f32.mxu0 0.0
      %1629 = vmatmul.mubr.f32.gmra.mrb[0].mxu0 %v1514
      %v1630 = vpop.f32.mrb[0].mxu0
      %v1631 = vadd.f32 %v1547, %v1630
      %v1632 = vpop.f32.mrb[0].mxu0
      %1633 = vmatprep.mubr.f32.mxu0 0.0
      %1634 = vmatmul.mubr.f32.gmra.mrb[0].mxu0 %v1515
      %v1635 = vpop.f32.mrb[0].mxu0
      %v1636 = vadd.f32 %v1547, %v1635
      %v1637 = vpop.f32.mrb[0].mxu0
      %1638 = vmatprep.mubr.f32.mxu0 0.0
      %1639 = vmatmul.mubr.f32.gmra.mrb[0].mxu0 %v1516
      %v1640 = vpop.f32.mrb[0].mxu0
      %v1641 = vadd.f32 %v1547, %v1640
      %v1642 = vpop.f32.mrb[0].mxu0
      %1643 = vmatprep.mubr.f32.mxu0 0.0
      %1644 = vmatmul.mubr.f32.gmra.mrb[0].mxu0 %v1517
      %v1645 = vpop.f32.mrb[0].mxu0
      %v1646 = vadd.f32 %v1547, %v1645
      %v1647 = vpop.f32.mrb[0].mxu0
      %1648 = vmatprep.mubr.f32.mxu0 0.0
      %1649 = vmatmul.mubr.f32.gmra.mrb[0].mxu0 %v1518
      %v1650 = vpop.f32.mrb[0].mxu0
      %v1651 = vadd.f32 %v1547, %v1650
      %v1652 = vpop.f32.mrb[0].mxu0
      %1653 = vmatprep.mubr.f32.mxu0 0.0
      %1654 = vmatmul.mubr.f32.gmra.mrb[0].mxu0 %v1519
      %v1655 = vpop.f32.mrb[0].mxu0
      %v1656 = vadd.f32 %v1547, %v1655
      %v1657 = vpop.f32.mrb[0].mxu0
      %1658 = vmatprep.mubr.f32.mxu0 0.0
      %1659 = vmatmul.mubr.f32.gmra.mrb[0].mxu0 %v1520
      %v1660 = vpop.f32.mrb[0].mxu0
      %v1661 = vadd.f32 %v1547, %v1660
      %v1662 = vpop.f32.mrb[0].mxu0
      %1663 = vmatprep.mubr.f32.mxu0 0.0
      %1664 = vmatmul.mubr.f32.gmra.mrb[0].mxu0 %v1521
      %v1665 = vpop.f32.mrb[0].mxu0
      %v1666 = vadd.f32 %v1547, %v1665
      %v1667 = vpop.f32.mrb[0].mxu0
      %1668 = vmatprep.mubr.f32.mxu0 0.0
      %1669 = vmatmul.mubr.f32.gmra.mrb[0].mxu0 %v1522
      %v1670 = vpop.f32.mrb[0].mxu0
      %v1671 = vadd.f32 %v1547, %v1670
      %v1672 = vpop.f32.mrb[0].mxu0
      %1673 = vmatprep.mubr.f32.mxu0 0.0
      %1674 = vmatmul.mubr.f32.gmra.mrb[0].mxu0 %v1523
      %v1675 = vpop.f32.mrb[0].mxu0
      %v1676 = vadd.f32 %v1547, %v1675
      %v1677 = vpop.f32.mrb[0].mxu0
      %1678 = vmatprep.mubr.f32.mxu0 0.0
      %1679 = vmatmul.mubr.f32.gmra.mrb[0].mxu0 %v1524
      %v1680 = vpop.f32.mrb[0].mxu0
      %v1681 = vadd.f32 %v1547, %v1680
      %v1682 = vpop.f32.mrb[0].mxu0
      %1683 = vmatprep.mubr.f32.mxu0 0.0
      %1684 = vmatmul.mubr.f32.gmra.mrb[0].mxu0 %v1525
      %v1685 = vpop.f32.mrb[0].mxu0
      %v1686 = vadd.f32 %v1547, %v1685
      %v1687 = vpop.f32.mrb[0].mxu0
      %1688 = vmatprep.mubr.f32.mxu0 0.0
      %1689 = vmatmul.mubr.f32.gmra.mrb[0].mxu0 %v1526
      %v1690 = vpop.f32.mrb[0].mxu0
      %v1691 = vadd.f32 %v1547, %v1690
      %v1692 = vpop.f32.mrb[0].mxu0
      %1693 = vmatprep.mubr.f32.mxu0 0.0
      %1694 = vmatmul.mubr.f32.gmra.mrb[0].mxu0 %v1527
      %v1695 = vpop.f32.mrb[0].mxu0
      %v1696 = vadd.f32 %v1547, %v1695
      %v1697 = vpop.f32.mrb[0].mxu0
      %1698 = vmatprep.mubr.f32.mxu0 0.0
      %1699 = vmatmul.mubr.f32.gmra.mrb[0].mxu0 %v1528
      %v1700 = vpop.f32.mrb[0].mxu0
      %v1701 = vadd.f32 %v1547, %v1700
      %v1702 = vpop.f32.mrb[0].mxu0
      %1703 = vmatprep.mubr.f32.mxu0 0.0
      %1704 = vmatmul.mubr.f32.gmra.mrb[0].mxu0 %v1529
      %v1705 = vpop.f32.mrb[0].mxu0
      %v1706 = vadd.f32 %v1547, %v1705
      %v1707 = vpop.f32.mrb[0].mxu0
      %1708 = vmatprep.mubr.f32.mxu0 0.0
      %1709 = vmatmul.mubr.f32.gmra.mrb[0].mxu0 %v1530
      %v1710 = vpop.f32.mrb[0].mxu0
      %v1711 = vadd.f32 %v1547, %v1710
      %v1712 = vpop.f32.mrb[0].mxu0
      %1713 = vmatprep.mubr.f32.mxu0 0.0
      %1714 = vmatmul.mubr.f32.gmra.mrb[0].mxu0 %v1531
      %v1715 = vpop.f32.mrb[0].mxu0
      %v1716 = vadd.f32 %v1547, %v1715
      %v1717 = vpop.f32.mrb[0].mxu0
      %1718 = vmatprep.mubr.f32.mxu0 0.0
      %1719 = vmatmul.mubr.f32.gmra.mrb[0].mxu0 %v1532
      %v1720 = vpop.f32.mrb[0].mxu0
      %v1721 = vadd.f32 %v1547, %v1720
      %v1722 = vpop.f32.mrb[0].mxu0
      %1723 = vmatprep.mubr.f32.mxu0 0.0
      %1724 = vmatmul.mubr.f32.gmra.mrb[0].mxu0 %v1533
      %v1725 = vpop.f32.mrb[0].mxu0
      %v1726 = vadd.f32 %v1547, %v1725
      %v1727 = vpop.f32.mrb[0].mxu0
      %1728 = vmatprep.mubr.f32.mxu0 0.0
      %1729 = vmatmul.mubr.f32.gmra.mrb[0].mxu0 %v1534
      %v1730 = vpop.f32.mrb[0].mxu0
      %v1731 = vadd.f32 %v1547, %v1730
      %v1732 = vpop.f32.mrb[0].mxu0
      %1733 = vmatprep.mubr.f32.mxu0 0.0
      %1734 = vmatmul.mubr.f32.gmra.mrb[0].mxu0 %v1535
      %v1735 = vpop.f32.mrb[0].mxu0
      %v1736 = vadd.f32 %v1547, %v1735
      %v1737 = vpop.f32.mrb[0].mxu0
      %1738 = vmatprep.mubr.f32.mxu0 0.0
      %1739 = vmatmul.mubr.f32.gmra.mrb[0].mxu0 %v1536
      %v1740 = vpop.f32.mrb[0].mxu0
      %v1741 = vadd.f32 %v1547, %v1740
      %v1742 = vpop.f32.mrb[0].mxu0
      %1743 = vmatprep.mubr.f32.mxu0 0.0
      %1744 = vmatmul.mubr.f32.gmra.mrb[0].mxu0 %v1537
      %v1745 = vpop.f32.mrb[0].mxu0
      %v1746 = vadd.f32 %v1547, %v1745
      %v1747 = vpop.f32.mrb[0].mxu0
      %1748 = vmatprep.mubr.f32.mxu0 0.0
      %1749 = vmatmul.mubr.f32.gmra.mrb[0].mxu0 %v1538
      %v1750 = vpop.f32.mrb[0].mxu0
      %v1751 = vadd.f32 %v1547, %v1750
      %v1752 = vpop.f32.mrb[0].mxu0
      %1753 = vmatprep.mubr.f32.mxu0 0.0
      %1754 = vmatmul.mubr.f32.gmra.mrb[0].mxu0 %v1539
      %v1755 = vpop.f32.mrb[0].mxu0
      %v1756 = vadd.f32 %v1547, %v1755
      %v1757 = vpop.f32.mrb[0].mxu0
      %1758 = vmatprep.mubr.f32.mxu0 0.0
      %1759 = vmatmul.mubr.f32.gmra.mrb[0].mxu0 %v1540
      %v1760 = vpop.f32.mrb[0].mxu0
      %v1761 = vadd.f32 %v1547, %v1760
      %v1762 = vpop.f32.mrb[0].mxu0
      %1763 = vmatprep.mubr.f32.mxu0 0.0
      %1764 = vmatmul.mubr.f32.gmra.mrb[0].mxu0 %v1541
      %v1765 = vpop.f32.mrb[0].mxu0
      %v1766 = vadd.f32 %v1547, %v1765
      %v1767 = vpop.f32.mrb[0].mxu0
      %1768 = vmatprep.mubr.f32.mxu0 0.0
      %1769 = vmatmul.mubr.f32.gmra.mrb[0].mxu0 %v1542
      %v1770 = vpop.f32.mrb[0].mxu0
      %v1771 = vadd.f32 %v1547, %v1770
      %v1772 = vpop.f32.mrb[0].mxu0
      %1773 = vdwg.mxu0
      %v1774 = vmax.f32 %v1616, 0.0
      %v1775 = vmax.f32 %v1621, 0.0
      %v1776 = vmax.f32 %v1626, 0.0
      %v1777 = vmax.f32 %v1631, 0.0
      %v1778 = vmax.f32 %v1636, 0.0
      %v1779 = vmax.f32 %v1641, 0.0
      %v1780 = vmax.f32 %v1646, 0.0
      %v1781 = vmax.f32 %v1651, 0.0
      %v1782 = vmax.f32 %v1656, 0.0
      %v1783 = vmax.f32 %v1661, 0.0
      %v1784 = vmax.f32 %v1666, 0.0
      %v1785 = vmax.f32 %v1671, 0.0
      %v1786 = vmax.f32 %v1676, 0.0
      %v1787 = vmax.f32 %v1681, 0.0
      %v1788 = vmax.f32 %v1686, 0.0
      %v1789 = vmax.f32 %v1691, 0.0
      %v1790 = vmax.f32 %v1696, 0.0
      %v1791 = vmax.f32 %v1701, 0.0
      %v1792 = vmax.f32 %v1706, 0.0
      %v1793 = vmax.f32 %v1711, 0.0
      %v1794 = vmax.f32 %v1716, 0.0
      %v1795 = vmax.f32 %v1721, 0.0
      %v1796 = vmax.f32 %v1726, 0.0
      %v1797 = vmax.f32 %v1731, 0.0
      %v1798 = vmax.f32 %v1736, 0.0
      %v1799 = vmax.f32 %v1741, 0.0
      %v1800 = vmax.f32 %v1746, 0.0
      %v1801 = vmax.f32 %v1751, 0.0
      %v1802 = vmax.f32 %v1756, 0.0
      %v1803 = vmax.f32 %v1761, 0.0
      %v1804 = vmax.f32 %v1766, 0.0
      %v1805 = vmax.f32 %v1771, 0.0
      %1806 = vst [vmem:[%s170] sm:$0xff] %v1774
      %1807 = vst [vmem:[%s170 + $0x8] sm:$0xff] %v1775
      %1808 = vst [vmem:[%s170 + $0x10] sm:$0xff] %v1776
      %1809 = vst [vmem:[%s170 + $0x18] sm:$0xff] %v1777
      %1810 = vst [vmem:[%s170 + $0x20] sm:$0xff] %v1778
      %1811 = vst [vmem:[%s170 + $0x28] sm:$0xff] %v1779
      %1812 = vst [vmem:[%s170 + $0x30] sm:$0xff] %v1780
      %1813 = vst [vmem:[%s170 + $0x38] sm:$0xff] %v1781
      %1814 = vst [vmem:[%s170 + $0x40] sm:$0xff] %v1782
      %1815 = vst [vmem:[%s170 + $0x48] sm:$0xff] %v1783
      %1816 = vst [vmem:[%s170 + $0x50] sm:$0xff] %v1784
      %1817 = vst [vmem:[%s170 + $0x58] sm:$0xff] %v1785
      %1818 = vst [vmem:[%s170 + $0x60] sm:$0xff] %v1786
      %1819 = vst [vmem:[%s170 + $0x68] sm:$0xff] %v1787
      %1820 = vst [vmem:[%s170 + $0x70] sm:$0xff] %v1788
      %1821 = vst [vmem:[%s170 + $0x78] sm:$0xff] %v1789
      %1822 = vst [vmem:[%s170 + $0x80] sm:$0xff] %v1790
      %1823 = vst [vmem:[%s170 + $0x88] sm:$0xff] %v1791
      %1824 = vst [vmem:[%s170 + $0x90] sm:$0xff] %v1792
      %1825 = vst [vmem:[%s170 + $0x98] sm:$0xff] %v1793
      %1826 = vst [vmem:[%s170 + $0xa0] sm:$0xff] %v1794
      %1827 = vst [vmem:[%s170 + $0xa8] sm:$0xff] %v1795
      %1828 = vst [vmem:[%s170 + $0xb0] sm:$0xff] %v1796
      %1829 = vst [vmem:[%s170 + $0xb8] sm:$0xff] %v1797
      %1830 = vst [vmem:[%s170 + $0xc0] sm:$0xff] %v1798
      %1831 = vst [vmem:[%s170 + $0xc8] sm:$0xff] %v1799
      %1832 = vst [vmem:[%s170 + $0xd0] sm:$0xff] %v1800
      %1833 = vst [vmem:[%s170 + $0xd8] sm:$0xff] %v1801
      %1834 = vst [vmem:[%s170 + $0xe0] sm:$0xff] %v1802
      %1835 = vst [vmem:[%s170 + $0xe8] sm:$0xff] %v1803
      %1836 = vst [vmem:[%s170 + $0xf0] sm:$0xff] %v1804
      %1837 = vst [vmem:[%s170 + $0xf8] sm:$0xff] %v1805
      %p1838 = scmp.lt.s32.totalorder %s14, 1
      %s1839 = scalar_select %p1838, %s14, 1
      %s1840 = smul.addr %s1839, 32
      %s1841 = smul.addr %s1840, 8
      %s1842 = scalar_lea.vmem %s3, %s1841
      // Predicated region
      $region33: #{conv_layer_forward.1} parent=31 // pred_check
        %p1843 = pneg %p100
      $region34: #{conv_layer_forward.1} parent=31 // pred_check_branch
        %1845 = sbr.rel (%p1843) target = $region36
      $region35: #{conv_layer_forward.1} parent=31 // pred_region
        _
      $region36: #{conv_layer_forward.1} parent=31 // pred_fallthru
        _
    $region32: #{conv_layer_forward.1} parent=5 // pred_fallthru
      _
    %p1846 = scmp.le.s32.totalorder 2, %s9
    // Predicated region
    $region37: #{conv_layer_forward.1} parent=5 // pred_check
      %p1847 = pneg %p1846
    $region38: #{conv_layer_forward.1} parent=5 // pred_check_branch
      %1849 = sbr.rel (%p1847) target = $region40
    $region39: #{conv_layer_forward.1} parent=5 // pred_region
      %s1850 = ssub.s32 %s9, 2
      // Predicated region
      $region41: #{conv_layer_forward.1} parent=39 // pred_check
        %p1851 = pneg %p106
      $region42: #{conv_layer_forward.1} parent=39 // pred_check_branch
        %1853 = sbr.rel (%p1851) target = $region44
      $region43: #{conv_layer_forward.1} parent=39 // pred_region
        %p1854 = scmp.lt.s32.totalorder %s15, 1
        %s1855 = scalar_select %p1854, %s15, 1
        %s1856 = smul.addr %s1855, 32
        %s1857 = smul.addr %s1856, 8
        %s1858 = scalar_lea.vmem %s3, %s1857
      $region44: #{conv_layer_forward.1} parent=39 // pred_fallthru
        _
    $region40: #{conv_layer_forward.1} parent=5 // pred_fallthru
      _
  $region6: #{conv_layer_forward.1} parent=0 // loop_footer
    %s13 = sadd.s32 1, %s9
  $region7: #{conv_layer_forward.1} parent=0 // loop_footer_branch
    %8 = sbr.rel target = $region3
  $region8: #{conv_layer_forward.1} parent=0 // loop_exit
    _

// kernel: conv_layer_forward.1
$region0: #{conv_layer_forward.1}
  #allocation0 [shape = 'u32[]', space=smem, size = 0x4, offset = 0x4, fixed_abs, tag = 'smem constant byte address 0x4 - core index']
  #allocation1 [shape = 'u32[144,128]{1,0:T(1,128)}', space=vmem, size = 0x12000, scoped, tag = 'internal scratch']
  %s0 = inlined_call_operand.vmem [shape: f32[2,18,18,4], index: 0, kind: input, shape index: {}]
  %s1 = inlined_call_operand.vmem [shape: f32[128,128], index: 1, kind: input, shape index: {}]
  %s2 = inlined_call_operand.vmem [shape: f32[1,128], index: 2, kind: input, shape index: {}]
  %s3 = inlined_call_operand.vmem [shape: f32[2,256,128], index: 3, kind: output, shape index: {}]
  %s4 = sld [smem:[#allocation0]]
  $region45: #{conv_layer_forward.1} parent=0
    _
  %s6 = ssub.s32 1, %s4
  %s7 = scalar_select 0, %s6, %s4
  loop: start=0, step=1, limit=4
  $region2: #{conv_layer_forward.1} parent=0 // loop_pre_header
    _
  $region3: #{conv_layer_forward.1} parent=0 // loop_header
    %s9 = sphi 0, %s13
    %p10 = scmp.ge.s32.totalorder %s9, 4
    %s19 = sphi 0, %s21
    %s22 = sphi 0, %s19
    %s23 = sphi 0, %s22
    %s39 = sphi 0, %s23
    %s43 = sphi 0, %s43
    %s45 = sphi 0, %s43
    %s46 = sphi 0, %s45
    %s60 = sphi 0, %s46
    %s64 = sphi 0, %s64
    %s66 = sphi 0, %s64
    %s67 = sphi 0, %s66
    %s81 = sphi 0, %s67
    %s87 = sphi 0, %s89
    %s90 = sphi 0, %s87
    %s91 = sphi 0, %s90
    %s107 = sphi 0, %s91
  $region4: #{conv_layer_forward.1} parent=0 // loop_header_branch
    %12 = sbr.rel (%p10) target = $region8
  $region5: #{conv_layer_forward.1} parent=0 // loop_body
    %s14 = ssub.s32 %s9, 1
    %s15 = ssub.s32 %s9, 2
    %s16 = sadd.s32 %s9, 1
    %s17 = ssub.s32 %s9, %s16
    %p18 = scmp.eq.s32.totalorder %s17, 0
    %s20 = sadd.s32 %s19, 1
    %s21 = scalar_select %p18, %s19, %s20
    %p24 = pneg %p18
    %p25 = scmp.eq.s32.totalorder %s9, 1
    %p26 = por %p24, %p25
    %p27 = scmp.ne.s32.totalorder %s19, %s22
    %p28 = scmp.eq.s32.totalorder %s9, 0
    %p29 = por %p27, %p28
    %p30 = scmp.ne.s32.totalorder %s19, %s22
    %p31 = scmp.eq.s32.totalorder %s14, 1
    %p32 = por %p30, %p31
    %p33 = scmp.ne.s32.totalorder %s22, %s23
    %p34 = scmp.eq.s32.totalorder %s14, 0
    %p35 = por %p33, %p34
    %p36 = scmp.ne.s32.totalorder %s22, %s23
    %p37 = scmp.eq.s32.totalorder %s15, 1
    %p38 = por %p36, %p37
    %p40 = scmp.ne.s32.totalorder %s23, %s39
    %p41 = scmp.eq.s32.totalorder %s15, 0
    %p42 = por %p40, %p41
    %s44 = sadd.s32 %s43, 1
    %p47 = scmp.eq.s32.totalorder %s9, 1
    %p48 = scmp.ne.s32.totalorder %s43, %s45
    %p49 = scmp.eq.s32.totalorder %s9, 0
    %p50 = por %p48, %p49
    %p51 = scmp.ne.s32.totalorder %s43, %s45
    %p52 = scmp.eq.s32.totalorder %s14, 1
    %p53 = por %p51, %p52
    %p54 = scmp.ne.s32.totalorder %s45, %s46
    %p55 = scmp.eq.s32.totalorder %s14, 0
    %p56 = por %p54, %p55
    %p57 = scmp.ne.s32.totalorder %s45, %s46
    %p58 = scmp.eq.s32.totalorder %s15, 1
    %p59 = por %p57, %p58
    %p61 = scmp.ne.s32.totalorder %s46, %s60
    %p62 = scmp.eq.s32.totalorder %s15, 0
    %p63 = por %p61, %p62
    %s65 = sadd.s32 %s64, 1
    %p68 = scmp.eq.s32.totalorder %s9, 1
    %p69 = scmp.ne.s32.totalorder %s64, %s66
    %p70 = scmp.eq.s32.totalorder %s9, 0
    %p71 = por %p69, %p70
    %p72 = scmp.ne.s32.totalorder %s64, %s66
    %p73 = scmp.eq.s32.totalorder %s14, 1
    %p74 = por %p72, %p73
    %p75 = scmp.ne.s32.totalorder %s66, %s67
    %p76 = scmp.eq.s32.totalorder %s14, 0
    %p77 = por %p75, %p76
    %p78 = scmp.ne.s32.totalorder %s66, %s67
    %p79 = scmp.eq.s32.totalorder %s15, 1
    %p80 = por %p78, %p79
    %p82 = scmp.ne.s32.totalorder %s67, %s81
    %p83 = scmp.eq.s32.totalorder %s15, 0
    %p84 = por %p82, %p83
    %s85 = ssub.s32 %s9, %s16
    %p86 = scmp.eq.s32.totalorder %s85, 0
    %s88 = sadd.s32 %s87, 1
    %s89 = scalar_select %p86, %s87, %s88
    %p92 = pneg %p86
    %p93 = scmp.eq.s32.totalorder %s9, 1
    %p94 = por %p92, %p93
    %p95 = scmp.ne.s32.totalorder %s87, %s90
    %p96 = scmp.eq.s32.totalorder %s9, 0
    %p97 = por %p95, %p96
    %p98 = scmp.ne.s32.totalorder %s87, %s90
    %p99 = scmp.eq.s32.totalorder %s14, 1
    %p100 = por %p98, %p99
    %p101 = scmp.ne.s32.totalorder %s90, %s91
    %p102 = scmp.eq.s32.totalorder %s14, 0
    %p103 = por %p101, %p102
    %p104 = scmp.ne.s32.totalorder %s90, %s91
    %p105 = scmp.eq.s32.totalorder %s15, 1
    %p106 = por %p104, %p105
    %p108 = scmp.ne.s32.totalorder %s91, %s107
    %p109 = scmp.eq.s32.totalorder %s15, 0
    %p110 = por %p108, %p109
    %p111 = scmp.le.s32.totalorder 1, %s9
    %p112 = scmp.lt.s32.totalorder %s9, 3
    %p113 = pnand %p111, %p112
    %p114 = pneg %p113
    // Predicated region
    $region9: #{conv_layer_forward.1} parent=5 // pred_check
      _
    $region10: #{conv_layer_forward.1} parent=5 // pred_check_branch
      %116 = sbr.rel (%p113) target = $region12
    $region11: #{conv_layer_forward.1} parent=5 // pred_region
      %s117 = ssub.s32 %s9, 1
      // Predicated region
      $region13: #{conv_layer_forward.1} parent=11 // pred_check
        %p118 = pneg %p56
      $region14: #{conv_layer_forward.1} parent=11 // pred_check_branch
        %120 = sbr.rel (%p118) target = $region16
      $region15: #{conv_layer_forward.1} parent=11 // pred_region
        _
      $region16: #{conv_layer_forward.1} parent=11 // pred_fallthru
        _
      // Predicated region
      $region17: #{conv_layer_forward.1} parent=11 // pred_check
        %p121 = pneg %p77
      $region18: #{conv_layer_forward.1} parent=11 // pred_check_branch
        %123 = sbr.rel (%p121) target = $region20
      $region19: #{conv_layer_forward.1} parent=11 // pred_region
        _
      $region20: #{conv_layer_forward.1} parent=11 // pred_fallthru
        _
    $region12: #{conv_layer_forward.1} parent=5 // pred_fallthru
      _
    %p124 = scmp.lt.s32.totalorder %s9, 2
    // Predicated region
    $region21: #{conv_layer_forward.1} parent=5 // pred_check
      %p125 = pneg %p124
    $region22: #{conv_layer_forward.1} parent=5 // pred_check_branch
      %127 = sbr.rel (%p125) target = $region24
    $region23: #{conv_layer_forward.1} parent=5 // pred_region
      // Predicated region
      $region25: #{conv_layer_forward.1} parent=23 // pred_check
        %p128 = pneg %p29
      $region26: #{conv_layer_forward.1} parent=23 // pred_check_branch
        %130 = sbr.rel (%p128) target = $region28
      $region27: #{conv_layer_forward.1} parent=23 // pred_region
        %p131 = scmp.lt.s32.totalorder %s9, 1
        %s132 = scalar_select %p131, %s9, 1
        %s133 = smul.addr %s132, 54
        %s134 = smul.addr %s133, 8
        %s135 = scalar_lea.vmem %s0, %s134
      $region28: #{conv_layer_forward.1} parent=23 // pred_fallthru
        _
    $region24: #{conv_layer_forward.1} parent=5 // pred_fallthru
      _
    %p136 = scmp.le.s32.totalorder 1, %s9
    %p137 = scmp.lt.s32.totalorder %s9, 3
    %p138 = pnand %p136, %p137
    %p139 = pneg %p138
    // Predicated region
    $region29: #{conv_layer_forward.1} parent=5 // pred_check
      _
    $region30: #{conv_layer_forward.1} parent=5 // pred_check_branch
      %141 = sbr.rel (%p138) target = $region32
    $region31: #{conv_layer_forward.1} parent=5 // pred_region
      %s142 = ssub.s32 %s9, 1
      %p143 = scmp.lt.s32.totalorder %s14, 1
      %s144 = scalar_select %p143, %s14, 1
      %s145 = smul.addr %s144, 54
      %s146 = smul.addr %s145, 8
      %s147 = scalar_lea.vmem %s0, %s146
      %p148 = pneg %p35
      %p149 = pneg %p32
      %p150 = pneg %p56
      %p151 = pneg %p53
      %p152 = pneg %p77
      %p153 = pneg %p74
      %p154 = pneg %p103
      %p155 = pneg %p100
      %p156 = scmp.lt.s32.totalorder %s14, 1
      %s157 = scalar_select %p156, %s14, 1
      %s158 = smul.addr %s157, 32
      %s159 = smul.addr %s158, 8
      %s160 = scalar_lea.vmem %s3, %s159
      %p161 = scmp.lt.s32.totalorder %s14, 1
      %s162 = scalar_select %p161, %s14, 1
      %s163 = smul.addr %s162, 54
      %s164 = smul.addr %s163, 8
      %s165 = scalar_lea.vmem %s0, %s164
      %p166 = scmp.lt.s32.totalorder %s14, 1
      %s167 = scalar_select %p166, %s14, 1
      %s168 = smul.addr %s167, 32
      %s169 = smul.addr %s168, 8
      %s170 = scalar_lea.vmem %s3, %s169
      %v171 = vld [vmem:[%s1] sm:$0xff]
      %v172 = vld [vmem:[%s1 + $0x8] sm:$0xff]
      %v173 = vld [vmem:[%s1 + $0x10] sm:$0xff]
      %v174 = vld [vmem:[%s1 + $0x18] sm:$0xff]
      %v175 = vld [vmem:[%s1 + $0x20] sm:$0xff]
      %v176 = vld [vmem:[%s2] sm:$0x1]
      %v177 = vld [vmem:[%s165] sm:$0xff]
      %v178 = vld [vmem:[%s165 + $0x8] sm:$0xff]
      %v179 = vld [vmem:[%s165 + $0x10] sm:$0x3]
      %v180 = vld [vmem:[%s165 + $0x18] sm:$0xff]
      %v181 = vld [vmem:[%s165 + $0x20] sm:$0xff]
      %v182 = vld [vmem:[%s165 + $0x28] sm:$0x3]
      %v183 = vld [vmem:[%s165 + $0x30] sm:$0xff]
      %v184 = vld [vmem:[%s165 + $0x38] sm:$0xff]
      %v185 = vld [vmem:[%s165 + $0x40] sm:$0x3]
      %v186 = vld [vmem:[%s165 + $0x48] sm:$0xff]
      %v187 = vld [vmem:[%s165 + $0x50] sm:$0xff]
      %v188 = vld [vmem:[%s165 + $0x58] sm:$0x3]
      %v189 = vld [vmem:[%s165 + $0x60] sm:$0xff]
      %v190 = vld [vmem:[%s165 + $0x68] sm:$0xff]
      %v191 = vld [vmem:[%s165 + $0x70] sm:$0x3]
      %v192 = vld [vmem:[%s165 + $0x78] sm:$0xff]
      %v193 = vld [vmem:[%s165 + $0x80] sm:$0xff]
      %v194 = vld [vmem:[%s165 + $0x88] sm:$0x3]
      %v195 = vld [vmem:[%s165 + $0x90] sm:$0xff]
      %v196 = vld [vmem:[%s165 + $0x98] sm:$0xff]
      %v197 = vld [vmem:[%s165 + $0xa0] sm:$0x3]
      %v198 = vld [vmem:[%s165 + $0xa8] sm:$0xff]
      %v199 = vld [vmem:[%s165 + $0xb0] sm:$0xff]
      %v200 = vld [vmem:[%s165 + $0xb8] sm:$0x3]
      %v201 = vld [vmem:[%s165 + $0xc0] sm:$0xff]
      %v202 = vld [vmem:[%s165 + $0xc8] sm:$0xff]
      %v203 = vld [vmem:[%s165 + $0xd0] sm:$0x3]
      %v204 = vld [vmem:[%s165 + $0xd8] sm:$0xff]
      %v205 = vld [vmem:[%s165 + $0xe0] sm:$0xff]
      %v206 = vld [vmem:[%s165 + $0xe8] sm:$0x3]
      %v207 = vld [vmem:[%s165 + $0xf0] sm:$0xff]
      %v208 = vld [vmem:[%s165 + $0xf8] sm:$0xff]
      %v209 = vld [vmem:[%s165 + $0x100] sm:$0x3]
      %v210 = vld [vmem:[%s165 + $0x108] sm:$0xff]
      %v211 = vld [vmem:[%s165 + $0x110] sm:$0xff]
      %v212 = vld [vmem:[%s165 + $0x118] sm:$0x3]
      %v213 = vld [vmem:[%s165 + $0x120] sm:$0xff]
      %v214 = vld [vmem:[%s165 + $0x128] sm:$0xff]
      %v215 = vld [vmem:[%s165 + $0x130] sm:$0x3]
      %v216 = vld [vmem:[%s165 + $0x138] sm:$0xff]
      %v217 = vld [vmem:[%s165 + $0x140] sm:$0xff]
      %v218 = vld [vmem:[%s165 + $0x148] sm:$0x3]
      %v219 = vld [vmem:[%s165 + $0x150] sm:$0xff]
      %v220 = vld [vmem:[%s165 + $0x158] sm:$0xff]
      %v221 = vld [vmem:[%s165 + $0x160] sm:$0x3]
      %v222 = vld [vmem:[%s165 + $0x168] sm:$0xff]
      %v223 = vld [vmem:[%s165 + $0x170] sm:$0xff]
      %v224 = vld [vmem:[%s165 + $0x178] sm:$0x3]
      %v225 = vld [vmem:[%s165 + $0x180] sm:$0xff]
      %v226 = vld [vmem:[%s165 + $0x188] sm:$0xff]
      %v227 = vld [vmem:[%s165 + $0x190] sm:$0x3]
      %v228 = vld [vmem:[%s165 + $0x198] sm:$0xff]
      %v229 = vld [vmem:[%s165 + $0x1a0] sm:$0xff]
      %v230 = vld [vmem:[%s165 + $0x1a8] sm:$0x3]
      %vm279 = vcmask 1046528
      %v280 = vrot.slane %v177, 1
      %v281 = vrot.slane %v178, 1
      %v282 = vsel %vm279, %v280, %v281
      %v283 = vrot.slane %v179, 1
      %v284 = vsel %vm279, %v281, %v283
      %v285 = vrot.slane %v180, 1
      %v286 = vrot.slane %v181, 1
      %v287 = vsel %vm279, %v285, %v286
      %v288 = vrot.slane %v182, 1
      %v289 = vsel %vm279, %v286, %v288
      %v290 = vrot.slane %v183, 1
      %v291 = vrot.slane %v184, 1
      %v292 = vsel %vm279, %v290, %v291
      %v293 = vrot.slane %v185, 1
      %v294 = vsel %vm279, %v291, %v293
      %v295 = vrot.slane %v186, 1
      %v296 = vrot.slane %v187, 1
      %v297 = vsel %vm279, %v295, %v296
      %v298 = vrot.slane %v188, 1
      %v299 = vsel %vm279, %v296, %v298
      %v300 = vrot.slane %v189, 1
      %v301 = vrot.slane %v190, 1
      %v302 = vsel %vm279, %v300, %v301
      %v303 = vrot.slane %v191, 1
      %v304 = vsel %vm279, %v301, %v303
      %v305 = vrot.slane %v192, 1
      %v306 = vrot.slane %v193, 1
      %v307 = vsel %vm279, %v305, %v306
      %v308 = vrot.slane %v194, 1
      %v309 = vsel %vm279, %v306, %v308
      %v310 = vrot.slane %v195, 1
      %v311 = vrot.slane %v196, 1
      %v312 = vsel %vm279, %v310, %v311
      %v313 = vrot.slane %v197, 1
      %v314 = vsel %vm279, %v311, %v313
      %v315 = vrot.slane %v198, 1
      %v316 = vrot.slane %v199, 1
      %v317 = vsel %vm279, %v315, %v316
      %v318 = vrot.slane %v200, 1
      %v319 = vsel %vm279, %v316, %v318
      %v320 = vrot.slane %v201, 1
      %v321 = vrot.slane %v202, 1
      %v322 = vsel %vm279, %v320, %v321
      %v323 = vrot.slane %v203, 1
      %v324 = vsel %vm279, %v321, %v323
      %v325 = vrot.slane %v204, 1
      %v326 = vrot.slane %v205, 1
      %v327 = vsel %vm279, %v325, %v326
      %v328 = vrot.slane %v206, 1
      %v329 = vsel %vm279, %v326, %v328
      %v330 = vrot.slane %v207, 1
      %v331 = vrot.slane %v208, 1
      %v332 = vsel %vm279, %v330, %v331
      %v333 = vrot.slane %v209, 1
      %v334 = vsel %vm279, %v331, %v333
      %v335 = vrot.slane %v210, 1
      %v336 = vrot.slane %v211, 1
      %v337 = vsel %vm279, %v335, %v336
      %v338 = vrot.slane %v212, 1
      %v339 = vsel %vm279, %v336, %v338
      %v340 = vrot.slane %v213, 1
      %v341 = vrot.slane %v214, 1
      %v342 = vsel %vm279, %v340, %v341
      %v343 = vrot.slane %v215, 1
      %v344 = vsel %vm279, %v341, %v343
      %v345 = vrot.slane %v216, 1
      %v346 = vrot.slane %v217, 1
      %v347 = vsel %vm279, %v345, %v346
      %v348 = vrot.slane %v218, 1
      %v349 = vsel %vm279, %v346, %v348
      %v350 = vrot.slane %v219, 1
      %v351 = vrot.slane %v220, 1
      %v352 = vsel %vm279, %v350, %v351
      %v353 = vrot.slane %v221, 1
      %v354 = vsel %vm279, %v351, %v353
      %v355 = vrot.slane %v222, 1
      %v356 = vrot.slane %v223, 1
      %v357 = vsel %vm279, %v355, %v356
      %v358 = vrot.slane %v224, 1
      %v359 = vsel %vm279, %v356, %v358
      %v361 = vrot.slane %v171, 4
      %vm362 = vcmask 31744
      %v363 = vsel %vm362, %v282, 0
      %v365 = vsel %vm362, %v284, 0
      %v367 = vsel %vm362, %v287, 0
      %v369 = vsel %vm362, %v289, 0
      %v371 = vsel %vm362, %v292, 0
      %v373 = vsel %vm362, %v294, 0
      %v375 = vsel %vm362, %v297, 0
      %v377 = vsel %vm362, %v299, 0
      %v379 = vsel %vm362, %v302, 0
      %v381 = vsel %vm362, %v304, 0
      %v383 = vsel %vm362, %v307, 0
      %v385 = vsel %vm362, %v309, 0
      %v387 = vsel %vm362, %v312, 0
      %v389 = vsel %vm362, %v314, 0
      %v391 = vsel %vm362, %v317, 0
      %v393 = vsel %vm362, %v319, 0
      %v395 = vsel %vm362, %v322, 0
      %v397 = vsel %vm362, %v324, 0
      %v399 = vsel %vm362, %v327, 0
      %v401 = vsel %vm362, %v329, 0
      %v403 = vsel %vm362, %v332, 0
      %v405 = vsel %vm362, %v334, 0
      %v407 = vsel %vm362, %v337, 0
      %v409 = vsel %vm362, %v339, 0
      %v411 = vsel %vm362, %v342, 0
      %v413 = vsel %vm362, %v344, 0
      %v415 = vsel %vm362, %v347, 0
      %v417 = vsel %vm362, %v349, 0
      %v419 = vsel %vm362, %v352, 0
      %v421 = vsel %vm362, %v354, 0
      %v423 = vsel %vm362, %v357, 0
      %v425 = vsel %vm362, %v359, 0
      %vm427 = vcmask 1043456
      %v428 = vsel %vm427, %v361, 0
      %430 = vmatprep.subr.mxu0 0.0
      %431 = vmatpush1.msra.mxu0 %v428
      %432 = vmatprep.subr.mxu0 0.0
      %433 = vmatpush1.msra.mxu0 0.0
      %434 = vmatprep.subr.mxu0 0.0
      %435 = vmatpush1.msra.mxu0 0.0
      %436 = vmatprep.subr.mxu0 0.0
      %437 = vmatpush1.msra.mxu0 0.0
      %438 = vmatprep.subr.mxu0 0.0
      %439 = vmatpush1.msra.mxu0 0.0
      %440 = vmatprep.subr.mxu0 0.0
      %441 = vmatpush1.msra.mxu0 0.0
      %442 = vmatprep.subr.mxu0 0.0
      %443 = vmatpush1.msra.mxu0 0.0
      %444 = vmatprep.subr.mxu0 0.0
      %445 = vmatpush1.msra.mxu0 0.0
      %446 = vmatprep.subr.mxu0 0.0
      %447 = vmatpush1.msra.mxu0 0.0
      %448 = vmatprep.subr.mxu0 0.0
      %449 = vmatpush1.msra.mxu0 0.0
      %450 = vmatprep.subr.mxu0 0.0
      %451 = vmatpush1.msra.mxu0 0.0
      %452 = vmatprep.subr.mxu0 0.0
      %453 = vmatpush1.msra.mxu0 0.0
      %454 = vmatprep.subr.mxu0 0.0
      %455 = vmatpush1.msra.mxu0 0.0
      %456 = vmatprep.subr.mxu0 0.0
      %457 = vmatpush1.msra.mxu0 0.0
      %458 = vmatprep.subr.mxu0 0.0
      %459 = vmatpush1.msra.mxu0 0.0
      %460 = vmatprep.subr.mxu0 0.0
      %461 = vmatpush1.msra.mxu0 0.0
      %462 = vmatprep.subr.mxu0 0.0
      %463 = vmatpush1.msra.mxu0 0.0
      %464 = vmatprep.subr.mxu0 0.0
      %465 = vmatpush1.msra.mxu0 0.0
      %466 = vmatprep.subr.mxu0 0.0
      %467 = vmatpush1.msra.mxu0 0.0
      %468 = vmatprep.subr.mxu0 0.0
      %469 = vmatpush1.msra.mxu0 0.0
      %470 = vmatprep.subr.mxu0 0.0
      %471 = vmatpush1.msra.mxu0 0.0
      %472 = vmatprep.subr.mxu0 0.0
      %473 = vmatpush1.msra.mxu0 0.0
      %474 = vmatprep.subr.mxu0 0.0
      %475 = vmatpush1.msra.mxu0 0.0
      %476 = vmatprep.subr.mxu0 0.0
      %477 = vmatpush1.msra.mxu0 0.0
      %478 = vmatprep.subr.mxu0 0.0
      %479 = vmatpush1.msra.mxu0 0.0
      %480 = vmatprep.subr.mxu0 0.0
      %481 = vmatpush1.msra.mxu0 0.0
      %482 = vmatprep.subr.mxu0 0.0
      %483 = vmatpush1.msra.mxu0 0.0
      %484 = vmatprep.subr.mxu0 0.0
      %485 = vmatpush1.msra.mxu0 0.0
      %486 = vmatprep.subr.mxu0 0.0
      %487 = vmatpush1.msra.mxu0 0.0
      %488 = vmatprep.subr.mxu0 0.0
      %489 = vmatpush1.msra.mxu0 0.0
      %490 = vmatprep.subr.mxu0 0.0
      %491 = vmatpush1.msra.mxu0 0.0
      %492 = vmatprep.subr.mxu0 0.0
      %493 = vmatpush1.msra.mxu0 0.0
      %494 = vmatprep.mubr.f32.mxu0 0.0
      %495 = vmatmul.mubr.f32.gmra.mrb[0].mxu0 %v363
      %v496 = vpop.f32.mrb[0].mxu0
      %v497 = vadd.f32 0.0, %v496
      %v498 = vpop.f32.mrb[0].mxu0
      %499 = vmatprep.mubr.f32.mxu0 0.0
      %500 = vmatmul.mubr.f32.gmra.mrb[0].mxu0 %v365
      %v501 = vpop.f32.mrb[0].mxu0
      %v502 = vadd.f32 0.0, %v501
      %v503 = vpop.f32.mrb[0].mxu0
      %504 = vmatprep.mubr.f32.mxu0 0.0
      %505 = vmatmul.mubr.f32.gmra.mrb[0].mxu0 %v367
      %v506 = vpop.f32.mrb[0].mxu0
      %v507 = vadd.f32 0.0, %v506
      %v508 = vpop.f32.mrb[0].mxu0
      %509 = vmatprep.mubr.f32.mxu0 0.0
      %510 = vmatmul.mubr.f32.gmra.mrb[0].mxu0 %v369
      %v511 = vpop.f32.mrb[0].mxu0
      %v512 = vadd.f32 0.0, %v511
      %v513 = vpop.f32.mrb[0].mxu0
      %514 = vmatprep.mubr.f32.mxu0 0.0
      %515 = vmatmul.mubr.f32.gmra.mrb[0].mxu0 %v371
      %v516 = vpop.f32.mrb[0].mxu0
      %v517 = vadd.f32 0.0, %v516
      %v518 = vpop.f32.mrb[0].mxu0
      %519 = vmatprep.mubr.f32.mxu0 0.0
      %520 = vmatmul.mubr.f32.gmra.mrb[0].mxu0 %v373
      %v521 = vpop.f32.mrb[0].mxu0
      %v522 = vadd.f32 0.0, %v521
      %v523 = vpop.f32.mrb[0].mxu0
      %524 = vmatprep.mubr.f32.mxu0 0.0
      %525 = vmatmul.mubr.f32.gmra.mrb[0].mxu0 %v375
      %v526 = vpop.f32.mrb[0].mxu0
      %v527 = vadd.f32 0.0, %v526
      %v528 = vpop.f32.mrb[0].mxu0
      %529 = vmatprep.mubr.f32.mxu0 0.0
      %530 = vmatmul.mubr.f32.gmra.mrb[0].mxu0 %v377
      %v531 = vpop.f32.mrb[0].mxu0
      %v532 = vadd.f32 0.0, %v531
      %v533 = vpop.f32.mrb[0].mxu0
      %534 = vmatprep.mubr.f32.mxu0 0.0
      %535 = vmatmul.mubr.f32.gmra.mrb[0].mxu0 %v379
      %v536 = vpop.f32.mrb[0].mxu0
      %v537 = vadd.f32 0.0, %v536
      %v538 = vpop.f32.mrb[0].mxu0
      %539 = vmatprep.mubr.f32.mxu0 0.0
      %540 = vmatmul.mubr.f32.gmra.mrb[0].mxu0 %v381
      %v541 = vpop.f32.mrb[0].mxu0
      %v542 = vadd.f32 0.0, %v541
      %v543 = vpop.f32.mrb[0].mxu0
      %544 = vmatprep.mubr.f32.mxu0 0.0
      %545 = vmatmul.mubr.f32.gmra.mrb[0].mxu0 %v383
      %v546 = vpop.f32.mrb[0].mxu0
      %v547 = vadd.f32 0.0, %v546
      %v548 = vpop.f32.mrb[0].mxu0
      %549 = vmatprep.mubr.f32.mxu0 0.0
      %550 = vmatmul.mubr.f32.gmra.mrb[0].mxu0 %v385
      %v551 = vpop.f32.mrb[0].mxu0
      %v552 = vadd.f32 0.0, %v551
      %v553 = vpop.f32.mrb[0].mxu0
      %554 = vmatprep.mubr.f32.mxu0 0.0
      %555 = vmatmul.mubr.f32.gmra.mrb[0].mxu0 %v387
      %v556 = vpop.f32.mrb[0].mxu0
      %v557 = vadd.f32 0.0, %v556
      %v558 = vpop.f32.mrb[0].mxu0
      %559 = vmatprep.mubr.f32.mxu0 0.0
      %560 = vmatmul.mubr.f32.gmra.mrb[0].mxu0 %v389
      %v561 = vpop.f32.mrb[0].mxu0
      %v562 = vadd.f32 0.0, %v561
      %v563 = vpop.f32.mrb[0].mxu0
      %564 = vmatprep.mubr.f32.mxu0 0.0
      %565 = vmatmul.mubr.f32.gmra.mrb[0].mxu0 %v391
      %v566 = vpop.f32.mrb[0].mxu0
      %v567 = vadd.f32 0.0, %v566
      %v568 = vpop.f32.mrb[0].mxu0
      %569 = vmatprep.mubr.f32.mxu0 0.0
      %570 = vmatmul.mubr.f32.gmra.mrb[0].mxu0 %v393
      %v571 = vpop.f32.mrb[0].mxu0
      %v572 = vadd.f32 0.0, %v571
      %v573 = vpop.f32.mrb[0].mxu0
      %574 = vmatprep.mubr.f32.mxu0 0.0
      %575 = vmatmul.mubr.f32.gmra.mrb[0].mxu0 %v395
      %v576 = vpop.f32.mrb[0].mxu0
      %v577 = vadd.f32 0.0, %v576
      %v578 = vpop.f32.mrb[0].mxu0
      %579 = vmatprep.mubr.f32.mxu0 0.0
      %580 = vmatmul.mubr.f32.gmra.mrb[0].mxu0 %v397
      %v581 = vpop.f32.mrb[0].mxu0
      %v582 = vadd.f32 0.0, %v581
      %v583 = vpop.f32.mrb[0].mxu0
      %584 = vmatprep.mubr.f32.mxu0 0.0
      %585 = vmatmul.mubr.f32.gmra.mrb[0].mxu0 %v399
      %v586 = vpop.f32.mrb[0].mxu0
      %v587 = vadd.f32 0.0, %v586
      %v588 = vpop.f32.mrb[0].mxu0
      %589 = vmatprep.mubr.f32.mxu0 0.0
      %590 = vmatmul.mubr.f32.gmra.mrb[0].mxu0 %v401
      %v591 = vpop.f32.mrb[0].mxu0
      %v592 = vadd.f32 0.0, %v591
      %v593 = vpop.f32.mrb[0].mxu0
      %594 = vmatprep.mubr.f32.mxu0 0.0
      %595 = vmatmul.mubr.f32.gmra.mrb[0].mxu0 %v403
      %v596 = vpop.f32.mrb[0].mxu0
      %v597 = vadd.f32 0.0, %v596
      %v598 = vpop.f32.mrb[0].mxu0
      %599 = vmatprep.mubr.f32.mxu0 0.0
      %600 = vmatmul.mubr.f32.gmra.mrb[0].mxu0 %v405
      %v601 = vpop.f32.mrb[0].mxu0
      %v602 = vadd.f32 0.0, %v601
      %v603 = vpop.f32.mrb[0].mxu0
      %604 = vmatprep.mubr.f32.mxu0 0.0
      %605 = vmatmul.mubr.f32.gmra.mrb[0].mxu0 %v407
      %v606 = vpop.f32.mrb[0].mxu0
      %v607 = vadd.f32 0.0, %v606
      %v608 = vpop.f32.mrb[0].mxu0
      %609 = vmatprep.mubr.f32.mxu0 0.0
      %610 = vmatmul.mubr.f32.gmra.mrb[0].mxu0 %v409
      %v611 = vpop.f32.mrb[0].mxu0
      %v612 = vadd.f32 0.0, %v611
      %v613 = vpop.f32.mrb[0].mxu0
      %614 = vmatprep.mubr.f32.mxu0 0.0
      %615 = vmatmul.mubr.f32.gmra.mrb[0].mxu0 %v411
      %v616 = vpop.f32.mrb[0].mxu0
      %v617 = vadd.f32 0.0, %v616
      %v618 = vpop.f32.mrb[0].mxu0
      %619 = vmatprep.mubr.f32.mxu0 0.0
      %620 = vmatmul.mubr.f32.gmra.mrb[0].mxu0 %v413
      %v621 = vpop.f32.mrb[0].mxu0
      %v622 = vadd.f32 0.0, %v621
      %v623 = vpop.f32.mrb[0].mxu0
      %624 = vmatprep.mubr.f32.mxu0 0.0
      %625 = vmatmul.mubr.f32.gmra.mrb[0].mxu0 %v415
      %v626 = vpop.f32.mrb[0].mxu0
      %v627 = vadd.f32 0.0, %v626
      %v628 = vpop.f32.mrb[0].mxu0
      %629 = vmatprep.mubr.f32.mxu0 0.0
      %630 = vmatmul.mubr.f32.gmra.mrb[0].mxu0 %v417
      %v631 = vpop.f32.mrb[0].mxu0
      %v632 = vadd.f32 0.0, %v631
      %v633 = vpop.f32.mrb[0].mxu0
      %634 = vmatprep.mubr.f32.mxu0 0.0
      %635 = vmatmul.mubr.f32.gmra.mrb[0].mxu0 %v419
      %v636 = vpop.f32.mrb[0].mxu0
      %v637 = vadd.f32 0.0, %v636
      %v638 = vpop.f32.mrb[0].mxu0
      %639 = vmatprep.mubr.f32.mxu0 0.0
      %640 = vmatmul.mubr.f32.gmra.mrb[0].mxu0 %v421
      %v641 = vpop.f32.mrb[0].mxu0
      %v642 = vadd.f32 0.0, %v641
      %v643 = vpop.f32.mrb[0].mxu0
      %644 = vmatprep.mubr.f32.mxu0 0.0
      %645 = vmatmul.mubr.f32.gmra.mrb[0].mxu0 %v423
      %v646 = vpop.f32.mrb[0].mxu0
      %v647 = vadd.f32 0.0, %v646
      %v648 = vpop.f32.mrb[0].mxu0
      %649 = vmatprep.mubr.f32.mxu0 0.0
      %650 = vmatmul.mubr.f32.gmra.mrb[0].mxu0 %v425
      %v651 = vpop.f32.mrb[0].mxu0
      %v652 = vadd.f32 0.0, %v651
      %v653 = vpop.f32.mrb[0].mxu0
      %654 = vdwg.mxu0
      %v655 = vsel %vm362, %v177, 0
      %v657 = vsel %vm362, %v178, 0
      %v659 = vsel %vm362, %v180, 0
      %v661 = vsel %vm362, %v181, 0
      %v663 = vsel %vm362, %v183, 0
      %v665 = vsel %vm362, %v184, 0
      %v667 = vsel %vm362, %v186, 0
      %v669 = vsel %vm362, %v187, 0
      %v671 = vsel %vm362, %v189, 0
      %v673 = vsel %vm362, %v190, 0
      %v675 = vsel %vm362, %v192, 0
      %v677 = vsel %vm362, %v193, 0
      %v679 = vsel %vm362, %v195, 0
      %v681 = vsel %vm362, %v196, 0
      %v683 = vsel %vm362, %v198, 0
      %v685 = vsel %vm362, %v199, 0
      %v687 = vsel %vm362, %v201, 0
      %v689 = vsel %vm362, %v202, 0
      %v691 = vsel %vm362, %v204, 0
      %v693 = vsel %vm362, %v205, 0
      %v695 = vsel %vm362, %v207, 0
      %v697 = vsel %vm362, %v208, 0
      %v699 = vsel %vm362, %v210, 0
      %v701 = vsel %vm362, %v211, 0
      %v703 = vsel %vm362, %v213, 0
      %v705 = vsel %vm362, %v214, 0
      %v707 = vsel %vm362, %v216, 0
      %v709 = vsel %vm362, %v217, 0
      %v711 = vsel %vm362, %v219, 0
      %v713 = vsel %vm362, %v220, 0
      %v715 = vsel %vm362, %v222, 0
      %v717 = vsel %vm362, %v223, 0
      %v719 = vsel %vm427, %v171, 0
      %721 = vmatprep.subr.mxu0 0.0
      %722 = vmatpush1.msra.mxu0 %v719
      %723 = vmatprep.subr.mxu0 0.0
      %724 = vmatpush1.msra.mxu0 0.0
      %725 = vmatprep.subr.mxu0 0.0
      %726 = vmatpush1.msra.mxu0 0.0
      %727 = vmatprep.subr.mxu0 0.0
      %728 = vmatpush1.msra.mxu0 0.0
      %729 = vmatprep.subr.mxu0 0.0
      %730 = vmatpush1.msra.mxu0 0.0
      %731 = vmatprep.subr.mxu0 0.0
      %732 = vmatpush1.msra.mxu0 0.0
      %733 = vmatprep.subr.mxu0 0.0
      %734 = vmatpush1.msra.mxu0 0.0
      %735 = vmatprep.subr.mxu0 0.0
      %736 = vmatpush1.msra.mxu0 0.0
      %737 = vmatprep.subr.mxu0 0.0
      %738 = vmatpush1.msra.mxu0 0.0
      %739 = vmatprep.subr.mxu0 0.0
      %740 = vmatpush1.msra.mxu0 0.0
      %741 = vmatprep.subr.mxu0 0.0
      %742 = vmatpush1.msra.mxu0 0.0
      %743 = vmatprep.subr.mxu0 0.0
      %744 = vmatpush1.msra.mxu0 0.0
      %745 = vmatprep.subr.mxu0 0.0
      %746 = vmatpush1.msra.mxu0 0.0
      %747 = vmatprep.subr.mxu0 0.0
      %748 = vmatpush1.msra.mxu0 0.0
      %749 = vmatprep.subr.mxu0 0.0
      %750 = vmatpush1.msra.mxu0 0.0
      %751 = vmatprep.subr.mxu0 0.0
      %752 = vmatpush1.msra.mxu0 0.0
      %753 = vmatprep.subr.mxu0 0.0
      %754 = vmatpush1.msra.mxu0 0.0
      %755 = vmatprep.subr.mxu0 0.0
      %756 = vmatpush1.msra.mxu0 0.0
      %757 = vmatprep.subr.mxu0 0.0
      %758 = vmatpush1.msra.mxu0 0.0
      %759 = vmatprep.subr.mxu0 0.0
      %760 = vmatpush1.msra.mxu0 0.0
      %761 = vmatprep.subr.mxu0 0.0
      %762 = vmatpush1.msra.mxu0 0.0
      %763 = vmatprep.subr.mxu0 0.0
      %764 = vmatpush1.msra.mxu0 0.0
      %765 = vmatprep.subr.mxu0 0.0
      %766 = vmatpush1.msra.mxu0 0.0
      %767 = vmatprep.subr.mxu0 0.0
      %768 = vmatpush1.msra.mxu0 0.0
      %769 = vmatprep.subr.mxu0 0.0
      %770 = vmatpush1.msra.mxu0 0.0
      %771 = vmatprep.subr.mxu0 0.0
      %772 = vmatpush1.msra.mxu0 0.0
      %773 = vmatprep.subr.mxu0 0.0
      %774 = vmatpush1.msra.mxu0 0.0
      %775 = vmatprep.subr.mxu0 0.0
      %776 = vmatpush1.msra.mxu0 0.0
      %777 = vmatprep.subr.mxu0 0.0
      %778 = vmatpush1.msra.mxu0 0.0
      %779 = vmatprep.subr.mxu0 0.0
      %780 = vmatpush1.msra.mxu0 0.0
      %781 = vmatprep.subr.mxu0 0.0
      %782 = vmatpush1.msra.mxu0 0.0
      %783 = vmatprep.subr.mxu0 0.0
      %784 = vmatpush1.msra.mxu0 0.0
      %785 = vmatprep.mubr.f32.mxu0 0.0
      %786 = vmatmul.mubr.f32.gmra.mrb[0].mxu0 %v655
      %v787 = vpop.f32.mrb[0].mxu0
      %v788 = vadd.f32 %v497, %v787
      %v789 = vpop.f32.mrb[0].mxu0
      %790 = vmatprep.mubr.f32.mxu0 0.0
      %791 = vmatmul.mubr.f32.gmra.mrb[0].mxu0 %v657
      %v792 = vpop.f32.mrb[0].mxu0
      %v793 = vadd.f32 %v502, %v792
      %v794 = vpop.f32.mrb[0].mxu0
      %795 = vmatprep.mubr.f32.mxu0 0.0
      %796 = vmatmul.mubr.f32.gmra.mrb[0].mxu0 %v659
      %v797 = vpop.f32.mrb[0].mxu0
      %v798 = vadd.f32 %v507, %v797
      %v799 = vpop.f32.mrb[0].mxu0
      %800 = vmatprep.mubr.f32.mxu0 0.0
      %801 = vmatmul.mubr.f32.gmra.mrb[0].mxu0 %v661
      %v802 = vpop.f32.mrb[0].mxu0
      %v803 = vadd.f32 %v512, %v802
      %v804 = vpop.f32.mrb[0].mxu0
      %805 = vmatprep.mubr.f32.mxu0 0.0
      %806 = vmatmul.mubr.f32.gmra.mrb[0].mxu0 %v663
      %v807 = vpop.f32.mrb[0].mxu0
      %v808 = vadd.f32 %v517, %v807
      %v809 = vpop.f32.mrb[0].mxu0
      %810 = vmatprep.mubr.f32.mxu0 0.0
      %811 = vmatmul.mubr.f32.gmra.mrb[0].mxu0 %v665
      %v812 = vpop.f32.mrb[0].mxu0
      %v813 = vadd.f32 %v522, %v812
      %v814 = vpop.f32.mrb[0].mxu0
      %815 = vmatprep.mubr.f32.mxu0 0.0
      %816 = vmatmul.mubr.f32.gmra.mrb[0].mxu0 %v667
      %v817 = vpop.f32.mrb[0].mxu0
      %v818 = vadd.f32 %v527, %v817
      %v819 = vpop.f32.mrb[0].mxu0
      %820 = vmatprep.mubr.f32.mxu0 0.0
      %821 = vmatmul.mubr.f32.gmra.mrb[0].mxu0 %v669
      %v822 = vpop.f32.mrb[0].mxu0
      %v823 = vadd.f32 %v532, %v822
      %v824 = vpop.f32.mrb[0].mxu0
      %825 = vmatprep.mubr.f32.mxu0 0.0
      %826 = vmatmul.mubr.f32.gmra.mrb[0].mxu0 %v671
      %v827 = vpop.f32.mrb[0].mxu0
      %v828 = vadd.f32 %v537, %v827
      %v829 = vpop.f32.mrb[0].mxu0
      %830 = vmatprep.mubr.f32.mxu0 0.0
      %831 = vmatmul.mubr.f32.gmra.mrb[0].mxu0 %v673
      %v832 = vpop.f32.mrb[0].mxu0
      %v833 = vadd.f32 %v542, %v832
      %v834 = vpop.f32.mrb[0].mxu0
      %835 = vmatprep.mubr.f32.mxu0 0.0
      %836 = vmatmul.mubr.f32.gmra.mrb[0].mxu0 %v675
      %v837 = vpop.f32.mrb[0].mxu0
      %v838 = vadd.f32 %v547, %v837
      %v839 = vpop.f32.mrb[0].mxu0
      %840 = vmatprep.mubr.f32.mxu0 0.0
      %841 = vmatmul.mubr.f32.gmra.mrb[0].mxu0 %v677
      %v842 = vpop.f32.mrb[0].mxu0
      %v843 = vadd.f32 %v552, %v842
      %v844 = vpop.f32.mrb[0].mxu0
      %845 = vmatprep.mubr.f32.mxu0 0.0
      %846 = vmatmul.mubr.f32.gmra.mrb[0].mxu0 %v679
      %v847 = vpop.f32.mrb[0].mxu0
      %v848 = vadd.f32 %v557, %v847
      %v849 = vpop.f32.mrb[0].mxu0
      %850 = vmatprep.mubr.f32.mxu0 0.0
      %851 = vmatmul.mubr.f32.gmra.mrb[0].mxu0 %v681
      %v852 = vpop.f32.mrb[0].mxu0
      %v853 = vadd.f32 %v562, %v852
      %v854 = vpop.f32.mrb[0].mxu0
      %855 = vmatprep.mubr.f32.mxu0 0.0
      %856 = vmatmul.mubr.f32.gmra.mrb[0].mxu0 %v683
      %v857 = vpop.f32.mrb[0].mxu0
      %v858 = vadd.f32 %v567, %v857
      %v859 = vpop.f32.mrb[0].mxu0
      %860 = vmatprep.mubr.f32.mxu0 0.0
      %861 = vmatmul.mubr.f32.gmra.mrb[0].mxu0 %v685
      %v862 = vpop.f32.mrb[0].mxu0
      %v863 = vadd.f32 %v572, %v862
      %v864 = vpop.f32.mrb[0].mxu0
      %865 = vmatprep.mubr.f32.mxu0 0.0
      %866 = vmatmul.mubr.f32.gmra.mrb[0].mxu0 %v687
      %v867 = vpop.f32.mrb[0].mxu0
      %v868 = vadd.f32 %v577, %v867
      %v869 = vpop.f32.mrb[0].mxu0
      %870 = vmatprep.mubr.f32.mxu0 0.0
      %871 = vmatmul.mubr.f32.gmra.mrb[0].mxu0 %v689
      %v872 = vpop.f32.mrb[0].mxu0
      %v873 = vadd.f32 %v582, %v872
      %v874 = vpop.f32.mrb[0].mxu0
      %875 = vmatprep.mubr.f32.mxu0 0.0
      %876 = vmatmul.mubr.f32.gmra.mrb[0].mxu0 %v691
      %v877 = vpop.f32.mrb[0].mxu0
      %v878 = vadd.f32 %v587, %v877
      %v879 = vpop.f32.mrb[0].mxu0
      %880 = vmatprep.mubr.f32.mxu0 0.0
      %881 = vmatmul.mubr.f32.gmra.mrb[0].mxu0 %v693
      %v882 = vpop.f32.mrb[0].mxu0
      %v883 = vadd.f32 %v592, %v882
      %v884 = vpop.f32.mrb[0].mxu0
      %885 = vmatprep.mubr.f32.mxu0 0.0
      %886 = vmatmul.mubr.f32.gmra.mrb[0].mxu0 %v695
      %v887 = vpop.f32.mrb[0].mxu0
      %v888 = vadd.f32 %v597, %v887
      %v889 = vpop.f32.mrb[0].mxu0
      %890 = vmatprep.mubr.f32.mxu0 0.0
      %891 = vmatmul.mubr.f32.gmra.mrb[0].mxu0 %v697
      %v892 = vpop.f32.mrb[0].mxu0
      %v893 = vadd.f32 %v602, %v892
      %v894 = vpop.f32.mrb[0].mxu0
      %895 = vmatprep.mubr.f32.mxu0 0.0
      %896 = vmatmul.mubr.f32.gmra.mrb[0].mxu0 %v699
      %v897 = vpop.f32.mrb[0].mxu0
      %v898 = vadd.f32 %v607, %v897
      %v899 = vpop.f32.mrb[0].mxu0
      %900 = vmatprep.mubr.f32.mxu0 0.0
      %901 = vmatmul.mubr.f32.gmra.mrb[0].mxu0 %v701
      %v902 = vpop.f32.mrb[0].mxu0
      %v903 = vadd.f32 %v612, %v902
      %v904 = vpop.f32.mrb[0].mxu0
      %905 = vmatprep.mubr.f32.mxu0 0.0
      %906 = vmatmul.mubr.f32.gmra.mrb[0].mxu0 %v703
      %v907 = vpop.f32.mrb[0].mxu0
      %v908 = vadd.f32 %v617, %v907
      %v909 = vpop.f32.mrb[0].mxu0
      %910 = vmatprep.mubr.f32.mxu0 0.0
      %911 = vmatmul.mubr.f32.gmra.mrb[0].mxu0 %v705
      %v912 = vpop.f32.mrb[0].mxu0
      %v913 = vadd.f32 %v622, %v912
      %v914 = vpop.f32.mrb[0].mxu0
      %915 = vmatprep.mubr.f32.mxu0 0.0
      %916 = vmatmul.mubr.f32.gmra.mrb[0].mxu0 %v707
      %v917 = vpop.f32.mrb[0].mxu0
      %v918 = vadd.f32 %v627, %v917
      %v919 = vpop.f32.mrb[0].mxu0
      %920 = vmatprep.mubr.f32.mxu0 0.0
      %921 = vmatmul.mubr.f32.gmra.mrb[0].mxu0 %v709
      %v922 = vpop.f32.mrb[0].mxu0
      %v923 = vadd.f32 %v632, %v922
      %v924 = vpop.f32.mrb[0].mxu0
      %925 = vmatprep.mubr.f32.mxu0 0.0
      %926 = vmatmul.mubr.f32.gmra.mrb[0].mxu0 %v711
      %v927 = vpop.f32.mrb[0].mxu0
      %v928 = vadd.f32 %v637, %v927
      %v929 = vpop.f32.mrb[0].mxu0
      %930 = vmatprep.mubr.f32.mxu0 0.0
      %931 = vmatmul.mubr.f32.gmra.mrb[0].mxu0 %v713
      %v932 = vpop.f32.mrb[0].mxu0
      %v933 = vadd.f32 %v642, %v932
      %v934 = vpop.f32.mrb[0].mxu0
      %935 = vmatprep.mubr.f32.mxu0 0.0
      %936 = vmatmul.mubr.f32.gmra.mrb[0].mxu0 %v715
      %v937 = vpop.f32.mrb[0].mxu0
      %v938 = vadd.f32 %v647, %v937
      %v939 = vpop.f32.mrb[0].mxu0
      %940 = vmatprep.mubr.f32.mxu0 0.0
      %941 = vmatmul.mubr.f32.gmra.mrb[0].mxu0 %v717
      %v942 = vpop.f32.mrb[0].mxu0
      %v943 = vadd.f32 %v652, %v942
      %v944 = vpop.f32.mrb[0].mxu0
      %945 = vdwg.mxu0
      %vm946 = vcmask 1045504
      %v947 = vrot.slane %v177, 2
      %v948 = vrot.slane %v178, 2
      %v949 = vsel %vm946, %v947, %v948
      %v950 = vrot.slane %v179, 2
      %v951 = vsel %vm946, %v948, %v950
      %v952 = vrot.slane %v180, 2
      %v953 = vrot.slane %v181, 2
      %v954 = vsel %vm946, %v952, %v953
      %v955 = vrot.slane %v182, 2
      %v956 = vsel %vm946, %v953, %v955
      %v957 = vrot.slane %v183, 2
      %v958 = vrot.slane %v184, 2
      %v959 = vsel %vm946, %v957, %v958
      %v960 = vrot.slane %v185, 2
      %v961 = vsel %vm946, %v958, %v960
      %v962 = vrot.slane %v186, 2
      %v963 = vrot.slane %v187, 2
      %v964 = vsel %vm946, %v962, %v963
      %v965 = vrot.slane %v188, 2
      %v966 = vsel %vm946, %v963, %v965
      %v967 = vrot.slane %v189, 2
      %v968 = vrot.slane %v190, 2
      %v969 = vsel %vm946, %v967, %v968
      %v970 = vrot.slane %v191, 2
      %v971 = vsel %vm946, %v968, %v970
      %v972 = vrot.slane %v192, 2
      %v973 = vrot.slane %v193, 2
      %v974 = vsel %vm946, %v972, %v973
      %v975 = vrot.slane %v194, 2
      %v976 = vsel %vm946, %v973, %v975
      %v977 = vrot.slane %v195, 2
      %v978 = vrot.slane %v196, 2
      %v979 = vsel %vm946, %v977, %v978
      %v980 = vrot.slane %v197, 2
      %v981 = vsel %vm946, %v978, %v980
      %v982 = vrot.slane %v198, 2
      %v983 = vrot.slane %v199, 2
      %v984 = vsel %vm946, %v982, %v983
      %v985 = vrot.slane %v200, 2
      %v986 = vsel %vm946, %v983, %v985
      %v987 = vrot.slane %v201, 2
      %v988 = vrot.slane %v202, 2
      %v989 = vsel %vm946, %v987, %v988
      %v990 = vrot.slane %v203, 2
      %v991 = vsel %vm946, %v988, %v990
      %v992 = vrot.slane %v204, 2
      %v993 = vrot.slane %v205, 2
      %v994 = vsel %vm946, %v992, %v993
      %v995 = vrot.slane %v206, 2
      %v996 = vsel %vm946, %v993, %v995
      %v997 = vrot.slane %v207, 2
      %v998 = vrot.slane %v208, 2
      %v999 = vsel %vm946, %v997, %v998
      %v1000 = vrot.slane %v209, 2
      %v1001 = vsel %vm946, %v998, %v1000
      %v1002 = vrot.slane %v210, 2
      %v1003 = vrot.slane %v211, 2
      %v1004 = vsel %vm946, %v1002, %v1003
      %v1005 = vrot.slane %v212, 2
      %v1006 = vsel %vm946, %v1003, %v1005
      %v1007 = vrot.slane %v213, 2
      %v1008 = vrot.slane %v214, 2
      %v1009 = vsel %vm946, %v1007, %v1008
      %v1010 = vrot.slane %v215, 2
      %v1011 = vsel %vm946, %v1008, %v1010
      %v1012 = vrot.slane %v216, 2
      %v1013 = vrot.slane %v217, 2
      %v1014 = vsel %vm946, %v1012, %v1013
      %v1015 = vrot.slane %v218, 2
      %v1016 = vsel %vm946, %v1013, %v1015
      %v1017 = vrot.slane %v219, 2
      %v1018 = vrot.slane %v220, 2
      %v1019 = vsel %vm946, %v1017, %v1018
      %v1020 = vrot.slane %v221, 2
      %v1021 = vsel %vm946, %v1018, %v1020
      %v1022 = vrot.slane %v222, 2
      %v1023 = vrot.slane %v223, 2
      %v1024 = vsel %vm946, %v1022, %v1023
      %v1025 = vrot.slane %v224, 2
      %v1026 = vsel %vm946, %v1023, %v1025
      %v1027 = vsel %vm362, %v949, 0
      %v1029 = vsel %vm362, %v951, 0
      %v1031 = vsel %vm362, %v954, 0
      %v1033 = vsel %vm362, %v956, 0
      %v1035 = vsel %vm362, %v959, 0
      %v1037 = vsel %vm362, %v961, 0
      %v1039 = vsel %vm362, %v964, 0
      %v1041 = vsel %vm362, %v966, 0
      %v1043 = vsel %vm362, %v969, 0
      %v1045 = vsel %vm362, %v971, 0
      %v1047 = vsel %vm362, %v974, 0
      %v1049 = vsel %vm362, %v976, 0
      %v1051 = vsel %vm362, %v979, 0
      %v1053 = vsel %vm362, %v981, 0
      %v1055 = vsel %vm362, %v984, 0
      %v1057 = vsel %vm362, %v986, 0
      %v1059 = vsel %vm362, %v989, 0
      %v1061 = vsel %vm362, %v991, 0
      %v1063 = vsel %vm362, %v994, 0
      %v1065 = vsel %vm362, %v996, 0
      %v1067 = vsel %vm362, %v999, 0
      %v1069 = vsel %vm362, %v1001, 0
      %v1071 = vsel %vm362, %v1004, 0
      %v1073 = vsel %vm362, %v1006, 0
      %v1075 = vsel %vm362, %v1009, 0
      %v1077 = vsel %vm362, %v1011, 0
      %v1079 = vsel %vm362, %v1014, 0
      %v1081 = vsel %vm362, %v1016, 0
      %v1083 = vsel %vm362, %v1019, 0
      %v1085 = vsel %vm362, %v1021, 0
      %v1087 = vsel %vm362, %v1024, 0
      %v1089 = vsel %vm362, %v1026, 0
      %v1092 = vsel %vm427, %v172, 0
      %1094 = vmatprep.subr.mxu0 0.0
      %1095 = vmatpush1.msra.mxu0 %v1092
      %1096 = vmatprep.subr.mxu0 0.0
      %1097 = vmatpush1.msra.mxu0 0.0
      %1098 = vmatprep.subr.mxu0 0.0
      %1099 = vmatpush1.msra.mxu0 0.0
      %1100 = vmatprep.subr.mxu0 0.0
      %1101 = vmatpush1.msra.mxu0 0.0
      %1102 = vmatprep.subr.mxu0 0.0
      %1103 = vmatpush1.msra.mxu0 0.0
      %1104 = vmatprep.subr.mxu0 0.0
      %1105 = vmatpush1.msra.mxu0 0.0
      %1106 = vmatprep.subr.mxu0 0.0
      %1107 = vmatpush1.msra.mxu0 0.0
      %1108 = vmatprep.subr.mxu0 0.0
      %1109 = vmatpush1.msra.mxu0 0.0
      %1110 = vmatprep.subr.mxu0 0.0
      %1111 = vmatpush1.msra.mxu0 0.0
      %1112 = vmatprep.subr.mxu0 0.0
      %1113 = vmatpush1.msra.mxu0 0.0
      %1114 = vmatprep.subr.mxu0 0.0
      %1115 = vmatpush1.msra.mxu0 0.0
      %1116 = vmatprep.subr.mxu0 0.0
      %1117 = vmatpush1.msra.mxu0 0.0
      %1118 = vmatprep.subr.mxu0 0.0
      %1119 = vmatpush1.msra.mxu0 0.0
      %1120 = vmatprep.subr.mxu0 0.0
      %1121 = vmatpush1.msra.mxu0 0.0
      %1122 = vmatprep.subr.mxu0 0.0
      %1123 = vmatpush1.msra.mxu0 0.0
      %1124 = vmatprep.subr.mxu0 0.0
      %1125 = vmatpush1.msra.mxu0 0.0
      %1126 = vmatprep.subr.mxu0 0.0
      %1127 = vmatpush1.msra.mxu0 0.0
      %1128 = vmatprep.subr.mxu0 0.0
      %1129 = vmatpush1.msra.mxu0 0.0
      %1130 = vmatprep.subr.mxu0 0.0
      %1131 = vmatpush1.msra.mxu0 0.0
      %1132 = vmatprep.subr.mxu0 0.0
      %1133 = vmatpush1.msra.mxu0 0.0
      %1134 = vmatprep.subr.mxu0 0.0
      %1135 = vmatpush1.msra.mxu0 0.0
      %1136 = vmatprep.subr.mxu0 0.0
      %1137 = vmatpush1.msra.mxu0 0.0
      %1138 = vmatprep.subr.mxu0 0.0
      %1139 = vmatpush1.msra.mxu0 0.0
      %1140 = vmatprep.subr.mxu0 0.0
      %1141 = vmatpush1.msra.mxu0 0.0
      %1142 = vmatprep.subr.mxu0 0.0
      %1143 = vmatpush1.msra.mxu0 0.0
      %1144 = vmatprep.subr.mxu0 0.0
      %1145 = vmatpush1.msra.mxu0 0.0
      %1146 = vmatprep.subr.mxu0 0.0
      %1147 = vmatpush1.msra.mxu0 0.0
      %1148 = vmatprep.subr.mxu0 0.0
      %1149 = vmatpush1.msra.mxu0 0.0
      %1150 = vmatprep.subr.mxu0 0.0
      %1151 = vmatpush1.msra.mxu0 0.0
      %1152 = vmatprep.subr.mxu0 0.0
      %1153 = vmatpush1.msra.mxu0 0.0
      %1154 = vmatprep.subr.mxu0 0.0
      %1155 = vmatpush1.msra.mxu0 0.0
      %1156 = vmatprep.subr.mxu0 0.0
      %1157 = vmatpush1.msra.mxu0 0.0
      %1158 = vmatprep.mubr.f32.mxu0 0.0
      %1159 = vmatmul.mubr.f32.gmra.mrb[0].mxu0 %v1027
      %v1160 = vpop.f32.mrb[0].mxu0
      %v1161 = vadd.f32 0.0, %v1160
      %v1162 = vpop.f32.mrb[0].mxu0
      %1163 = vmatprep.mubr.f32.mxu0 0.0
      %1164 = vmatmul.mubr.f32.gmra.mrb[0].mxu0 %v1029
      %v1165 = vpop.f32.mrb[0].mxu0
      %v1166 = vadd.f32 0.0, %v1165
      %v1167 = vpop.f32.mrb[0].mxu0
      %1168 = vmatprep.mubr.f32.mxu0 0.0
      %1169 = vmatmul.mubr.f32.gmra.mrb[0].mxu0 %v1031
      %v1170 = vpop.f32.mrb[0].mxu0
      %v1171 = vadd.f32 0.0, %v1170
      %v1172 = vpop.f32.mrb[0].mxu0
      %1173 = vmatprep.mubr.f32.mxu0 0.0
      %1174 = vmatmul.mubr.f32.gmra.mrb[0].mxu0 %v1033
      %v1175 = vpop.f32.mrb[0].mxu0
      %v1176 = vadd.f32 0.0, %v1175
      %v1177 = vpop.f32.mrb[0].mxu0
      %1178 = vmatprep.mubr.f32.mxu0 0.0
      %1179 = vmatmul.mubr.f32.gmra.mrb[0].mxu0 %v1035
      %v1180 = vpop.f32.mrb[0].mxu0
      %v1181 = vadd.f32 0.0, %v1180
      %v1182 = vpop.f32.mrb[0].mxu0
      %1183 = vmatprep.mubr.f32.mxu0 0.0
      %1184 = vmatmul.mubr.f32.gmra.mrb[0].mxu0 %v1037
      %v1185 = vpop.f32.mrb[0].mxu0
      %v1186 = vadd.f32 0.0, %v1185
      %v1187 = vpop.f32.mrb[0].mxu0
      %1188 = vmatprep.mubr.f32.mxu0 0.0
      %1189 = vmatmul.mubr.f32.gmra.mrb[0].mxu0 %v1039
      %v1190 = vpop.f32.mrb[0].mxu0
      %v1191 = vadd.f32 0.0, %v1190
      %v1192 = vpop.f32.mrb[0].mxu0
      %1193 = vmatprep.mubr.f32.mxu0 0.0
      %1194 = vmatmul.mubr.f32.gmra.mrb[0].mxu0 %v1041
      %v1195 = vpop.f32.mrb[0].mxu0
      %v1196 = vadd.f32 0.0, %v1195
      %v1197 = vpop.f32.mrb[0].mxu0
      %1198 = vmatprep.mubr.f32.mxu0 0.0
      %1199 = vmatmul.mubr.f32.gmra.mrb[0].mxu0 %v1043
      %v1200 = vpop.f32.mrb[0].mxu0
      %v1201 = vadd.f32 0.0, %v1200
      %v1202 = vpop.f32.mrb[0].mxu0
      %1203 = vmatprep.mubr.f32.mxu0 0.0
      %1204 = vmatmul.mubr.f32.gmra.mrb[0].mxu0 %v1045
      %v1205 = vpop.f32.mrb[0].mxu0
      %v1206 = vadd.f32 0.0, %v1205
      %v1207 = vpop.f32.mrb[0].mxu0
      %1208 = vmatprep.mubr.f32.mxu0 0.0
      %1209 = vmatmul.mubr.f32.gmra.mrb[0].mxu0 %v1047
      %v1210 = vpop.f32.mrb[0].mxu0
      %v1211 = vadd.f32 0.0, %v1210
      %v1212 = vpop.f32.mrb[0].mxu0
      %1213 = vmatprep.mubr.f32.mxu0 0.0
      %1214 = vmatmul.mubr.f32.gmra.mrb[0].mxu0 %v1049
      %v1215 = vpop.f32.mrb[0].mxu0
      %v1216 = vadd.f32 0.0, %v1215
      %v1217 = vpop.f32.mrb[0].mxu0
      %1218 = vmatprep.mubr.f32.mxu0 0.0
      %1219 = vmatmul.mubr.f32.gmra.mrb[0].mxu0 %v1051
      %v1220 = vpop.f32.mrb[0].mxu0
      %v1221 = vadd.f32 0.0, %v1220
      %v1222 = vpop.f32.mrb[0].mxu0
      %1223 = vmatprep.mubr.f32.mxu0 0.0
      %1224 = vmatmul.mubr.f32.gmra.mrb[0].mxu0 %v1053
      %v1225 = vpop.f32.mrb[0].mxu0
      %v1226 = vadd.f32 0.0, %v1225
      %v1227 = vpop.f32.mrb[0].mxu0
      %1228 = vmatprep.mubr.f32.mxu0 0.0
      %1229 = vmatmul.mubr.f32.gmra.mrb[0].mxu0 %v1055
      %v1230 = vpop.f32.mrb[0].mxu0
      %v1231 = vadd.f32 0.0, %v1230
      %v1232 = vpop.f32.mrb[0].mxu0
      %1233 = vmatprep.mubr.f32.mxu0 0.0
      %1234 = vmatmul.mubr.f32.gmra.mrb[0].mxu0 %v1057
      %v1235 = vpop.f32.mrb[0].mxu0
      %v1236 = vadd.f32 0.0, %v1235
      %v1237 = vpop.f32.mrb[0].mxu0
      %1238 = vmatprep.mubr.f32.mxu0 0.0
      %1239 = vmatmul.mubr.f32.gmra.mrb[0].mxu0 %v1059
      %v1240 = vpop.f32.mrb[0].mxu0
      %v1241 = vadd.f32 0.0, %v1240
      %v1242 = vpop.f32.mrb[0].mxu0
      %1243 = vmatprep.mubr.f32.mxu0 0.0
      %1244 = vmatmul.mubr.f32.gmra.mrb[0].mxu0 %v1061
      %v1245 = vpop.f32.mrb[0].mxu0
      %v1246 = vadd.f32 0.0, %v1245
      %v1247 = vpop.f32.mrb[0].mxu0
      %1248 = vmatprep.mubr.f32.mxu0 0.0
      %1249 = vmatmul.mubr.f32.gmra.mrb[0].mxu0 %v1063
      %v1250 = vpop.f32.mrb[0].mxu0
      %v1251 = vadd.f32 0.0, %v1250
      %v1252 = vpop.f32.mrb[0].mxu0
      %1253 = vmatprep.mubr.f32.mxu0 0.0
      %1254 = vmatmul.mubr.f32.gmra.mrb[0].mxu0 %v1065
      %v1255 = vpop.f32.mrb[0].mxu0
      %v1256 = vadd.f32 0.0, %v1255
      %v1257 = vpop.f32.mrb[0].mxu0
      %1258 = vmatprep.mubr.f32.mxu0 0.0
      %1259 = vmatmul.mubr.f32.gmra.mrb[0].mxu0 %v1067
      %v1260 = vpop.f32.mrb[0].mxu0
      %v1261 = vadd.f32 0.0, %v1260
      %v1262 = vpop.f32.mrb[0].mxu0
      %1263 = vmatprep.mubr.f32.mxu0 0.0
      %1264 = vmatmul.mubr.f32.gmra.mrb[0].mxu0 %v1069
      %v1265 = vpop.f32.mrb[0].mxu0
      %v1266 = vadd.f32 0.0, %v1265
      %v1267 = vpop.f32.mrb[0].mxu0
      %1268 = vmatprep.mubr.f32.mxu0 0.0
      %1269 = vmatmul.mubr.f32.gmra.mrb[0].mxu0 %v1071
      %v1270 = vpop.f32.mrb[0].mxu0
      %v1271 = vadd.f32 0.0, %v1270
      %v1272 = vpop.f32.mrb[0].mxu0
      %1273 = vmatprep.mubr.f32.mxu0 0.0
      %1274 = vmatmul.mubr.f32.gmra.mrb[0].mxu0 %v1073
      %v1275 = vpop.f32.mrb[0].mxu0
      %v1276 = vadd.f32 0.0, %v1275
      %v1277 = vpop.f32.mrb[0].mxu0
      %1278 = vmatprep.mubr.f32.mxu0 0.0
      %1279 = vmatmul.mubr.f32.gmra.mrb[0].mxu0 %v1075
      %v1280 = vpop.f32.mrb[0].mxu0
      %v1281 = vadd.f32 0.0, %v1280
      %v1282 = vpop.f32.mrb[0].mxu0
      %1283 = vmatprep.mubr.f32.mxu0 0.0
      %1284 = vmatmul.mubr.f32.gmra.mrb[0].mxu0 %v1077
      %v1285 = vpop.f32.mrb[0].mxu0
      %v1286 = vadd.f32 0.0, %v1285
      %v1287 = vpop.f32.mrb[0].mxu0
      %1288 = vmatprep.mubr.f32.mxu0 0.0
      %1289 = vmatmul.mubr.f32.gmra.mrb[0].mxu0 %v1079
      %v1290 = vpop.f32.mrb[0].mxu0
      %v1291 = vadd.f32 0.0, %v1290
      %v1292 = vpop.f32.mrb[0].mxu0
      %1293 = vmatprep.mubr.f32.mxu0 0.0
      %1294 = vmatmul.mubr.f32.gmra.mrb[0].mxu0 %v1081
      %v1295 = vpop.f32.mrb[0].mxu0
      %v1296 = vadd.f32 0.0, %v1295
      %v1297 = vpop.f32.mrb[0].mxu0
      %1298 = vmatprep.mubr.f32.mxu0 0.0
      %1299 = vmatmul.mubr.f32.gmra.mrb[0].mxu0 %v1083
      %v1300 = vpop.f32.mrb[0].mxu0
      %v1301 = vadd.f32 0.0, %v1300
      %v1302 = vpop.f32.mrb[0].mxu0
      %1303 = vmatprep.mubr.f32.mxu0 0.0
      %1304 = vmatmul.mubr.f32.gmra.mrb[0].mxu0 %v1085
      %v1305 = vpop.f32.mrb[0].mxu0
      %v1306 = vadd.f32 0.0, %v1305
      %v1307 = vpop.f32.mrb[0].mxu0
      %1308 = vmatprep.mubr.f32.mxu0 0.0
      %1309 = vmatmul.mubr.f32.gmra.mrb[0].mxu0 %v1087
      %v1310 = vpop.f32.mrb[0].mxu0
      %v1311 = vadd.f32 0.0, %v1310
      %v1312 = vpop.f32.mrb[0].mxu0
      %1313 = vmatprep.mubr.f32.mxu0 0.0
      %1314 = vmatmul.mubr.f32.gmra.mrb[0].mxu0 %v1089
      %v1315 = vpop.f32.mrb[0].mxu0
      %v1316 = vadd.f32 0.0, %v1315
      %v1317 = vpop.f32.mrb[0].mxu0
      %1318 = vdwg.mxu0
      %v1319 = vadd.f32 %v788, %v1161
      %v1320 = vadd.f32 %v793, %v1166
      %v1321 = vadd.f32 %v798, %v1171
      %v1322 = vadd.f32 %v803, %v1176
      %v1323 = vadd.f32 %v808, %v1181
      %v1324 = vadd.f32 %v813, %v1186
      %v1325 = vadd.f32 %v818, %v1191
      %v1326 = vadd.f32 %v823, %v1196
      %v1327 = vadd.f32 %v828, %v1201
      %v1328 = vadd.f32 %v833, %v1206
      %v1329 = vadd.f32 %v838, %v1211
      %v1330 = vadd.f32 %v843, %v1216
      %v1331 = vadd.f32 %v848, %v1221
      %v1332 = vadd.f32 %v853, %v1226
      %v1333 = vadd.f32 %v858, %v1231
      %v1334 = vadd.f32 %v863, %v1236
      %v1335 = vadd.f32 %v868, %v1241
      %v1336 = vadd.f32 %v873, %v1246
      %v1337 = vadd.f32 %v878, %v1251
      %v1338 = vadd.f32 %v883, %v1256
      %v1339 = vadd.f32 %v888, %v1261
      %v1340 = vadd.f32 %v893, %v1266
      %v1341 = vadd.f32 %v898, %v1271
      %v1342 = vadd.f32 %v903, %v1276
      %v1343 = vadd.f32 %v908, %v1281
      %v1344 = vadd.f32 %v913, %v1286
      %v1345 = vadd.f32 %v918, %v1291
      %v1346 = vadd.f32 %v923, %v1296
      %v1347 = vadd.f32 %v928, %v1301
      %v1348 = vadd.f32 %v933, %v1306
      %v1349 = vadd.f32 %v938, %v1311
      %v1350 = vadd.f32 %v943, %v1316
      %v1351 = vrot.slane %v172, 4
      %v1353 = vsel %vm362, %v225, 0
      %v1356 = vsel %vm362, %v226, 0
      %v1358 = vsel %vm427, %v1351, 0
      %1360 = vmatprep.subr.mxu0 0.0
      %1361 = vmatpush1.msra.mxu0 %v1358
      %1362 = vmatprep.subr.mxu0 0.0
      %1363 = vmatpush1.msra.mxu0 0.0
      %1364 = vmatprep.subr.mxu0 0.0
      %1365 = vmatpush1.msra.mxu0 0.0
      %1366 = vmatprep.subr.mxu0 0.0
      %1367 = vmatpush1.msra.mxu0 0.0
      %1368 = vmatprep.subr.mxu0 0.0
      %1369 = vmatpush1.msra.mxu0 0.0
      %1370 = vmatprep.subr.mxu0 0.0
      %1371 = vmatpush1.msra.mxu0 0.0
      %1372 = vmatprep.subr.mxu0 0.0
      %1373 = vmatpush1.msra.mxu0 0.0
      %1374 = vmatprep.subr.mxu0 0.0
      %1375 = vmatpush1.msra.mxu0 0.0
      %1376 = vmatprep.subr.mxu0 0.0
      %1377 = vmatpush1.msra.mxu0 0.0
      %1378 = vmatprep.subr.mxu0 0.0
      %1379 = vmatpush1.msra.mxu0 0.0
      %1380 = vmatprep.subr.mxu0 0.0
      %1381 = vmatpush1.msra.mxu0 0.0
      %1382 = vmatprep.subr.mxu0 0.0
      %1383 = vmatpush1.msra.mxu0 0.0
      %1384 = vmatprep.subr.mxu0 0.0
      %1385 = vmatpush1.msra.mxu0 0.0
      %1386 = vmatprep.subr.mxu0 0.0
      %1387 = vmatpush1.msra.mxu0 0.0
      %1388 = vmatprep.subr.mxu0 0.0
      %1389 = vmatpush1.msra.mxu0 0.0
      %1390 = vmatprep.subr.mxu0 0.0
      %1391 = vmatpush1.msra.mxu0 0.0
      %1392 = vmatprep.subr.mxu0 0.0
      %1393 = vmatpush1.msra.mxu0 0.0
      %1394 = vmatprep.subr.mxu0 0.0
      %1395 = vmatpush1.msra.mxu0 0.0
      %1396 = vmatprep.subr.mxu0 0.0
      %1397 = vmatpush1.msra.mxu0 0.0
      %1398 = vmatprep.subr.mxu0 0.0
      %1399 = vmatpush1.msra.mxu0 0.0
      %1400 = vmatprep.subr.mxu0 0.0
      %1401 = vmatpush1.msra.mxu0 0.0
      %1402 = vmatprep.subr.mxu0 0.0
      %1403 = vmatpush1.msra.mxu0 0.0
      %1404 = vmatprep.subr.mxu0 0.0
      %1405 = vmatpush1.msra.mxu0 0.0
      %1406 = vmatprep.subr.mxu0 0.0
      %1407 = vmatpush1.msra.mxu0 0.0
      %1408 = vmatprep.subr.mxu0 0.0
      %1409 = vmatpush1.msra.mxu0 0.0
      %1410 = vmatprep.subr.mxu0 0.0
      %1411 = vmatpush1.msra.mxu0 0.0
      %1412 = vmatprep.subr.mxu0 0.0
      %1413 = vmatpush1.msra.mxu0 0.0
      %1414 = vmatprep.subr.mxu0 0.0
      %1415 = vmatpush1.msra.mxu0 0.0
      %1416 = vmatprep.subr.mxu0 0.0
      %1417 = vmatpush1.msra.mxu0 0.0
      %1418 = vmatprep.subr.mxu0 0.0
      %1419 = vmatpush1.msra.mxu0 0.0
      %1420 = vmatprep.subr.mxu0 0.0
      %1421 = vmatpush1.msra.mxu0 0.0
      %1422 = vmatprep.subr.mxu0 0.0
      %1423 = vmatpush1.msra.mxu0 0.0
      %1424 = vmatprep.mubr.f32.mxu0 0.0
      %1425 = vmatmul.mubr.f32.gmra.mrb[0].mxu0 %v659
      %v1426 = vpop.f32.mrb[0].mxu0
      %v1427 = vadd.f32 0.0, %v1426
      %v1428 = vpop.f32.mrb[0].mxu0
      %1429 = vmatprep.mubr.f32.mxu0 0.0
      %1430 = vmatmul.mubr.f32.gmra.mrb[0].mxu0 %v661
      %v1431 = vpop.f32.mrb[0].mxu0
      %v1432 = vadd.f32 0.0, %v1431
      %v1433 = vpop.f32.mrb[0].mxu0
      %1434 = vmatprep.mubr.f32.mxu0 0.0
      %1435 = vmatmul.mubr.f32.gmra.mrb[0].mxu0 %v663
      %v1436 = vpop.f32.mrb[0].mxu0
      %v1437 = vadd.f32 0.0, %v1436
      %v1438 = vpop.f32.mrb[0].mxu0
      %1439 = vmatprep.mubr.f32.mxu0 0.0
      %1440 = vmatmul.mubr.f32.gmra.mrb[0].mxu0 %v665
      %v1441 = vpop.f32.mrb[0].mxu0
      %v1442 = vadd.f32 0.0, %v1441
      %v1443 = vpop.f32.mrb[0].mxu0
      %1444 = vmatprep.mubr.f32.mxu0 0.0
      %1445 = vmatmul.mubr.f32.gmra.mrb[0].mxu0 %v667
      %v1446 = vpop.f32.mrb[0].mxu0
      %v1447 = vadd.f32 0.0, %v1446
      %v1448 = vpop.f32.mrb[0].mxu0
      %1449 = vmatprep.mubr.f32.mxu0 0.0
      %1450 = vmatmul.mubr.f32.gmra.mrb[0].mxu0 %v669
      %v1451 = vpop.f32.mrb[0].mxu0
      %v1452 = vadd.f32 0.0, %v1451
      %v1453 = vpop.f32.mrb[0].mxu0
      %1454 = vmatprep.mubr.f32.mxu0 0.0
      %1455 = vmatmul.mubr.f32.gmra.mrb[0].mxu0 %v671
      %v1456 = vpop.f32.mrb[0].mxu0
      %v1457 = vadd.f32 0.0, %v1456
      %v1458 = vpop.f32.mrb[0].mxu0
      %1459 = vmatprep.mubr.f32.mxu0 0.0
      %1460 = vmatmul.mubr.f32.gmra.mrb[0].mxu0 %v673
      %v1461 = vpop.f32.mrb[0].mxu0
      %v1462 = vadd.f32 0.0, %v1461
      %v1463 = vpop.f32.mrb[0].mxu0
      %1464 = vmatprep.mubr.f32.mxu0 0.0
      %1465 = vmatmul.mubr.f32.gmra.mrb[0].mxu0 %v675
      %v1466 = vpop.f32.mrb[0].mxu0
      %v1467 = vadd.f32 0.0, %v1466
      %v1468 = vpop.f32.mrb[0].mxu0
      %1469 = vmatprep.mubr.f32.mxu0 0.0
      %1470 = vmatmul.mubr.f32.gmra.mrb[0].mxu0 %v677
      %v1471 = vpop.f32.mrb[0].mxu0
      %v1472 = vadd.f32 0.0, %v1471
      %v1473 = vpop.f32.mrb[0].mxu0
      %1474 = vmatprep.mubr.f32.mxu0 0.0
      %1475 = vmatmul.mubr.f32.gmra.mrb[0].mxu0 %v679
      %v1476 = vpop.f32.mrb[0].mxu0
      %v1477 = vadd.f32 0.0, %v1476
      %v1478 = vpop.f32.mrb[0].mxu0
      %1479 = vmatprep.mubr.f32.mxu0 0.0
      %1480 = vmatmul.mubr.f32.gmra.mrb[0].mxu0 %v681
      %v1481 = vpop.f32.mrb[0].mxu0
      %v1482 = vadd.f32 0.0, %v1481
      %v1483 = vpop.f32.mrb[0].mxu0
      %1484 = vmatprep.mubr.f32.mxu0 0.0
      %1485 = vmatmul.mubr.f32.gmra.mrb[0].mxu0 %v683
      %v1486 = vpop.f32.mrb[0].mxu0
      %v1487 = vadd.f32 0.0, %v1486
      %v1488 = vpop.f32.mrb[0].mxu0
      %1489 = vmatprep.mubr.f32.mxu0 0.0
      %1490 = vmatmul.mubr.f32.gmra.mrb[0].mxu0 %v685
      %v1491 = vpop.f32.mrb[0].mxu0
      %v1492 = vadd.f32 0.0, %v1491
      %v1493 = vpop.f32.mrb[0].mxu0
      %1494 = vmatprep.mubr.f32.mxu0 0.0
      %1495 = vmatmul.mubr.f32.gmra.mrb[0].mxu0 %v687
      %v1496 = vpop.f32.mrb[0].mxu0
      %v1497 = vadd.f32 0.0, %v1496
      %v1498 = vpop.f32.mrb[0].mxu0
      %1499 = vmatprep.mubr.f32.mxu0 0.0
      %1500 = vmatmul.mubr.f32.gmra.mrb[0].mxu0 %v689
      %v1501 = vpop.f32.mrb[0].mxu0
      %v1502 = vadd.f32 0.0, %v1501
      %v1503 = vpop.f32.mrb[0].mxu0
      %1504 = vmatprep.mubr.f32.mxu0 0.0
      %1505 = vmatmul.mubr.f32.gmra.mrb[0].mxu0 %v691
      %v1506 = vpop.f32.mrb[0].mxu0
      %v1507 = vadd.f32 0.0, %v1506
      %v1508 = vpop.f32.mrb[0].mxu0
      %1509 = vmatprep.mubr.f32.mxu0 0.0
      %1510 = vmatmul.mubr.f32.gmra.mrb[0].mxu0 %v693
      %v1511 = vpop.f32.mrb[0].mxu0
      %v1512 = vadd.f32 0.0, %v1511
      %v1513 = vpop.f32.mrb[0].mxu0
      %1514 = vmatprep.mubr.f32.mxu0 0.0
      %1515 = vmatmul.mubr.f32.gmra.mrb[0].mxu0 %v695
      %v1516 = vpop.f32.mrb[0].mxu0
      %v1517 = vadd.f32 0.0, %v1516
      %v1518 = vpop.f32.mrb[0].mxu0
      %1519 = vmatprep.mubr.f32.mxu0 0.0
      %1520 = vmatmul.mubr.f32.gmra.mrb[0].mxu0 %v697
      %v1521 = vpop.f32.mrb[0].mxu0
      %v1522 = vadd.f32 0.0, %v1521
      %v1523 = vpop.f32.mrb[0].mxu0
      %1524 = vmatprep.mubr.f32.mxu0 0.0
      %1525 = vmatmul.mubr.f32.gmra.mrb[0].mxu0 %v699
      %v1526 = vpop.f32.mrb[0].mxu0
      %v1527 = vadd.f32 0.0, %v1526
      %v1528 = vpop.f32.mrb[0].mxu0
      %1529 = vmatprep.mubr.f32.mxu0 0.0
      %1530 = vmatmul.mubr.f32.gmra.mrb[0].mxu0 %v701
      %v1531 = vpop.f32.mrb[0].mxu0
      %v1532 = vadd.f32 0.0, %v1531
      %v1533 = vpop.f32.mrb[0].mxu0
      %1534 = vmatprep.mubr.f32.mxu0 0.0
      %1535 = vmatmul.mubr.f32.gmra.mrb[0].mxu0 %v703
      %v1536 = vpop.f32.mrb[0].mxu0
      %v1537 = vadd.f32 0.0, %v1536
      %v1538 = vpop.f32.mrb[0].mxu0
      %1539 = vmatprep.mubr.f32.mxu0 0.0
      %1540 = vmatmul.mubr.f32.gmra.mrb[0].mxu0 %v705
      %v1541 = vpop.f32.mrb[0].mxu0
      %v1542 = vadd.f32 0.0, %v1541
      %v1543 = vpop.f32.mrb[0].mxu0
      %1544 = vmatprep.mubr.f32.mxu0 0.0
      %1545 = vmatmul.mubr.f32.gmra.mrb[0].mxu0 %v707
      %v1546 = vpop.f32.mrb[0].mxu0
      %v1547 = vadd.f32 0.0, %v1546
      %v1548 = vpop.f32.mrb[0].mxu0
      %1549 = vmatprep.mubr.f32.mxu0 0.0
      %1550 = vmatmul.mubr.f32.gmra.mrb[0].mxu0 %v709
      %v1551 = vpop.f32.mrb[0].mxu0
      %v1552 = vadd.f32 0.0, %v1551
      %v1553 = vpop.f32.mrb[0].mxu0
      %1554 = vmatprep.mubr.f32.mxu0 0.0
      %1555 = vmatmul.mubr.f32.gmra.mrb[0].mxu0 %v711
      %v1556 = vpop.f32.mrb[0].mxu0
      %v1557 = vadd.f32 0.0, %v1556
      %v1558 = vpop.f32.mrb[0].mxu0
      %1559 = vmatprep.mubr.f32.mxu0 0.0
      %1560 = vmatmul.mubr.f32.gmra.mrb[0].mxu0 %v713
      %v1561 = vpop.f32.mrb[0].mxu0
      %v1562 = vadd.f32 0.0, %v1561
      %v1563 = vpop.f32.mrb[0].mxu0
      %1564 = vmatprep.mubr.f32.mxu0 0.0
      %1565 = vmatmul.mubr.f32.gmra.mrb[0].mxu0 %v715
      %v1566 = vpop.f32.mrb[0].mxu0
      %v1567 = vadd.f32 0.0, %v1566
      %v1568 = vpop.f32.mrb[0].mxu0
      %1569 = vmatprep.mubr.f32.mxu0 0.0
      %1570 = vmatmul.mubr.f32.gmra.mrb[0].mxu0 %v717
      %v1571 = vpop.f32.mrb[0].mxu0
      %v1572 = vadd.f32 0.0, %v1571
      %v1573 = vpop.f32.mrb[0].mxu0
      %1574 = vmatprep.mubr.f32.mxu0 0.0
      %1575 = vmatmul.mubr.f32.gmra.mrb[0].mxu0 %v1353
      %v1576 = vpop.f32.mrb[0].mxu0
      %v1577 = vadd.f32 0.0, %v1576
      %v1578 = vpop.f32.mrb[0].mxu0
      %1579 = vmatprep.mubr.f32.mxu0 0.0
      %1580 = vmatmul.mubr.f32.gmra.mrb[0].mxu0 %v1356
      %v1581 = vpop.f32.mrb[0].mxu0
      %v1582 = vadd.f32 0.0, %v1581
      %v1583 = vpop.f32.mrb[0].mxu0
      %1584 = vdwg.mxu0
      %v1585 = vadd.f32 %v1319, %v1427
      %v1586 = vadd.f32 %v1320, %v1432
      %v1587 = vadd.f32 %v1321, %v1437
      %v1588 = vadd.f32 %v1322, %v1442
      %v1589 = vadd.f32 %v1323, %v1447
      %v1590 = vadd.f32 %v1324, %v1452
      %v1591 = vadd.f32 %v1325, %v1457
      %v1592 = vadd.f32 %v1326, %v1462
      %v1593 = vadd.f32 %v1327, %v1467
      %v1594 = vadd.f32 %v1328, %v1472
      %v1595 = vadd.f32 %v1329, %v1477
      %v1596 = vadd.f32 %v1330, %v1482
      %v1597 = vadd.f32 %v1331, %v1487
      %v1598 = vadd.f32 %v1332, %v1492
      %v1599 = vadd.f32 %v1333, %v1497
      %v1600 = vadd.f32 %v1334, %v1502
      %v1601 = vadd.f32 %v1335, %v1507
      %v1602 = vadd.f32 %v1336, %v1512
      %v1603 = vadd.f32 %v1337, %v1517
      %v1604 = vadd.f32 %v1338, %v1522
      %v1605 = vadd.f32 %v1339, %v1527
      %v1606 = vadd.f32 %v1340, %v1532
      %v1607 = vadd.f32 %v1341, %v1537
      %v1608 = vadd.f32 %v1342, %v1542
      %v1609 = vadd.f32 %v1343, %v1547
      %v1610 = vadd.f32 %v1344, %v1552
      %v1611 = vadd.f32 %v1345, %v1557
      %v1612 = vadd.f32 %v1346, %v1562
      %v1613 = vadd.f32 %v1347, %v1567
      %v1614 = vadd.f32 %v1348, %v1572
      %v1615 = vadd.f32 %v1349, %v1577
      %v1616 = vadd.f32 %v1350, %v1582
      %v1618 = vrot.slane %v225, 1
      %v1619 = vrot.slane %v226, 1
      %v1620 = vsel %vm279, %v1618, %v1619
      %v1621 = vrot.slane %v227, 1
      %v1622 = vsel %vm279, %v1619, %v1621
      %v1623 = vsel %vm362, %v1620, 0
      %v1625 = vsel %vm362, %v1622, 0
      %v1628 = vsel %vm427, %v173, 0
      %1630 = vmatprep.subr.mxu0 0.0
      %1631 = vmatpush1.msra.mxu0 %v1628
      %1632 = vmatprep.subr.mxu0 0.0
      %1633 = vmatpush1.msra.mxu0 0.0
      %1634 = vmatprep.subr.mxu0 0.0
      %1635 = vmatpush1.msra.mxu0 0.0
      %1636 = vmatprep.subr.mxu0 0.0
      %1637 = vmatpush1.msra.mxu0 0.0
      %1638 = vmatprep.subr.mxu0 0.0
      %1639 = vmatpush1.msra.mxu0 0.0
      %1640 = vmatprep.subr.mxu0 0.0
      %1641 = vmatpush1.msra.mxu0 0.0
      %1642 = vmatprep.subr.mxu0 0.0
      %1643 = vmatpush1.msra.mxu0 0.0
      %1644 = vmatprep.subr.mxu0 0.0
      %1645 = vmatpush1.msra.mxu0 0.0
      %1646 = vmatprep.subr.mxu0 0.0
      %1647 = vmatpush1.msra.mxu0 0.0
      %1648 = vmatprep.subr.mxu0 0.0
      %1649 = vmatpush1.msra.mxu0 0.0
      %1650 = vmatprep.subr.mxu0 0.0
      %1651 = vmatpush1.msra.mxu0 0.0
      %1652 = vmatprep.subr.mxu0 0.0
      %1653 = vmatpush1.msra.mxu0 0.0
      %1654 = vmatprep.subr.mxu0 0.0
      %1655 = vmatpush1.msra.mxu0 0.0
      %1656 = vmatprep.subr.mxu0 0.0
      %1657 = vmatpush1.msra.mxu0 0.0
      %1658 = vmatprep.subr.mxu0 0.0
      %1659 = vmatpush1.msra.mxu0 0.0
      %1660 = vmatprep.subr.mxu0 0.0
      %1661 = vmatpush1.msra.mxu0 0.0
      %1662 = vmatprep.subr.mxu0 0.0
      %1663 = vmatpush1.msra.mxu0 0.0
      %1664 = vmatprep.subr.mxu0 0.0
      %1665 = vmatpush1.msra.mxu0 0.0
      %1666 = vmatprep.subr.mxu0 0.0
      %1667 = vmatpush1.msra.mxu0 0.0
      %1668 = vmatprep.subr.mxu0 0.0
      %1669 = vmatpush1.msra.mxu0 0.0
      %1670 = vmatprep.subr.mxu0 0.0
      %1671 = vmatpush1.msra.mxu0 0.0
      %1672 = vmatprep.subr.mxu0 0.0
      %1673 = vmatpush1.msra.mxu0 0.0
      %1674 = vmatprep.subr.mxu0 0.0
      %1675 = vmatpush1.msra.mxu0 0.0
      %1676 = vmatprep.subr.mxu0 0.0
      %1677 = vmatpush1.msra.mxu0 0.0
      %1678 = vmatprep.subr.mxu0 0.0
      %1679 = vmatpush1.msra.mxu0 0.0
      %1680 = vmatprep.subr.mxu0 0.0
      %1681 = vmatpush1.msra.mxu0 0.0
      %1682 = vmatprep.subr.mxu0 0.0
      %1683 = vmatpush1.msra.mxu0 0.0
      %1684 = vmatprep.subr.mxu0 0.0
      %1685 = vmatpush1.msra.mxu0 0.0
      %1686 = vmatprep.subr.mxu0 0.0
      %1687 = vmatpush1.msra.mxu0 0.0
      %1688 = vmatprep.subr.mxu0 0.0
      %1689 = vmatpush1.msra.mxu0 0.0
      %1690 = vmatprep.subr.mxu0 0.0
      %1691 = vmatpush1.msra.mxu0 0.0
      %1692 = vmatprep.subr.mxu0 0.0
      %1693 = vmatpush1.msra.mxu0 0.0
      %1694 = vmatprep.mubr.f32.mxu0 0.0
      %1695 = vmatmul.mubr.f32.gmra.mrb[0].mxu0 %v367
      %v1696 = vpop.f32.mrb[0].mxu0
      %v1697 = vadd.f32 0.0, %v1696
      %v1698 = vpop.f32.mrb[0].mxu0
      %1699 = vmatprep.mubr.f32.mxu0 0.0
      %1700 = vmatmul.mubr.f32.gmra.mrb[0].mxu0 %v369
      %v1701 = vpop.f32.mrb[0].mxu0
      %v1702 = vadd.f32 0.0, %v1701
      %v1703 = vpop.f32.mrb[0].mxu0
      %1704 = vmatprep.mubr.f32.mxu0 0.0
      %1705 = vmatmul.mubr.f32.gmra.mrb[0].mxu0 %v371
      %v1706 = vpop.f32.mrb[0].mxu0
      %v1707 = vadd.f32 0.0, %v1706
      %v1708 = vpop.f32.mrb[0].mxu0
      %1709 = vmatprep.mubr.f32.mxu0 0.0
      %1710 = vmatmul.mubr.f32.gmra.mrb[0].mxu0 %v373
      %v1711 = vpop.f32.mrb[0].mxu0
      %v1712 = vadd.f32 0.0, %v1711
      %v1713 = vpop.f32.mrb[0].mxu0
      %1714 = vmatprep.mubr.f32.mxu0 0.0
      %1715 = vmatmul.mubr.f32.gmra.mrb[0].mxu0 %v375
      %v1716 = vpop.f32.mrb[0].mxu0
      %v1717 = vadd.f32 0.0, %v1716
      %v1718 = vpop.f32.mrb[0].mxu0
      %1719 = vmatprep.mubr.f32.mxu0 0.0
      %1720 = vmatmul.mubr.f32.gmra.mrb[0].mxu0 %v377
      %v1721 = vpop.f32.mrb[0].mxu0
      %v1722 = vadd.f32 0.0, %v1721
      %v1723 = vpop.f32.mrb[0].mxu0
      %1724 = vmatprep.mubr.f32.mxu0 0.0
      %1725 = vmatmul.mubr.f32.gmra.mrb[0].mxu0 %v379
      %v1726 = vpop.f32.mrb[0].mxu0
      %v1727 = vadd.f32 0.0, %v1726
      %v1728 = vpop.f32.mrb[0].mxu0
      %1729 = vmatprep.mubr.f32.mxu0 0.0
      %1730 = vmatmul.mubr.f32.gmra.mrb[0].mxu0 %v381
      %v1731 = vpop.f32.mrb[0].mxu0
      %v1732 = vadd.f32 0.0, %v1731
      %v1733 = vpop.f32.mrb[0].mxu0
      %1734 = vmatprep.mubr.f32.mxu0 0.0
      %1735 = vmatmul.mubr.f32.gmra.mrb[0].mxu0 %v383
      %v1736 = vpop.f32.mrb[0].mxu0
      %v1737 = vadd.f32 0.0, %v1736
      %v1738 = vpop.f32.mrb[0].mxu0
      %1739 = vmatprep.mubr.f32.mxu0 0.0
      %1740 = vmatmul.mubr.f32.gmra.mrb[0].mxu0 %v385
      %v1741 = vpop.f32.mrb[0].mxu0
      %v1742 = vadd.f32 0.0, %v1741
      %v1743 = vpop.f32.mrb[0].mxu0
      %1744 = vmatprep.mubr.f32.mxu0 0.0
      %1745 = vmatmul.mubr.f32.gmra.mrb[0].mxu0 %v387
      %v1746 = vpop.f32.mrb[0].mxu0
      %v1747 = vadd.f32 0.0, %v1746
      %v1748 = vpop.f32.mrb[0].mxu0
      %1749 = vmatprep.mubr.f32.mxu0 0.0
      %1750 = vmatmul.mubr.f32.gmra.mrb[0].mxu0 %v389
      %v1751 = vpop.f32.mrb[0].mxu0
      %v1752 = vadd.f32 0.0, %v1751
      %v1753 = vpop.f32.mrb[0].mxu0
      %1754 = vmatprep.mubr.f32.mxu0 0.0
      %1755 = vmatmul.mubr.f32.gmra.mrb[0].mxu0 %v391
      %v1756 = vpop.f32.mrb[0].mxu0
      %v1757 = vadd.f32 0.0, %v1756
      %v1758 = vpop.f32.mrb[0].mxu0
      %1759 = vmatprep.mubr.f32.mxu0 0.0
      %1760 = vmatmul.mubr.f32.gmra.mrb[0].mxu0 %v393
      %v1761 = vpop.f32.mrb[0].mxu0
      %v1762 = vadd.f32 0.0, %v1761
      %v1763 = vpop.f32.mrb[0].mxu0
      %1764 = vmatprep.mubr.f32.mxu0 0.0
      %1765 = vmatmul.mubr.f32.gmra.mrb[0].mxu0 %v395
      %v1766 = vpop.f32.mrb[0].mxu0
      %v1767 = vadd.f32 0.0, %v1766
      %v1768 = vpop.f32.mrb[0].mxu0
      %1769 = vmatprep.mubr.f32.mxu0 0.0
      %1770 = vmatmul.mubr.f32.gmra.mrb[0].mxu0 %v397
      %v1771 = vpop.f32.mrb[0].mxu0
      %v1772 = vadd.f32 0.0, %v1771
      %v1773 = vpop.f32.mrb[0].mxu0
      %1774 = vmatprep.mubr.f32.mxu0 0.0
      %1775 = vmatmul.mubr.f32.gmra.mrb[0].mxu0 %v399
      %v1776 = vpop.f32.mrb[0].mxu0
      %v1777 = vadd.f32 0.0, %v1776
      %v1778 = vpop.f32.mrb[0].mxu0
      %1779 = vmatprep.mubr.f32.mxu0 0.0
      %1780 = vmatmul.mubr.f32.gmra.mrb[0].mxu0 %v401
      %v1781 = vpop.f32.mrb[0].mxu0
      %v1782 = vadd.f32 0.0, %v1781
      %v1783 = vpop.f32.mrb[0].mxu0
      %1784 = vmatprep.mubr.f32.mxu0 0.0
      %1785 = vmatmul.mubr.f32.gmra.mrb[0].mxu0 %v403
      %v1786 = vpop.f32.mrb[0].mxu0
      %v1787 = vadd.f32 0.0, %v1786
      %v1788 = vpop.f32.mrb[0].mxu0
      %1789 = vmatprep.mubr.f32.mxu0 0.0
      %1790 = vmatmul.mubr.f32.gmra.mrb[0].mxu0 %v405
      %v1791 = vpop.f32.mrb[0].mxu0
      %v1792 = vadd.f32 0.0, %v1791
      %v1793 = vpop.f32.mrb[0].mxu0
      %1794 = vmatprep.mubr.f32.mxu0 0.0
      %1795 = vmatmul.mubr.f32.gmra.mrb[0].mxu0 %v407
      %v1796 = vpop.f32.mrb[0].mxu0
      %v1797 = vadd.f32 0.0, %v1796
      %v1798 = vpop.f32.mrb[0].mxu0
      %1799 = vmatprep.mubr.f32.mxu0 0.0
      %1800 = vmatmul.mubr.f32.gmra.mrb[0].mxu0 %v409
      %v1801 = vpop.f32.mrb[0].mxu0
      %v1802 = vadd.f32 0.0, %v1801
      %v1803 = vpop.f32.mrb[0].mxu0
      %1804 = vmatprep.mubr.f32.mxu0 0.0
      %1805 = vmatmul.mubr.f32.gmra.mrb[0].mxu0 %v411
      %v1806 = vpop.f32.mrb[0].mxu0
      %v1807 = vadd.f32 0.0, %v1806
      %v1808 = vpop.f32.mrb[0].mxu0
      %1809 = vmatprep.mubr.f32.mxu0 0.0
      %1810 = vmatmul.mubr.f32.gmra.mrb[0].mxu0 %v413
      %v1811 = vpop.f32.mrb[0].mxu0
      %v1812 = vadd.f32 0.0, %v1811
      %v1813 = vpop.f32.mrb[0].mxu0
      %1814 = vmatprep.mubr.f32.mxu0 0.0
      %1815 = vmatmul.mubr.f32.gmra.mrb[0].mxu0 %v415
      %v1816 = vpop.f32.mrb[0].mxu0
      %v1817 = vadd.f32 0.0, %v1816
      %v1818 = vpop.f32.mrb[0].mxu0
      %1819 = vmatprep.mubr.f32.mxu0 0.0
      %1820 = vmatmul.mubr.f32.gmra.mrb[0].mxu0 %v417
      %v1821 = vpop.f32.mrb[0].mxu0
      %v1822 = vadd.f32 0.0, %v1821
      %v1823 = vpop.f32.mrb[0].mxu0
      %1824 = vmatprep.mubr.f32.mxu0 0.0
      %1825 = vmatmul.mubr.f32.gmra.mrb[0].mxu0 %v419
      %v1826 = vpop.f32.mrb[0].mxu0
      %v1827 = vadd.f32 0.0, %v1826
      %v1828 = vpop.f32.mrb[0].mxu0
      %1829 = vmatprep.mubr.f32.mxu0 0.0
      %1830 = vmatmul.mubr.f32.gmra.mrb[0].mxu0 %v421
      %v1831 = vpop.f32.mrb[0].mxu0
      %v1832 = vadd.f32 0.0, %v1831
      %v1833 = vpop.f32.mrb[0].mxu0
      %1834 = vmatprep.mubr.f32.mxu0 0.0
      %1835 = vmatmul.mubr.f32.gmra.mrb[0].mxu0 %v423
      %v1836 = vpop.f32.mrb[0].mxu0
      %v1837 = vadd.f32 0.0, %v1836
      %v1838 = vpop.f32.mrb[0].mxu0
      %1839 = vmatprep.mubr.f32.mxu0 0.0
      %1840 = vmatmul.mubr.f32.gmra.mrb[0].mxu0 %v425
      %v1841 = vpop.f32.mrb[0].mxu0
      %v1842 = vadd.f32 0.0, %v1841
      %v1843 = vpop.f32.mrb[0].mxu0
      %1844 = vmatprep.mubr.f32.mxu0 0.0
      %1845 = vmatmul.mubr.f32.gmra.mrb[0].mxu0 %v1623
      %v1846 = vpop.f32.mrb[0].mxu0
      %v1847 = vadd.f32 0.0, %v1846
      %v1848 = vpop.f32.mrb[0].mxu0
      %1849 = vmatprep.mubr.f32.mxu0 0.0
      %1850 = vmatmul.mubr.f32.gmra.mrb[0].mxu0 %v1625
      %v1851 = vpop.f32.mrb[0].mxu0
      %v1852 = vadd.f32 0.0, %v1851
      %v1853 = vpop.f32.mrb[0].mxu0
      %1854 = vdwg.mxu0
      %v1855 = vadd.f32 %v1585, %v1697
      %v1856 = vadd.f32 %v1586, %v1702
      %v1857 = vadd.f32 %v1587, %v1707
      %v1858 = vadd.f32 %v1588, %v1712
      %v1859 = vadd.f32 %v1589, %v1717
      %v1860 = vadd.f32 %v1590, %v1722
      %v1861 = vadd.f32 %v1591, %v1727
      %v1862 = vadd.f32 %v1592, %v1732
      %v1863 = vadd.f32 %v1593, %v1737
      %v1864 = vadd.f32 %v1594, %v1742
      %v1865 = vadd.f32 %v1595, %v1747
      %v1866 = vadd.f32 %v1596, %v1752
      %v1867 = vadd.f32 %v1597, %v1757
      %v1868 = vadd.f32 %v1598, %v1762
      %v1869 = vadd.f32 %v1599, %v1767
      %v1870 = vadd.f32 %v1600, %v1772
      %v1871 = vadd.f32 %v1601, %v1777
      %v1872 = vadd.f32 %v1602, %v1782
      %v1873 = vadd.f32 %v1603, %v1787
      %v1874 = vadd.f32 %v1604, %v1792
      %v1875 = vadd.f32 %v1605, %v1797
      %v1876 = vadd.f32 %v1606, %v1802
      %v1877 = vadd.f32 %v1607, %v1807
      %v1878 = vadd.f32 %v1608, %v1812
      %v1879 = vadd.f32 %v1609, %v1817
      %v1880 = vadd.f32 %v1610, %v1822
      %v1881 = vadd.f32 %v1611, %v1827
      %v1882 = vadd.f32 %v1612, %v1832
      %v1883 = vadd.f32 %v1613, %v1837
      %v1884 = vadd.f32 %v1614, %v1842
      %v1885 = vadd.f32 %v1615, %v1847
      %v1886 = vadd.f32 %v1616, %v1852
      %v1887 = vrot.slane %v225, 2
      %v1888 = vrot.slane %v226, 2
      %v1889 = vsel %vm946, %v1887, %v1888
      %v1890 = vrot.slane %v227, 2
      %v1891 = vsel %vm946, %v1888, %v1890
      %v1892 = vrot.slane %v173, 4
      %v1893 = vsel %vm362, %v1889, 0
      %v1895 = vsel %vm362, %v1891, 0
      %v1897 = vsel %vm427, %v1892, 0
      %1899 = vmatprep.subr.mxu0 0.0
      %1900 = vmatpush1.msra.mxu0 %v1897
      %1901 = vmatprep.subr.mxu0 0.0
      %1902 = vmatpush1.msra.mxu0 0.0
      %1903 = vmatprep.subr.mxu0 0.0
      %1904 = vmatpush1.msra.mxu0 0.0
      %1905 = vmatprep.subr.mxu0 0.0
      %1906 = vmatpush1.msra.mxu0 0.0
      %1907 = vmatprep.subr.mxu0 0.0
      %1908 = vmatpush1.msra.mxu0 0.0
      %1909 = vmatprep.subr.mxu0 0.0
      %1910 = vmatpush1.msra.mxu0 0.0
      %1911 = vmatprep.subr.mxu0 0.0
      %1912 = vmatpush1.msra.mxu0 0.0
      %1913 = vmatprep.subr.mxu0 0.0
      %1914 = vmatpush1.msra.mxu0 0.0
      %1915 = vmatprep.subr.mxu0 0.0
      %1916 = vmatpush1.msra.mxu0 0.0
      %1917 = vmatprep.subr.mxu0 0.0
      %1918 = vmatpush1.msra.mxu0 0.0
      %1919 = vmatprep.subr.mxu0 0.0
      %1920 = vmatpush1.msra.mxu0 0.0
      %1921 = vmatprep.subr.mxu0 0.0
      %1922 = vmatpush1.msra.mxu0 0.0
      %1923 = vmatprep.subr.mxu0 0.0
      %1924 = vmatpush1.msra.mxu0 0.0
      %1925 = vmatprep.subr.mxu0 0.0
      %1926 = vmatpush1.msra.mxu0 0.0
      %1927 = vmatprep.subr.mxu0 0.0
      %1928 = vmatpush1.msra.mxu0 0.0
      %1929 = vmatprep.subr.mxu0 0.0
      %1930 = vmatpush1.msra.mxu0 0.0
      %1931 = vmatprep.subr.mxu0 0.0
      %1932 = vmatpush1.msra.mxu0 0.0
      %1933 = vmatprep.subr.mxu0 0.0
      %1934 = vmatpush1.msra.mxu0 0.0
      %1935 = vmatprep.subr.mxu0 0.0
      %1936 = vmatpush1.msra.mxu0 0.0
      %1937 = vmatprep.subr.mxu0 0.0
      %1938 = vmatpush1.msra.mxu0 0.0
      %1939 = vmatprep.subr.mxu0 0.0
      %1940 = vmatpush1.msra.mxu0 0.0
      %1941 = vmatprep.subr.mxu0 0.0
      %1942 = vmatpush1.msra.mxu0 0.0
      %1943 = vmatprep.subr.mxu0 0.0
      %1944 = vmatpush1.msra.mxu0 0.0
      %1945 = vmatprep.subr.mxu0 0.0
      %1946 = vmatpush1.msra.mxu0 0.0
      %1947 = vmatprep.subr.mxu0 0.0
      %1948 = vmatpush1.msra.mxu0 0.0
      %1949 = vmatprep.subr.mxu0 0.0
      %1950 = vmatpush1.msra.mxu0 0.0
      %1951 = vmatprep.subr.mxu0 0.0
      %1952 = vmatpush1.msra.mxu0 0.0
      %1953 = vmatprep.subr.mxu0 0.0
      %1954 = vmatpush1.msra.mxu0 0.0
      %1955 = vmatprep.subr.mxu0 0.0
      %1956 = vmatpush1.msra.mxu0 0.0
      %1957 = vmatprep.subr.mxu0 0.0
      %1958 = vmatpush1.msra.mxu0 0.0
      %1959 = vmatprep.subr.mxu0 0.0
      %1960 = vmatpush1.msra.mxu0 0.0
      %1961 = vmatprep.subr.mxu0 0.0
      %1962 = vmatpush1.msra.mxu0 0.0
      %1963 = vmatprep.mubr.f32.mxu0 0.0
      %1964 = vmatmul.mubr.f32.gmra.mrb[0].mxu0 %v1031
      %v1965 = vpop.f32.mrb[0].mxu0
      %v1966 = vadd.f32 0.0, %v1965
      %v1967 = vpop.f32.mrb[0].mxu0
      %1968 = vmatprep.mubr.f32.mxu0 0.0
      %1969 = vmatmul.mubr.f32.gmra.mrb[0].mxu0 %v1033
      %v1970 = vpop.f32.mrb[0].mxu0
      %v1971 = vadd.f32 0.0, %v1970
      %v1972 = vpop.f32.mrb[0].mxu0
      %1973 = vmatprep.mubr.f32.mxu0 0.0
      %1974 = vmatmul.mubr.f32.gmra.mrb[0].mxu0 %v1035
      %v1975 = vpop.f32.mrb[0].mxu0
      %v1976 = vadd.f32 0.0, %v1975
      %v1977 = vpop.f32.mrb[0].mxu0
      %1978 = vmatprep.mubr.f32.mxu0 0.0
      %1979 = vmatmul.mubr.f32.gmra.mrb[0].mxu0 %v1037
      %v1980 = vpop.f32.mrb[0].mxu0
      %v1981 = vadd.f32 0.0, %v1980
      %v1982 = vpop.f32.mrb[0].mxu0
      %1983 = vmatprep.mubr.f32.mxu0 0.0
      %1984 = vmatmul.mubr.f32.gmra.mrb[0].mxu0 %v1039
      %v1985 = vpop.f32.mrb[0].mxu0
      %v1986 = vadd.f32 0.0, %v1985
      %v1987 = vpop.f32.mrb[0].mxu0
      %1988 = vmatprep.mubr.f32.mxu0 0.0
      %1989 = vmatmul.mubr.f32.gmra.mrb[0].mxu0 %v1041
      %v1990 = vpop.f32.mrb[0].mxu0
      %v1991 = vadd.f32 0.0, %v1990
      %v1992 = vpop.f32.mrb[0].mxu0
      %1993 = vmatprep.mubr.f32.mxu0 0.0
      %1994 = vmatmul.mubr.f32.gmra.mrb[0].mxu0 %v1043
      %v1995 = vpop.f32.mrb[0].mxu0
      %v1996 = vadd.f32 0.0, %v1995
      %v1997 = vpop.f32.mrb[0].mxu0
      %1998 = vmatprep.mubr.f32.mxu0 0.0
      %1999 = vmatmul.mubr.f32.gmra.mrb[0].mxu0 %v1045
      %v2000 = vpop.f32.mrb[0].mxu0
      %v2001 = vadd.f32 0.0, %v2000
      %v2002 = vpop.f32.mrb[0].mxu0
      %2003 = vmatprep.mubr.f32.mxu0 0.0
      %2004 = vmatmul.mubr.f32.gmra.mrb[0].mxu0 %v1047
      %v2005 = vpop.f32.mrb[0].mxu0
      %v2006 = vadd.f32 0.0, %v2005
      %v2007 = vpop.f32.mrb[0].mxu0
      %2008 = vmatprep.mubr.f32.mxu0 0.0
      %2009 = vmatmul.mubr.f32.gmra.mrb[0].mxu0 %v1049
      %v2010 = vpop.f32.mrb[0].mxu0
      %v2011 = vadd.f32 0.0, %v2010
      %v2012 = vpop.f32.mrb[0].mxu0
      %2013 = vmatprep.mubr.f32.mxu0 0.0
      %2014 = vmatmul.mubr.f32.gmra.mrb[0].mxu0 %v1051
      %v2015 = vpop.f32.mrb[0].mxu0
      %v2016 = vadd.f32 0.0, %v2015
      %v2017 = vpop.f32.mrb[0].mxu0
      %2018 = vmatprep.mubr.f32.mxu0 0.0
      %2019 = vmatmul.mubr.f32.gmra.mrb[0].mxu0 %v1053
      %v2020 = vpop.f32.mrb[0].mxu0
      %v2021 = vadd.f32 0.0, %v2020
      %v2022 = vpop.f32.mrb[0].mxu0
      %2023 = vmatprep.mubr.f32.mxu0 0.0
      %2024 = vmatmul.mubr.f32.gmra.mrb[0].mxu0 %v1055
      %v2025 = vpop.f32.mrb[0].mxu0
      %v2026 = vadd.f32 0.0, %v2025
      %v2027 = vpop.f32.mrb[0].mxu0
      %2028 = vmatprep.mubr.f32.mxu0 0.0
      %2029 = vmatmul.mubr.f32.gmra.mrb[0].mxu0 %v1057
      %v2030 = vpop.f32.mrb[0].mxu0
      %v2031 = vadd.f32 0.0, %v2030
      %v2032 = vpop.f32.mrb[0].mxu0
      %2033 = vmatprep.mubr.f32.mxu0 0.0
      %2034 = vmatmul.mubr.f32.gmra.mrb[0].mxu0 %v1059
      %v2035 = vpop.f32.mrb[0].mxu0
      %v2036 = vadd.f32 0.0, %v2035
      %v2037 = vpop.f32.mrb[0].mxu0
      %2038 = vmatprep.mubr.f32.mxu0 0.0
      %2039 = vmatmul.mubr.f32.gmra.mrb[0].mxu0 %v1061
      %v2040 = vpop.f32.mrb[0].mxu0
      %v2041 = vadd.f32 0.0, %v2040
      %v2042 = vpop.f32.mrb[0].mxu0
      %2043 = vmatprep.mubr.f32.mxu0 0.0
      %2044 = vmatmul.mubr.f32.gmra.mrb[0].mxu0 %v1063
      %v2045 = vpop.f32.mrb[0].mxu0
      %v2046 = vadd.f32 0.0, %v2045
      %v2047 = vpop.f32.mrb[0].mxu0
      %2048 = vmatprep.mubr.f32.mxu0 0.0
      %2049 = vmatmul.mubr.f32.gmra.mrb[0].mxu0 %v1065
      %v2050 = vpop.f32.mrb[0].mxu0
      %v2051 = vadd.f32 0.0, %v2050
      %v2052 = vpop.f32.mrb[0].mxu0
      %2053 = vmatprep.mubr.f32.mxu0 0.0
      %2054 = vmatmul.mubr.f32.gmra.mrb[0].mxu0 %v1067
      %v2055 = vpop.f32.mrb[0].mxu0
      %v2056 = vadd.f32 0.0, %v2055
      %v2057 = vpop.f32.mrb[0].mxu0
      %2058 = vmatprep.mubr.f32.mxu0 0.0
      %2059 = vmatmul.mubr.f32.gmra.mrb[0].mxu0 %v1069
      %v2060 = vpop.f32.mrb[0].mxu0
      %v2061 = vadd.f32 0.0, %v2060
      %v2062 = vpop.f32.mrb[0].mxu0
      %2063 = vmatprep.mubr.f32.mxu0 0.0
      %2064 = vmatmul.mubr.f32.gmra.mrb[0].mxu0 %v1071
      %v2065 = vpop.f32.mrb[0].mxu0
      %v2066 = vadd.f32 0.0, %v2065
      %v2067 = vpop.f32.mrb[0].mxu0
      %2068 = vmatprep.mubr.f32.mxu0 0.0
      %2069 = vmatmul.mubr.f32.gmra.mrb[0].mxu0 %v1073
      %v2070 = vpop.f32.mrb[0].mxu0
      %v2071 = vadd.f32 0.0, %v2070
      %v2072 = vpop.f32.mrb[0].mxu0
      %2073 = vmatprep.mubr.f32.mxu0 0.0
      %2074 = vmatmul.mubr.f32.gmra.mrb[0].mxu0 %v1075
      %v2075 = vpop.f32.mrb[0].mxu0
      %v2076 = vadd.f32 0.0, %v2075
      %v2077 = vpop.f32.mrb[0].mxu0
      %2078 = vmatprep.mubr.f32.mxu0 0.0
      %2079 = vmatmul.mubr.f32.gmra.mrb[0].mxu0 %v1077
      %v2080 = vpop.f32.mrb[0].mxu0
      %v2081 = vadd.f32 0.0, %v2080
      %v2082 = vpop.f32.mrb[0].mxu0
      %2083 = vmatprep.mubr.f32.mxu0 0.0
      %2084 = vmatmul.mubr.f32.gmra.mrb[0].mxu0 %v1079
      %v2085 = vpop.f32.mrb[0].mxu0
      %v2086 = vadd.f32 0.0, %v2085
      %v2087 = vpop.f32.mrb[0].mxu0
      %2088 = vmatprep.mubr.f32.mxu0 0.0
      %2089 = vmatmul.mubr.f32.gmra.mrb[0].mxu0 %v1081
      %v2090 = vpop.f32.mrb[0].mxu0
      %v2091 = vadd.f32 0.0, %v2090
      %v2092 = vpop.f32.mrb[0].mxu0
      %2093 = vmatprep.mubr.f32.mxu0 0.0
      %2094 = vmatmul.mubr.f32.gmra.mrb[0].mxu0 %v1083
      %v2095 = vpop.f32.mrb[0].mxu0
      %v2096 = vadd.f32 0.0, %v2095
      %v2097 = vpop.f32.mrb[0].mxu0
      %2098 = vmatprep.mubr.f32.mxu0 0.0
      %2099 = vmatmul.mubr.f32.gmra.mrb[0].mxu0 %v1085
      %v2100 = vpop.f32.mrb[0].mxu0
      %v2101 = vadd.f32 0.0, %v2100
      %v2102 = vpop.f32.mrb[0].mxu0
      %2103 = vmatprep.mubr.f32.mxu0 0.0
      %2104 = vmatmul.mubr.f32.gmra.mrb[0].mxu0 %v1087
      %v2105 = vpop.f32.mrb[0].mxu0
      %v2106 = vadd.f32 0.0, %v2105
      %v2107 = vpop.f32.mrb[0].mxu0
      %2108 = vmatprep.mubr.f32.mxu0 0.0
      %2109 = vmatmul.mubr.f32.gmra.mrb[0].mxu0 %v1089
      %v2110 = vpop.f32.mrb[0].mxu0
      %v2111 = vadd.f32 0.0, %v2110
      %v2112 = vpop.f32.mrb[0].mxu0
      %2113 = vmatprep.mubr.f32.mxu0 0.0
      %2114 = vmatmul.mubr.f32.gmra.mrb[0].mxu0 %v1893
      %v2115 = vpop.f32.mrb[0].mxu0
      %v2116 = vadd.f32 0.0, %v2115
      %v2117 = vpop.f32.mrb[0].mxu0
      %2118 = vmatprep.mubr.f32.mxu0 0.0
      %2119 = vmatmul.mubr.f32.gmra.mrb[0].mxu0 %v1895
      %v2120 = vpop.f32.mrb[0].mxu0
      %v2121 = vadd.f32 0.0, %v2120
      %v2122 = vpop.f32.mrb[0].mxu0
      %2123 = vdwg.mxu0
      %v2124 = vadd.f32 %v1855, %v1966
      %v2125 = vadd.f32 %v1856, %v1971
      %v2126 = vadd.f32 %v1857, %v1976
      %v2127 = vadd.f32 %v1858, %v1981
      %v2128 = vadd.f32 %v1859, %v1986
      %v2129 = vadd.f32 %v1860, %v1991
      %v2130 = vadd.f32 %v1861, %v1996
      %v2131 = vadd.f32 %v1862, %v2001
      %v2132 = vadd.f32 %v1863, %v2006
      %v2133 = vadd.f32 %v1864, %v2011
      %v2134 = vadd.f32 %v1865, %v2016
      %v2135 = vadd.f32 %v1866, %v2021
      %v2136 = vadd.f32 %v1867, %v2026
      %v2137 = vadd.f32 %v1868, %v2031
      %v2138 = vadd.f32 %v1869, %v2036
      %v2139 = vadd.f32 %v1870, %v2041
      %v2140 = vadd.f32 %v1871, %v2046
      %v2141 = vadd.f32 %v1872, %v2051
      %v2142 = vadd.f32 %v1873, %v2056
      %v2143 = vadd.f32 %v1874, %v2061
      %v2144 = vadd.f32 %v1875, %v2066
      %v2145 = vadd.f32 %v1876, %v2071
      %v2146 = vadd.f32 %v1877, %v2076
      %v2147 = vadd.f32 %v1878, %v2081
      %v2148 = vadd.f32 %v1879, %v2086
      %v2149 = vadd.f32 %v1880, %v2091
      %v2150 = vadd.f32 %v1881, %v2096
      %v2151 = vadd.f32 %v1882, %v2101
      %v2152 = vadd.f32 %v1883, %v2106
      %v2153 = vadd.f32 %v1884, %v2111
      %v2154 = vadd.f32 %v1885, %v2116
      %v2155 = vadd.f32 %v1886, %v2121
      %v2157 = vsel %vm362, %v228, 0
      %v2160 = vsel %vm362, %v229, 0
      %v2163 = vsel %vm427, %v174, 0
      %2165 = vmatprep.subr.mxu0 0.0
      %2166 = vmatpush1.msra.mxu0 %v2163
      %2167 = vmatprep.subr.mxu0 0.0
      %2168 = vmatpush1.msra.mxu0 0.0
      %2169 = vmatprep.subr.mxu0 0.0
      %2170 = vmatpush1.msra.mxu0 0.0
      %2171 = vmatprep.subr.mxu0 0.0
      %2172 = vmatpush1.msra.mxu0 0.0
      %2173 = vmatprep.subr.mxu0 0.0
      %2174 = vmatpush1.msra.mxu0 0.0
      %2175 = vmatprep.subr.mxu0 0.0
      %2176 = vmatpush1.msra.mxu0 0.0
      %2177 = vmatprep.subr.mxu0 0.0
      %2178 = vmatpush1.msra.mxu0 0.0
      %2179 = vmatprep.subr.mxu0 0.0
      %2180 = vmatpush1.msra.mxu0 0.0
      %2181 = vmatprep.subr.mxu0 0.0
      %2182 = vmatpush1.msra.mxu0 0.0
      %2183 = vmatprep.subr.mxu0 0.0
      %2184 = vmatpush1.msra.mxu0 0.0
      %2185 = vmatprep.subr.mxu0 0.0
      %2186 = vmatpush1.msra.mxu0 0.0
      %2187 = vmatprep.subr.mxu0 0.0
      %2188 = vmatpush1.msra.mxu0 0.0
      %2189 = vmatprep.subr.mxu0 0.0
      %2190 = vmatpush1.msra.mxu0 0.0
      %2191 = vmatprep.subr.mxu0 0.0
      %2192 = vmatpush1.msra.mxu0 0.0
      %2193 = vmatprep.subr.mxu0 0.0
      %2194 = vmatpush1.msra.mxu0 0.0
      %2195 = vmatprep.subr.mxu0 0.0
      %2196 = vmatpush1.msra.mxu0 0.0
      %2197 = vmatprep.subr.mxu0 0.0
      %2198 = vmatpush1.msra.mxu0 0.0
      %2199 = vmatprep.subr.mxu0 0.0
      %2200 = vmatpush1.msra.mxu0 0.0
      %2201 = vmatprep.subr.mxu0 0.0
      %2202 = vmatpush1.msra.mxu0 0.0
      %2203 = vmatprep.subr.mxu0 0.0
      %2204 = vmatpush1.msra.mxu0 0.0
      %2205 = vmatprep.subr.mxu0 0.0
      %2206 = vmatpush1.msra.mxu0 0.0
      %2207 = vmatprep.subr.mxu0 0.0
      %2208 = vmatpush1.msra.mxu0 0.0
      %2209 = vmatprep.subr.mxu0 0.0
      %2210 = vmatpush1.msra.mxu0 0.0
      %2211 = vmatprep.subr.mxu0 0.0
      %2212 = vmatpush1.msra.mxu0 0.0
      %2213 = vmatprep.subr.mxu0 0.0
      %2214 = vmatpush1.msra.mxu0 0.0
      %2215 = vmatprep.subr.mxu0 0.0
      %2216 = vmatpush1.msra.mxu0 0.0
      %2217 = vmatprep.subr.mxu0 0.0
      %2218 = vmatpush1.msra.mxu0 0.0
      %2219 = vmatprep.subr.mxu0 0.0
      %2220 = vmatpush1.msra.mxu0 0.0
      %2221 = vmatprep.subr.mxu0 0.0
      %2222 = vmatpush1.msra.mxu0 0.0
      %2223 = vmatprep.subr.mxu0 0.0
      %2224 = vmatpush1.msra.mxu0 0.0
      %2225 = vmatprep.subr.mxu0 0.0
      %2226 = vmatpush1.msra.mxu0 0.0
      %2227 = vmatprep.subr.mxu0 0.0
      %2228 = vmatpush1.msra.mxu0 0.0
      %2229 = vmatprep.mubr.f32.mxu0 0.0
      %2230 = vmatmul.mubr.f32.gmra.mrb[0].mxu0 %v663
      %v2231 = vpop.f32.mrb[0].mxu0
      %v2232 = vadd.f32 0.0, %v2231
      %v2233 = vpop.f32.mrb[0].mxu0
      %2234 = vmatprep.mubr.f32.mxu0 0.0
      %2235 = vmatmul.mubr.f32.gmra.mrb[0].mxu0 %v665
      %v2236 = vpop.f32.mrb[0].mxu0
      %v2237 = vadd.f32 0.0, %v2236
      %v2238 = vpop.f32.mrb[0].mxu0
      %2239 = vmatprep.mubr.f32.mxu0 0.0
      %2240 = vmatmul.mubr.f32.gmra.mrb[0].mxu0 %v667
      %v2241 = vpop.f32.mrb[0].mxu0
      %v2242 = vadd.f32 0.0, %v2241
      %v2243 = vpop.f32.mrb[0].mxu0
      %2244 = vmatprep.mubr.f32.mxu0 0.0
      %2245 = vmatmul.mubr.f32.gmra.mrb[0].mxu0 %v669
      %v2246 = vpop.f32.mrb[0].mxu0
      %v2247 = vadd.f32 0.0, %v2246
      %v2248 = vpop.f32.mrb[0].mxu0
      %2249 = vmatprep.mubr.f32.mxu0 0.0
      %2250 = vmatmul.mubr.f32.gmra.mrb[0].mxu0 %v671
      %v2251 = vpop.f32.mrb[0].mxu0
      %v2252 = vadd.f32 0.0, %v2251
      %v2253 = vpop.f32.mrb[0].mxu0
      %2254 = vmatprep.mubr.f32.mxu0 0.0
      %2255 = vmatmul.mubr.f32.gmra.mrb[0].mxu0 %v673
      %v2256 = vpop.f32.mrb[0].mxu0
      %v2257 = vadd.f32 0.0, %v2256
      %v2258 = vpop.f32.mrb[0].mxu0
      %2259 = vmatprep.mubr.f32.mxu0 0.0
      %2260 = vmatmul.mubr.f32.gmra.mrb[0].mxu0 %v675
      %v2261 = vpop.f32.mrb[0].mxu0
      %v2262 = vadd.f32 0.0, %v2261
      %v2263 = vpop.f32.mrb[0].mxu0
      %2264 = vmatprep.mubr.f32.mxu0 0.0
      %2265 = vmatmul.mubr.f32.gmra.mrb[0].mxu0 %v677
      %v2266 = vpop.f32.mrb[0].mxu0
      %v2267 = vadd.f32 0.0, %v2266
      %v2268 = vpop.f32.mrb[0].mxu0
      %2269 = vmatprep.mubr.f32.mxu0 0.0
      %2270 = vmatmul.mubr.f32.gmra.mrb[0].mxu0 %v679
      %v2271 = vpop.f32.mrb[0].mxu0
      %v2272 = vadd.f32 0.0, %v2271
      %v2273 = vpop.f32.mrb[0].mxu0
      %2274 = vmatprep.mubr.f32.mxu0 0.0
      %2275 = vmatmul.mubr.f32.gmra.mrb[0].mxu0 %v681
      %v2276 = vpop.f32.mrb[0].mxu0
      %v2277 = vadd.f32 0.0, %v2276
      %v2278 = vpop.f32.mrb[0].mxu0
      %2279 = vmatprep.mubr.f32.mxu0 0.0
      %2280 = vmatmul.mubr.f32.gmra.mrb[0].mxu0 %v683
      %v2281 = vpop.f32.mrb[0].mxu0
      %v2282 = vadd.f32 0.0, %v2281
      %v2283 = vpop.f32.mrb[0].mxu0
      %2284 = vmatprep.mubr.f32.mxu0 0.0
      %2285 = vmatmul.mubr.f32.gmra.mrb[0].mxu0 %v685
      %v2286 = vpop.f32.mrb[0].mxu0
      %v2287 = vadd.f32 0.0, %v2286
      %v2288 = vpop.f32.mrb[0].mxu0
      %2289 = vmatprep.mubr.f32.mxu0 0.0
      %2290 = vmatmul.mubr.f32.gmra.mrb[0].mxu0 %v687
      %v2291 = vpop.f32.mrb[0].mxu0
      %v2292 = vadd.f32 0.0, %v2291
      %v2293 = vpop.f32.mrb[0].mxu0
      %2294 = vmatprep.mubr.f32.mxu0 0.0
      %2295 = vmatmul.mubr.f32.gmra.mrb[0].mxu0 %v689
      %v2296 = vpop.f32.mrb[0].mxu0
      %v2297 = vadd.f32 0.0, %v2296
      %v2298 = vpop.f32.mrb[0].mxu0
      %2299 = vmatprep.mubr.f32.mxu0 0.0
      %2300 = vmatmul.mubr.f32.gmra.mrb[0].mxu0 %v691
      %v2301 = vpop.f32.mrb[0].mxu0
      %v2302 = vadd.f32 0.0, %v2301
      %v2303 = vpop.f32.mrb[0].mxu0
      %2304 = vmatprep.mubr.f32.mxu0 0.0
      %2305 = vmatmul.mubr.f32.gmra.mrb[0].mxu0 %v693
      %v2306 = vpop.f32.mrb[0].mxu0
      %v2307 = vadd.f32 0.0, %v2306
      %v2308 = vpop.f32.mrb[0].mxu0
      %2309 = vmatprep.mubr.f32.mxu0 0.0
      %2310 = vmatmul.mubr.f32.gmra.mrb[0].mxu0 %v695
      %v2311 = vpop.f32.mrb[0].mxu0
      %v2312 = vadd.f32 0.0, %v2311
      %v2313 = vpop.f32.mrb[0].mxu0
      %2314 = vmatprep.mubr.f32.mxu0 0.0
      %2315 = vmatmul.mubr.f32.gmra.mrb[0].mxu0 %v697
      %v2316 = vpop.f32.mrb[0].mxu0
      %v2317 = vadd.f32 0.0, %v2316
      %v2318 = vpop.f32.mrb[0].mxu0
      %2319 = vmatprep.mubr.f32.mxu0 0.0
      %2320 = vmatmul.mubr.f32.gmra.mrb[0].mxu0 %v699
      %v2321 = vpop.f32.mrb[0].mxu0
      %v2322 = vadd.f32 0.0, %v2321
      %v2323 = vpop.f32.mrb[0].mxu0
      %2324 = vmatprep.mubr.f32.mxu0 0.0
      %2325 = vmatmul.mubr.f32.gmra.mrb[0].mxu0 %v701
      %v2326 = vpop.f32.mrb[0].mxu0
      %v2327 = vadd.f32 0.0, %v2326
      %v2328 = vpop.f32.mrb[0].mxu0
      %2329 = vmatprep.mubr.f32.mxu0 0.0
      %2330 = vmatmul.mubr.f32.gmra.mrb[0].mxu0 %v703
      %v2331 = vpop.f32.mrb[0].mxu0
      %v2332 = vadd.f32 0.0, %v2331
      %v2333 = vpop.f32.mrb[0].mxu0
      %2334 = vmatprep.mubr.f32.mxu0 0.0
      %2335 = vmatmul.mubr.f32.gmra.mrb[0].mxu0 %v705
      %v2336 = vpop.f32.mrb[0].mxu0
      %v2337 = vadd.f32 0.0, %v2336
      %v2338 = vpop.f32.mrb[0].mxu0
      %2339 = vmatprep.mubr.f32.mxu0 0.0
      %2340 = vmatmul.mubr.f32.gmra.mrb[0].mxu0 %v707
      %v2341 = vpop.f32.mrb[0].mxu0
      %v2342 = vadd.f32 0.0, %v2341
      %v2343 = vpop.f32.mrb[0].mxu0
      %2344 = vmatprep.mubr.f32.mxu0 0.0
      %2345 = vmatmul.mubr.f32.gmra.mrb[0].mxu0 %v709
      %v2346 = vpop.f32.mrb[0].mxu0
      %v2347 = vadd.f32 0.0, %v2346
      %v2348 = vpop.f32.mrb[0].mxu0
      %2349 = vmatprep.mubr.f32.mxu0 0.0
      %2350 = vmatmul.mubr.f32.gmra.mrb[0].mxu0 %v711
      %v2351 = vpop.f32.mrb[0].mxu0
      %v2352 = vadd.f32 0.0, %v2351
      %v2353 = vpop.f32.mrb[0].mxu0
      %2354 = vmatprep.mubr.f32.mxu0 0.0
      %2355 = vmatmul.mubr.f32.gmra.mrb[0].mxu0 %v713
      %v2356 = vpop.f32.mrb[0].mxu0
      %v2357 = vadd.f32 0.0, %v2356
      %v2358 = vpop.f32.mrb[0].mxu0
      %2359 = vmatprep.mubr.f32.mxu0 0.0
      %2360 = vmatmul.mubr.f32.gmra.mrb[0].mxu0 %v715
      %v2361 = vpop.f32.mrb[0].mxu0
      %v2362 = vadd.f32 0.0, %v2361
      %v2363 = vpop.f32.mrb[0].mxu0
      %2364 = vmatprep.mubr.f32.mxu0 0.0
      %2365 = vmatmul.mubr.f32.gmra.mrb[0].mxu0 %v717
      %v2366 = vpop.f32.mrb[0].mxu0
      %v2367 = vadd.f32 0.0, %v2366
      %v2368 = vpop.f32.mrb[0].mxu0
      %2369 = vmatprep.mubr.f32.mxu0 0.0
      %2370 = vmatmul.mubr.f32.gmra.mrb[0].mxu0 %v1353
      %v2371 = vpop.f32.mrb[0].mxu0
      %v2372 = vadd.f32 0.0, %v2371
      %v2373 = vpop.f32.mrb[0].mxu0
      %2374 = vmatprep.mubr.f32.mxu0 0.0
      %2375 = vmatmul.mubr.f32.gmra.mrb[0].mxu0 %v1356
      %v2376 = vpop.f32.mrb[0].mxu0
      %v2377 = vadd.f32 0.0, %v2376
      %v2378 = vpop.f32.mrb[0].mxu0
      %2379 = vmatprep.mubr.f32.mxu0 0.0
      %2380 = vmatmul.mubr.f32.gmra.mrb[0].mxu0 %v2157
      %v2381 = vpop.f32.mrb[0].mxu0
      %v2382 = vadd.f32 0.0, %v2381
      %v2383 = vpop.f32.mrb[0].mxu0
      %2384 = vmatprep.mubr.f32.mxu0 0.0
      %2385 = vmatmul.mubr.f32.gmra.mrb[0].mxu0 %v2160
      %v2386 = vpop.f32.mrb[0].mxu0
      %v2387 = vadd.f32 0.0, %v2386
      %v2388 = vpop.f32.mrb[0].mxu0
      %2389 = vdwg.mxu0
      %v2390 = vadd.f32 %v2124, %v2232
      %v2391 = vadd.f32 %v2125, %v2237
      %v2392 = vadd.f32 %v2126, %v2242
      %v2393 = vadd.f32 %v2127, %v2247
      %v2394 = vadd.f32 %v2128, %v2252
      %v2395 = vadd.f32 %v2129, %v2257
      %v2396 = vadd.f32 %v2130, %v2262
      %v2397 = vadd.f32 %v2131, %v2267
      %v2398 = vadd.f32 %v2132, %v2272
      %v2399 = vadd.f32 %v2133, %v2277
      %v2400 = vadd.f32 %v2134, %v2282
      %v2401 = vadd.f32 %v2135, %v2287
      %v2402 = vadd.f32 %v2136, %v2292
      %v2403 = vadd.f32 %v2137, %v2297
      %v2404 = vadd.f32 %v2138, %v2302
      %v2405 = vadd.f32 %v2139, %v2307
      %v2406 = vadd.f32 %v2140, %v2312
      %v2407 = vadd.f32 %v2141, %v2317
      %v2408 = vadd.f32 %v2142, %v2322
      %v2409 = vadd.f32 %v2143, %v2327
      %v2410 = vadd.f32 %v2144, %v2332
      %v2411 = vadd.f32 %v2145, %v2337
      %v2412 = vadd.f32 %v2146, %v2342
      %v2413 = vadd.f32 %v2147, %v2347
      %v2414 = vadd.f32 %v2148, %v2352
      %v2415 = vadd.f32 %v2149, %v2357
      %v2416 = vadd.f32 %v2150, %v2362
      %v2417 = vadd.f32 %v2151, %v2367
      %v2418 = vadd.f32 %v2152, %v2372
      %v2419 = vadd.f32 %v2153, %v2377
      %v2420 = vadd.f32 %v2154, %v2382
      %v2421 = vadd.f32 %v2155, %v2387
      %v2423 = vrot.slane %v228, 1
      %v2424 = vrot.slane %v229, 1
      %v2425 = vsel %vm279, %v2423, %v2424
      %v2426 = vrot.slane %v230, 1
      %v2427 = vsel %vm279, %v2424, %v2426
      %v2428 = vrot.slane %v174, 4
      %v2429 = vsel %vm362, %v2425, 0
      %v2431 = vsel %vm362, %v2427, 0
      %v2433 = vsel %vm427, %v2428, 0
      %2435 = vmatprep.subr.mxu0 0.0
      %2436 = vmatpush1.msra.mxu0 %v2433
      %2437 = vmatprep.subr.mxu0 0.0
      %2438 = vmatpush1.msra.mxu0 0.0
      %2439 = vmatprep.subr.mxu0 0.0
      %2440 = vmatpush1.msra.mxu0 0.0
      %2441 = vmatprep.subr.mxu0 0.0
      %2442 = vmatpush1.msra.mxu0 0.0
      %2443 = vmatprep.subr.mxu0 0.0
      %2444 = vmatpush1.msra.mxu0 0.0
      %2445 = vmatprep.subr.mxu0 0.0
      %2446 = vmatpush1.msra.mxu0 0.0
      %2447 = vmatprep.subr.mxu0 0.0
      %2448 = vmatpush1.msra.mxu0 0.0
      %2449 = vmatprep.subr.mxu0 0.0
      %2450 = vmatpush1.msra.mxu0 0.0
      %2451 = vmatprep.subr.mxu0 0.0
      %2452 = vmatpush1.msra.mxu0 0.0
      %2453 = vmatprep.subr.mxu0 0.0
      %2454 = vmatpush1.msra.mxu0 0.0
      %2455 = vmatprep.subr.mxu0 0.0
      %2456 = vmatpush1.msra.mxu0 0.0
      %2457 = vmatprep.subr.mxu0 0.0
      %2458 = vmatpush1.msra.mxu0 0.0
      %2459 = vmatprep.subr.mxu0 0.0
      %2460 = vmatpush1.msra.mxu0 0.0
      %2461 = vmatprep.subr.mxu0 0.0
      %2462 = vmatpush1.msra.mxu0 0.0
      %2463 = vmatprep.subr.mxu0 0.0
      %2464 = vmatpush1.msra.mxu0 0.0
      %2465 = vmatprep.subr.mxu0 0.0
      %2466 = vmatpush1.msra.mxu0 0.0
      %2467 = vmatprep.subr.mxu0 0.0
      %2468 = vmatpush1.msra.mxu0 0.0
      %2469 = vmatprep.subr.mxu0 0.0
      %2470 = vmatpush1.msra.mxu0 0.0
      %2471 = vmatprep.subr.mxu0 0.0
      %2472 = vmatpush1.msra.mxu0 0.0
      %2473 = vmatprep.subr.mxu0 0.0
      %2474 = vmatpush1.msra.mxu0 0.0
      %2475 = vmatprep.subr.mxu0 0.0
      %2476 = vmatpush1.msra.mxu0 0.0
      %2477 = vmatprep.subr.mxu0 0.0
      %2478 = vmatpush1.msra.mxu0 0.0
      %2479 = vmatprep.subr.mxu0 0.0
      %2480 = vmatpush1.msra.mxu0 0.0
      %2481 = vmatprep.subr.mxu0 0.0
      %2482 = vmatpush1.msra.mxu0 0.0
      %2483 = vmatprep.subr.mxu0 0.0
      %2484 = vmatpush1.msra.mxu0 0.0
      %2485 = vmatprep.subr.mxu0 0.0
      %2486 = vmatpush1.msra.mxu0 0.0
      %2487 = vmatprep.subr.mxu0 0.0
      %2488 = vmatpush1.msra.mxu0 0.0
      %2489 = vmatprep.subr.mxu0 0.0
      %2490 = vmatpush1.msra.mxu0 0.0
      %2491 = vmatprep.subr.mxu0 0.0
      %2492 = vmatpush1.msra.mxu0 0.0
      %2493 = vmatprep.subr.mxu0 0.0
      %2494 = vmatpush1.msra.mxu0 0.0
      %2495 = vmatprep.subr.mxu0 0.0
      %2496 = vmatpush1.msra.mxu0 0.0
      %2497 = vmatprep.subr.mxu0 0.0
      %2498 = vmatpush1.msra.mxu0 0.0
      %2499 = vmatprep.mubr.f32.mxu0 0.0
      %2500 = vmatmul.mubr.f32.gmra.mrb[0].mxu0 %v371
      %v2501 = vpop.f32.mrb[0].mxu0
      %v2502 = vadd.f32 0.0, %v2501
      %v2503 = vpop.f32.mrb[0].mxu0
      %2504 = vmatprep.mubr.f32.mxu0 0.0
      %2505 = vmatmul.mubr.f32.gmra.mrb[0].mxu0 %v373
      %v2506 = vpop.f32.mrb[0].mxu0
      %v2507 = vadd.f32 0.0, %v2506
      %v2508 = vpop.f32.mrb[0].mxu0
      %2509 = vmatprep.mubr.f32.mxu0 0.0
      %2510 = vmatmul.mubr.f32.gmra.mrb[0].mxu0 %v375
      %v2511 = vpop.f32.mrb[0].mxu0
      %v2512 = vadd.f32 0.0, %v2511
      %v2513 = vpop.f32.mrb[0].mxu0
      %2514 = vmatprep.mubr.f32.mxu0 0.0
      %2515 = vmatmul.mubr.f32.gmra.mrb[0].mxu0 %v377
      %v2516 = vpop.f32.mrb[0].mxu0
      %v2517 = vadd.f32 0.0, %v2516
      %v2518 = vpop.f32.mrb[0].mxu0
      %2519 = vmatprep.mubr.f32.mxu0 0.0
      %2520 = vmatmul.mubr.f32.gmra.mrb[0].mxu0 %v379
      %v2521 = vpop.f32.mrb[0].mxu0
      %v2522 = vadd.f32 0.0, %v2521
      %v2523 = vpop.f32.mrb[0].mxu0
      %2524 = vmatprep.mubr.f32.mxu0 0.0
      %2525 = vmatmul.mubr.f32.gmra.mrb[0].mxu0 %v381
      %v2526 = vpop.f32.mrb[0].mxu0
      %v2527 = vadd.f32 0.0, %v2526
      %v2528 = vpop.f32.mrb[0].mxu0
      %2529 = vmatprep.mubr.f32.mxu0 0.0
      %2530 = vmatmul.mubr.f32.gmra.mrb[0].mxu0 %v383
      %v2531 = vpop.f32.mrb[0].mxu0
      %v2532 = vadd.f32 0.0, %v2531
      %v2533 = vpop.f32.mrb[0].mxu0
      %2534 = vmatprep.mubr.f32.mxu0 0.0
      %2535 = vmatmul.mubr.f32.gmra.mrb[0].mxu0 %v385
      %v2536 = vpop.f32.mrb[0].mxu0
      %v2537 = vadd.f32 0.0, %v2536
      %v2538 = vpop.f32.mrb[0].mxu0
      %2539 = vmatprep.mubr.f32.mxu0 0.0
      %2540 = vmatmul.mubr.f32.gmra.mrb[0].mxu0 %v387
      %v2541 = vpop.f32.mrb[0].mxu0
      %v2542 = vadd.f32 0.0, %v2541
      %v2543 = vpop.f32.mrb[0].mxu0
      %2544 = vmatprep.mubr.f32.mxu0 0.0
      %2545 = vmatmul.mubr.f32.gmra.mrb[0].mxu0 %v389
      %v2546 = vpop.f32.mrb[0].mxu0
      %v2547 = vadd.f32 0.0, %v2546
      %v2548 = vpop.f32.mrb[0].mxu0
      %2549 = vmatprep.mubr.f32.mxu0 0.0
      %2550 = vmatmul.mubr.f32.gmra.mrb[0].mxu0 %v391
      %v2551 = vpop.f32.mrb[0].mxu0
      %v2552 = vadd.f32 0.0, %v2551
      %v2553 = vpop.f32.mrb[0].mxu0
      %2554 = vmatprep.mubr.f32.mxu0 0.0
      %2555 = vmatmul.mubr.f32.gmra.mrb[0].mxu0 %v393
      %v2556 = vpop.f32.mrb[0].mxu0
      %v2557 = vadd.f32 0.0, %v2556
      %v2558 = vpop.f32.mrb[0].mxu0
      %2559 = vmatprep.mubr.f32.mxu0 0.0
      %2560 = vmatmul.mubr.f32.gmra.mrb[0].mxu0 %v395
      %v2561 = vpop.f32.mrb[0].mxu0
      %v2562 = vadd.f32 0.0, %v2561
      %v2563 = vpop.f32.mrb[0].mxu0
      %2564 = vmatprep.mubr.f32.mxu0 0.0
      %2565 = vmatmul.mubr.f32.gmra.mrb[0].mxu0 %v397
      %v2566 = vpop.f32.mrb[0].mxu0
      %v2567 = vadd.f32 0.0, %v2566
      %v2568 = vpop.f32.mrb[0].mxu0
      %2569 = vmatprep.mubr.f32.mxu0 0.0
      %2570 = vmatmul.mubr.f32.gmra.mrb[0].mxu0 %v399
      %v2571 = vpop.f32.mrb[0].mxu0
      %v2572 = vadd.f32 0.0, %v2571
      %v2573 = vpop.f32.mrb[0].mxu0
      %2574 = vmatprep.mubr.f32.mxu0 0.0
      %2575 = vmatmul.mubr.f32.gmra.mrb[0].mxu0 %v401
      %v2576 = vpop.f32.mrb[0].mxu0
      %v2577 = vadd.f32 0.0, %v2576
      %v2578 = vpop.f32.mrb[0].mxu0
      %2579 = vmatprep.mubr.f32.mxu0 0.0
      %2580 = vmatmul.mubr.f32.gmra.mrb[0].mxu0 %v403
      %v2581 = vpop.f32.mrb[0].mxu0
      %v2582 = vadd.f32 0.0, %v2581
      %v2583 = vpop.f32.mrb[0].mxu0
      %2584 = vmatprep.mubr.f32.mxu0 0.0
      %2585 = vmatmul.mubr.f32.gmra.mrb[0].mxu0 %v405
      %v2586 = vpop.f32.mrb[0].mxu0
      %v2587 = vadd.f32 0.0, %v2586
      %v2588 = vpop.f32.mrb[0].mxu0
      %2589 = vmatprep.mubr.f32.mxu0 0.0
      %2590 = vmatmul.mubr.f32.gmra.mrb[0].mxu0 %v407
      %v2591 = vpop.f32.mrb[0].mxu0
      %v2592 = vadd.f32 0.0, %v2591
      %v2593 = vpop.f32.mrb[0].mxu0
      %2594 = vmatprep.mubr.f32.mxu0 0.0
      %2595 = vmatmul.mubr.f32.gmra.mrb[0].mxu0 %v409
      %v2596 = vpop.f32.mrb[0].mxu0
      %v2597 = vadd.f32 0.0, %v2596
      %v2598 = vpop.f32.mrb[0].mxu0
      %2599 = vmatprep.mubr.f32.mxu0 0.0
      %2600 = vmatmul.mubr.f32.gmra.mrb[0].mxu0 %v411
      %v2601 = vpop.f32.mrb[0].mxu0
      %v2602 = vadd.f32 0.0, %v2601
      %v2603 = vpop.f32.mrb[0].mxu0
      %2604 = vmatprep.mubr.f32.mxu0 0.0
      %2605 = vmatmul.mubr.f32.gmra.mrb[0].mxu0 %v413
      %v2606 = vpop.f32.mrb[0].mxu0
      %v2607 = vadd.f32 0.0, %v2606
      %v2608 = vpop.f32.mrb[0].mxu0
      %2609 = vmatprep.mubr.f32.mxu0 0.0
      %2610 = vmatmul.mubr.f32.gmra.mrb[0].mxu0 %v415
      %v2611 = vpop.f32.mrb[0].mxu0
      %v2612 = vadd.f32 0.0, %v2611
      %v2613 = vpop.f32.mrb[0].mxu0
      %2614 = vmatprep.mubr.f32.mxu0 0.0
      %2615 = vmatmul.mubr.f32.gmra.mrb[0].mxu0 %v417
      %v2616 = vpop.f32.mrb[0].mxu0
      %v2617 = vadd.f32 0.0, %v2616
      %v2618 = vpop.f32.mrb[0].mxu0
      %2619 = vmatprep.mubr.f32.mxu0 0.0
      %2620 = vmatmul.mubr.f32.gmra.mrb[0].mxu0 %v419
      %v2621 = vpop.f32.mrb[0].mxu0
      %v2622 = vadd.f32 0.0, %v2621
      %v2623 = vpop.f32.mrb[0].mxu0
      %2624 = vmatprep.mubr.f32.mxu0 0.0
      %2625 = vmatmul.mubr.f32.gmra.mrb[0].mxu0 %v421
      %v2626 = vpop.f32.mrb[0].mxu0
      %v2627 = vadd.f32 0.0, %v2626
      %v2628 = vpop.f32.mrb[0].mxu0
      %2629 = vmatprep.mubr.f32.mxu0 0.0
      %2630 = vmatmul.mubr.f32.gmra.mrb[0].mxu0 %v423
      %v2631 = vpop.f32.mrb[0].mxu0
      %v2632 = vadd.f32 0.0, %v2631
      %v2633 = vpop.f32.mrb[0].mxu0
      %2634 = vmatprep.mubr.f32.mxu0 0.0
      %2635 = vmatmul.mubr.f32.gmra.mrb[0].mxu0 %v425
      %v2636 = vpop.f32.mrb[0].mxu0
      %v2637 = vadd.f32 0.0, %v2636
      %v2638 = vpop.f32.mrb[0].mxu0
      %2639 = vmatprep.mubr.f32.mxu0 0.0
      %2640 = vmatmul.mubr.f32.gmra.mrb[0].mxu0 %v1623
      %v2641 = vpop.f32.mrb[0].mxu0
      %v2642 = vadd.f32 0.0, %v2641
      %v2643 = vpop.f32.mrb[0].mxu0
      %2644 = vmatprep.mubr.f32.mxu0 0.0
      %2645 = vmatmul.mubr.f32.gmra.mrb[0].mxu0 %v1625
      %v2646 = vpop.f32.mrb[0].mxu0
      %v2647 = vadd.f32 0.0, %v2646
      %v2648 = vpop.f32.mrb[0].mxu0
      %2649 = vmatprep.mubr.f32.mxu0 0.0
      %2650 = vmatmul.mubr.f32.gmra.mrb[0].mxu0 %v2429
      %v2651 = vpop.f32.mrb[0].mxu0
      %v2652 = vadd.f32 0.0, %v2651
      %v2653 = vpop.f32.mrb[0].mxu0
      %2654 = vmatprep.mubr.f32.mxu0 0.0
      %2655 = vmatmul.mubr.f32.gmra.mrb[0].mxu0 %v2431
      %v2656 = vpop.f32.mrb[0].mxu0
      %v2657 = vadd.f32 0.0, %v2656
      %v2658 = vpop.f32.mrb[0].mxu0
      %2659 = vdwg.mxu0
      %v2660 = vadd.f32 %v2390, %v2502
      %v2661 = vadd.f32 %v2391, %v2507
      %v2662 = vadd.f32 %v2392, %v2512
      %v2663 = vadd.f32 %v2393, %v2517
      %v2664 = vadd.f32 %v2394, %v2522
      %v2665 = vadd.f32 %v2395, %v2527
      %v2666 = vadd.f32 %v2396, %v2532
      %v2667 = vadd.f32 %v2397, %v2537
      %v2668 = vadd.f32 %v2398, %v2542
      %v2669 = vadd.f32 %v2399, %v2547
      %v2670 = vadd.f32 %v2400, %v2552
      %v2671 = vadd.f32 %v2401, %v2557
      %v2672 = vadd.f32 %v2402, %v2562
      %v2673 = vadd.f32 %v2403, %v2567
      %v2674 = vadd.f32 %v2404, %v2572
      %v2675 = vadd.f32 %v2405, %v2577
      %v2676 = vadd.f32 %v2406, %v2582
      %v2677 = vadd.f32 %v2407, %v2587
      %v2678 = vadd.f32 %v2408, %v2592
      %v2679 = vadd.f32 %v2409, %v2597
      %v2680 = vadd.f32 %v2410, %v2602
      %v2681 = vadd.f32 %v2411, %v2607
      %v2682 = vadd.f32 %v2412, %v2612
      %v2683 = vadd.f32 %v2413, %v2617
      %v2684 = vadd.f32 %v2414, %v2622
      %v2685 = vadd.f32 %v2415, %v2627
      %v2686 = vadd.f32 %v2416, %v2632
      %v2687 = vadd.f32 %v2417, %v2637
      %v2688 = vadd.f32 %v2418, %v2642
      %v2689 = vadd.f32 %v2419, %v2647
      %v2690 = vadd.f32 %v2420, %v2652
      %v2691 = vadd.f32 %v2421, %v2657
      %v2692 = vrot.slane %v228, 2
      %v2693 = vrot.slane %v229, 2
      %v2694 = vsel %vm946, %v2692, %v2693
      %v2695 = vrot.slane %v230, 2
      %v2696 = vsel %vm946, %v2693, %v2695
      %v2697 = vsel %vm362, %v2694, 0
      %v2699 = vsel %vm362, %v2696, 0
      %v2702 = vsel %vm427, %v175, 0
      %2704 = vmatprep.subr.mxu0 0.0
      %2705 = vmatpush1.msra.mxu0 %v2702
      %2706 = vmatprep.subr.mxu0 0.0
      %2707 = vmatpush1.msra.mxu0 0.0
      %2708 = vmatprep.subr.mxu0 0.0
      %2709 = vmatpush1.msra.mxu0 0.0
      %2710 = vmatprep.subr.mxu0 0.0
      %2711 = vmatpush1.msra.mxu0 0.0
      %2712 = vmatprep.subr.mxu0 0.0
      %2713 = vmatpush1.msra.mxu0 0.0
      %2714 = vmatprep.subr.mxu0 0.0
      %2715 = vmatpush1.msra.mxu0 0.0
      %2716 = vmatprep.subr.mxu0 0.0
      %2717 = vmatpush1.msra.mxu0 0.0
      %2718 = vmatprep.subr.mxu0 0.0
      %2719 = vmatpush1.msra.mxu0 0.0
      %2720 = vmatprep.subr.mxu0 0.0
      %2721 = vmatpush1.msra.mxu0 0.0
      %2722 = vmatprep.subr.mxu0 0.0
      %2723 = vmatpush1.msra.mxu0 0.0
      %2724 = vmatprep.subr.mxu0 0.0
      %2725 = vmatpush1.msra.mxu0 0.0
      %2726 = vmatprep.subr.mxu0 0.0
      %2727 = vmatpush1.msra.mxu0 0.0
      %2728 = vmatprep.subr.mxu0 0.0
      %2729 = vmatpush1.msra.mxu0 0.0
      %2730 = vmatprep.subr.mxu0 0.0
      %2731 = vmatpush1.msra.mxu0 0.0
      %2732 = vmatprep.subr.mxu0 0.0
      %2733 = vmatpush1.msra.mxu0 0.0
      %2734 = vmatprep.subr.mxu0 0.0
      %2735 = vmatpush1.msra.mxu0 0.0
      %2736 = vmatprep.subr.mxu0 0.0
      %2737 = vmatpush1.msra.mxu0 0.0
      %2738 = vmatprep.subr.mxu0 0.0
      %2739 = vmatpush1.msra.mxu0 0.0
      %2740 = vmatprep.subr.mxu0 0.0
      %2741 = vmatpush1.msra.mxu0 0.0
      %2742 = vmatprep.subr.mxu0 0.0
      %2743 = vmatpush1.msra.mxu0 0.0
      %2744 = vmatprep.subr.mxu0 0.0
      %2745 = vmatpush1.msra.mxu0 0.0
      %2746 = vmatprep.subr.mxu0 0.0
      %2747 = vmatpush1.msra.mxu0 0.0
      %2748 = vmatprep.subr.mxu0 0.0
      %2749 = vmatpush1.msra.mxu0 0.0
      %2750 = vmatprep.subr.mxu0 0.0
      %2751 = vmatpush1.msra.mxu0 0.0
      %2752 = vmatprep.subr.mxu0 0.0
      %2753 = vmatpush1.msra.mxu0 0.0
      %2754 = vmatprep.subr.mxu0 0.0
      %2755 = vmatpush1.msra.mxu0 0.0
      %2756 = vmatprep.subr.mxu0 0.0
      %2757 = vmatpush1.msra.mxu0 0.0
      %2758 = vmatprep.subr.mxu0 0.0
      %2759 = vmatpush1.msra.mxu0 0.0
      %2760 = vmatprep.subr.mxu0 0.0
      %2761 = vmatpush1.msra.mxu0 0.0
      %2762 = vmatprep.subr.mxu0 0.0
      %2763 = vmatpush1.msra.mxu0 0.0
      %2764 = vmatprep.subr.mxu0 0.0
      %2765 = vmatpush1.msra.mxu0 0.0
      %2766 = vmatprep.subr.mxu0 0.0
      %2767 = vmatpush1.msra.mxu0 0.0
      %2768 = vmatprep.mubr.f32.mxu0 0.0
      %2769 = vmatmul.mubr.f32.gmra.mrb[0].mxu0 %v1035
      %v2770 = vpop.f32.mrb[0].mxu0
      %v2771 = vadd.f32 0.0, %v2770
      %v2772 = vpop.f32.mrb[0].mxu0
      %2773 = vmatprep.mubr.f32.mxu0 0.0
      %2774 = vmatmul.mubr.f32.gmra.mrb[0].mxu0 %v1037
      %v2775 = vpop.f32.mrb[0].mxu0
      %v2776 = vadd.f32 0.0, %v2775
      %v2777 = vpop.f32.mrb[0].mxu0
      %2778 = vmatprep.mubr.f32.mxu0 0.0
      %2779 = vmatmul.mubr.f32.gmra.mrb[0].mxu0 %v1039
      %v2780 = vpop.f32.mrb[0].mxu0
      %v2781 = vadd.f32 0.0, %v2780
      %v2782 = vpop.f32.mrb[0].mxu0
      %2783 = vmatprep.mubr.f32.mxu0 0.0
      %2784 = vmatmul.mubr.f32.gmra.mrb[0].mxu0 %v1041
      %v2785 = vpop.f32.mrb[0].mxu0
      %v2786 = vadd.f32 0.0, %v2785
      %v2787 = vpop.f32.mrb[0].mxu0
      %2788 = vmatprep.mubr.f32.mxu0 0.0
      %2789 = vmatmul.mubr.f32.gmra.mrb[0].mxu0 %v1043
      %v2790 = vpop.f32.mrb[0].mxu0
      %v2791 = vadd.f32 0.0, %v2790
      %v2792 = vpop.f32.mrb[0].mxu0
      %2793 = vmatprep.mubr.f32.mxu0 0.0
      %2794 = vmatmul.mubr.f32.gmra.mrb[0].mxu0 %v1045
      %v2795 = vpop.f32.mrb[0].mxu0
      %v2796 = vadd.f32 0.0, %v2795
      %v2797 = vpop.f32.mrb[0].mxu0
      %2798 = vmatprep.mubr.f32.mxu0 0.0
      %2799 = vmatmul.mubr.f32.gmra.mrb[0].mxu0 %v1047
      %v2800 = vpop.f32.mrb[0].mxu0
      %v2801 = vadd.f32 0.0, %v2800
      %v2802 = vpop.f32.mrb[0].mxu0
      %2803 = vmatprep.mubr.f32.mxu0 0.0
      %2804 = vmatmul.mubr.f32.gmra.mrb[0].mxu0 %v1049
      %v2805 = vpop.f32.mrb[0].mxu0
      %v2806 = vadd.f32 0.0, %v2805
      %v2807 = vpop.f32.mrb[0].mxu0
      %2808 = vmatprep.mubr.f32.mxu0 0.0
      %2809 = vmatmul.mubr.f32.gmra.mrb[0].mxu0 %v1051
      %v2810 = vpop.f32.mrb[0].mxu0
      %v2811 = vadd.f32 0.0, %v2810
      %v2812 = vpop.f32.mrb[0].mxu0
      %2813 = vmatprep.mubr.f32.mxu0 0.0
      %2814 = vmatmul.mubr.f32.gmra.mrb[0].mxu0 %v1053
      %v2815 = vpop.f32.mrb[0].mxu0
      %v2816 = vadd.f32 0.0, %v2815
      %v2817 = vpop.f32.mrb[0].mxu0
      %2818 = vmatprep.mubr.f32.mxu0 0.0
      %2819 = vmatmul.mubr.f32.gmra.mrb[0].mxu0 %v1055
      %v2820 = vpop.f32.mrb[0].mxu0
      %v2821 = vadd.f32 0.0, %v2820
      %v2822 = vpop.f32.mrb[0].mxu0
      %2823 = vmatprep.mubr.f32.mxu0 0.0
      %2824 = vmatmul.mubr.f32.gmra.mrb[0].mxu0 %v1057
      %v2825 = vpop.f32.mrb[0].mxu0
      %v2826 = vadd.f32 0.0, %v2825
      %v2827 = vpop.f32.mrb[0].mxu0
      %2828 = vmatprep.mubr.f32.mxu0 0.0
      %2829 = vmatmul.mubr.f32.gmra.mrb[0].mxu0 %v1059
      %v2830 = vpop.f32.mrb[0].mxu0
      %v2831 = vadd.f32 0.0, %v2830
      %v2832 = vpop.f32.mrb[0].mxu0
      %2833 = vmatprep.mubr.f32.mxu0 0.0
      %2834 = vmatmul.mubr.f32.gmra.mrb[0].mxu0 %v1061
      %v2835 = vpop.f32.mrb[0].mxu0
      %v2836 = vadd.f32 0.0, %v2835
      %v2837 = vpop.f32.mrb[0].mxu0
      %2838 = vmatprep.mubr.f32.mxu0 0.0
      %2839 = vmatmul.mubr.f32.gmra.mrb[0].mxu0 %v1063
      %v2840 = vpop.f32.mrb[0].mxu0
      %v2841 = vadd.f32 0.0, %v2840
      %v2842 = vpop.f32.mrb[0].mxu0
      %2843 = vmatprep.mubr.f32.mxu0 0.0
      %2844 = vmatmul.mubr.f32.gmra.mrb[0].mxu0 %v1065
      %v2845 = vpop.f32.mrb[0].mxu0
      %v2846 = vadd.f32 0.0, %v2845
      %v2847 = vpop.f32.mrb[0].mxu0
      %2848 = vmatprep.mubr.f32.mxu0 0.0
      %2849 = vmatmul.mubr.f32.gmra.mrb[0].mxu0 %v1067
      %v2850 = vpop.f32.mrb[0].mxu0
      %v2851 = vadd.f32 0.0, %v2850
      %v2852 = vpop.f32.mrb[0].mxu0
      %2853 = vmatprep.mubr.f32.mxu0 0.0
      %2854 = vmatmul.mubr.f32.gmra.mrb[0].mxu0 %v1069
      %v2855 = vpop.f32.mrb[0].mxu0
      %v2856 = vadd.f32 0.0, %v2855
      %v2857 = vpop.f32.mrb[0].mxu0
      %2858 = vmatprep.mubr.f32.mxu0 0.0
      %2859 = vmatmul.mubr.f32.gmra.mrb[0].mxu0 %v1071
      %v2860 = vpop.f32.mrb[0].mxu0
      %v2861 = vadd.f32 0.0, %v2860
      %v2862 = vpop.f32.mrb[0].mxu0
      %2863 = vmatprep.mubr.f32.mxu0 0.0
      %2864 = vmatmul.mubr.f32.gmra.mrb[0].mxu0 %v1073
      %v2865 = vpop.f32.mrb[0].mxu0
      %v2866 = vadd.f32 0.0, %v2865
      %v2867 = vpop.f32.mrb[0].mxu0
      %2868 = vmatprep.mubr.f32.mxu0 0.0
      %2869 = vmatmul.mubr.f32.gmra.mrb[0].mxu0 %v1075
      %v2870 = vpop.f32.mrb[0].mxu0
      %v2871 = vadd.f32 0.0, %v2870
      %v2872 = vpop.f32.mrb[0].mxu0
      %2873 = vmatprep.mubr.f32.mxu0 0.0
      %2874 = vmatmul.mubr.f32.gmra.mrb[0].mxu0 %v1077
      %v2875 = vpop.f32.mrb[0].mxu0
      %v2876 = vadd.f32 0.0, %v2875
      %v2877 = vpop.f32.mrb[0].mxu0
      %2878 = vmatprep.mubr.f32.mxu0 0.0
      %2879 = vmatmul.mubr.f32.gmra.mrb[0].mxu0 %v1079
      %v2880 = vpop.f32.mrb[0].mxu0
      %v2881 = vadd.f32 0.0, %v2880
      %v2882 = vpop.f32.mrb[0].mxu0
      %2883 = vmatprep.mubr.f32.mxu0 0.0
      %2884 = vmatmul.mubr.f32.gmra.mrb[0].mxu0 %v1081
      %v2885 = vpop.f32.mrb[0].mxu0
      %v2886 = vadd.f32 0.0, %v2885
      %v2887 = vpop.f32.mrb[0].mxu0
      %2888 = vmatprep.mubr.f32.mxu0 0.0
      %2889 = vmatmul.mubr.f32.gmra.mrb[0].mxu0 %v1083
      %v2890 = vpop.f32.mrb[0].mxu0
      %v2891 = vadd.f32 0.0, %v2890
      %v2892 = vpop.f32.mrb[0].mxu0
      %2893 = vmatprep.mubr.f32.mxu0 0.0
      %2894 = vmatmul.mubr.f32.gmra.mrb[0].mxu0 %v1085
      %v2895 = vpop.f32.mrb[0].mxu0
      %v2896 = vadd.f32 0.0, %v2895
      %v2897 = vpop.f32.mrb[0].mxu0
      %2898 = vmatprep.mubr.f32.mxu0 0.0
      %2899 = vmatmul.mubr.f32.gmra.mrb[0].mxu0 %v1087
      %v2900 = vpop.f32.mrb[0].mxu0
      %v2901 = vadd.f32 0.0, %v2900
      %v2902 = vpop.f32.mrb[0].mxu0
      %2903 = vmatprep.mubr.f32.mxu0 0.0
      %2904 = vmatmul.mubr.f32.gmra.mrb[0].mxu0 %v1089
      %v2905 = vpop.f32.mrb[0].mxu0
      %v2906 = vadd.f32 0.0, %v2905
      %v2907 = vpop.f32.mrb[0].mxu0
      %2908 = vmatprep.mubr.f32.mxu0 0.0
      %2909 = vmatmul.mubr.f32.gmra.mrb[0].mxu0 %v1893
      %v2910 = vpop.f32.mrb[0].mxu0
      %v2911 = vadd.f32 0.0, %v2910
      %v2912 = vpop.f32.mrb[0].mxu0
      %2913 = vmatprep.mubr.f32.mxu0 0.0
      %2914 = vmatmul.mubr.f32.gmra.mrb[0].mxu0 %v1895
      %v2915 = vpop.f32.mrb[0].mxu0
      %v2916 = vadd.f32 0.0, %v2915
      %v2917 = vpop.f32.mrb[0].mxu0
      %2918 = vmatprep.mubr.f32.mxu0 0.0
      %2919 = vmatmul.mubr.f32.gmra.mrb[0].mxu0 %v2697
      %v2920 = vpop.f32.mrb[0].mxu0
      %v2921 = vadd.f32 0.0, %v2920
      %v2922 = vpop.f32.mrb[0].mxu0
      %2923 = vmatprep.mubr.f32.mxu0 0.0
      %2924 = vmatmul.mubr.f32.gmra.mrb[0].mxu0 %v2699
      %v2925 = vpop.f32.mrb[0].mxu0
      %v2926 = vadd.f32 0.0, %v2925
      %v2927 = vpop.f32.mrb[0].mxu0
      %2928 = vdwg.mxu0
      %v2929 = vadd.f32 %v2660, %v2771
      %v2930 = vadd.f32 %v2661, %v2776
      %v2931 = vadd.f32 %v2662, %v2781
      %v2932 = vadd.f32 %v2663, %v2786
      %v2933 = vadd.f32 %v2664, %v2791
      %v2934 = vadd.f32 %v2665, %v2796
      %v2935 = vadd.f32 %v2666, %v2801
      %v2936 = vadd.f32 %v2667, %v2806
      %v2937 = vadd.f32 %v2668, %v2811
      %v2938 = vadd.f32 %v2669, %v2816
      %v2939 = vadd.f32 %v2670, %v2821
      %v2940 = vadd.f32 %v2671, %v2826
      %v2941 = vadd.f32 %v2672, %v2831
      %v2942 = vadd.f32 %v2673, %v2836
      %v2943 = vadd.f32 %v2674, %v2841
      %v2944 = vadd.f32 %v2675, %v2846
      %v2945 = vadd.f32 %v2676, %v2851
      %v2946 = vadd.f32 %v2677, %v2856
      %v2947 = vadd.f32 %v2678, %v2861
      %v2948 = vadd.f32 %v2679, %v2866
      %v2949 = vadd.f32 %v2680, %v2871
      %v2950 = vadd.f32 %v2681, %v2876
      %v2951 = vadd.f32 %v2682, %v2881
      %v2952 = vadd.f32 %v2683, %v2886
      %v2953 = vadd.f32 %v2684, %v2891
      %v2954 = vadd.f32 %v2685, %v2896
      %v2955 = vadd.f32 %v2686, %v2901
      %v2956 = vadd.f32 %v2687, %v2906
      %v2957 = vadd.f32 %v2688, %v2911
      %v2958 = vadd.f32 %v2689, %v2916
      %v2959 = vadd.f32 %v2690, %v2921
      %v2960 = vadd.f32 %v2691, %v2926
      %v2962 = vlaneseq
      %v2963 = vshrl.u32 %v2962, 7
      %v2964 = vsub.s32 0, %v2963
      %v2965 = vrot.slane %v176, %v2964
      %v2967 = vadd.f32 %v2929, %v2965
      %v2968 = vadd.f32 %v2930, %v2965
      %v2969 = vadd.f32 %v2931, %v2965
      %v2970 = vadd.f32 %v2932, %v2965
      %v2971 = vadd.f32 %v2933, %v2965
      %v2972 = vadd.f32 %v2934, %v2965
      %v2973 = vadd.f32 %v2935, %v2965
      %v2974 = vadd.f32 %v2936, %v2965
      %v2975 = vadd.f32 %v2937, %v2965
      %v2976 = vadd.f32 %v2938, %v2965
      %v2977 = vadd.f32 %v2939, %v2965
      %v2978 = vadd.f32 %v2940, %v2965
      %v2979 = vadd.f32 %v2941, %v2965
      %v2980 = vadd.f32 %v2942, %v2965
      %v2981 = vadd.f32 %v2943, %v2965
      %v2982 = vadd.f32 %v2944, %v2965
      %v2983 = vadd.f32 %v2945, %v2965
      %v2984 = vadd.f32 %v2946, %v2965
      %v2985 = vadd.f32 %v2947, %v2965
      %v2986 = vadd.f32 %v2948, %v2965
      %v2987 = vadd.f32 %v2949, %v2965
      %v2988 = vadd.f32 %v2950, %v2965
      %v2989 = vadd.f32 %v2951, %v2965
      %v2990 = vadd.f32 %v2952, %v2965
      %v2991 = vadd.f32 %v2953, %v2965
      %v2992 = vadd.f32 %v2954, %v2965
      %v2993 = vadd.f32 %v2955, %v2965
      %v2994 = vadd.f32 %v2956, %v2965
      %v2995 = vadd.f32 %v2957, %v2965
      %v2996 = vadd.f32 %v2958, %v2965
      %v2997 = vadd.f32 %v2959, %v2965
      %v2998 = vadd.f32 %v2960, %v2965
      %v2999 = vmax.f32 %v2967, 0.0
      %v3000 = vmax.f32 %v2968, 0.0
      %v3001 = vmax.f32 %v2969, 0.0
      %v3002 = vmax.f32 %v2970, 0.0
      %v3003 = vmax.f32 %v2971, 0.0
      %v3004 = vmax.f32 %v2972, 0.0
      %v3005 = vmax.f32 %v2973, 0.0
      %v3006 = vmax.f32 %v2974, 0.0
      %v3007 = vmax.f32 %v2975, 0.0
      %v3008 = vmax.f32 %v2976, 0.0
      %v3009 = vmax.f32 %v2977, 0.0
      %v3010 = vmax.f32 %v2978, 0.0
      %v3011 = vmax.f32 %v2979, 0.0
      %v3012 = vmax.f32 %v2980, 0.0
      %v3013 = vmax.f32 %v2981, 0.0
      %v3014 = vmax.f32 %v2982, 0.0
      %v3015 = vmax.f32 %v2983, 0.0
      %v3016 = vmax.f32 %v2984, 0.0
      %v3017 = vmax.f32 %v2985, 0.0
      %v3018 = vmax.f32 %v2986, 0.0
      %v3019 = vmax.f32 %v2987, 0.0
      %v3020 = vmax.f32 %v2988, 0.0
      %v3021 = vmax.f32 %v2989, 0.0
      %v3022 = vmax.f32 %v2990, 0.0
      %v3023 = vmax.f32 %v2991, 0.0
      %v3024 = vmax.f32 %v2992, 0.0
      %v3025 = vmax.f32 %v2993, 0.0
      %v3026 = vmax.f32 %v2994, 0.0
      %v3027 = vmax.f32 %v2995, 0.0
      %v3028 = vmax.f32 %v2996, 0.0
      %v3029 = vmax.f32 %v2997, 0.0
      %v3030 = vmax.f32 %v2998, 0.0
      %3031 = vst [vmem:[%s170] sm:$0xff] %v2999
      %3032 = vst [vmem:[%s170 + $0x8] sm:$0xff] %v3000
      %3033 = vst [vmem:[%s170 + $0x10] sm:$0xff] %v3001
      %3034 = vst [vmem:[%s170 + $0x18] sm:$0xff] %v3002
      %3035 = vst [vmem:[%s170 + $0x20] sm:$0xff] %v3003
      %3036 = vst [vmem:[%s170 + $0x28] sm:$0xff] %v3004
      %3037 = vst [vmem:[%s170 + $0x30] sm:$0xff] %v3005
      %3038 = vst [vmem:[%s170 + $0x38] sm:$0xff] %v3006
      %3039 = vst [vmem:[%s170 + $0x40] sm:$0xff] %v3007
      %3040 = vst [vmem:[%s170 + $0x48] sm:$0xff] %v3008
      %3041 = vst [vmem:[%s170 + $0x50] sm:$0xff] %v3009
      %3042 = vst [vmem:[%s170 + $0x58] sm:$0xff] %v3010
      %3043 = vst [vmem:[%s170 + $0x60] sm:$0xff] %v3011
      %3044 = vst [vmem:[%s170 + $0x68] sm:$0xff] %v3012
      %3045 = vst [vmem:[%s170 + $0x70] sm:$0xff] %v3013
      %3046 = vst [vmem:[%s170 + $0x78] sm:$0xff] %v3014
      %3047 = vst [vmem:[%s170 + $0x80] sm:$0xff] %v3015
      %3048 = vst [vmem:[%s170 + $0x88] sm:$0xff] %v3016
      %3049 = vst [vmem:[%s170 + $0x90] sm:$0xff] %v3017
      %3050 = vst [vmem:[%s170 + $0x98] sm:$0xff] %v3018
      %3051 = vst [vmem:[%s170 + $0xa0] sm:$0xff] %v3019
      %3052 = vst [vmem:[%s170 + $0xa8] sm:$0xff] %v3020
      %3053 = vst [vmem:[%s170 + $0xb0] sm:$0xff] %v3021
      %3054 = vst [vmem:[%s170 + $0xb8] sm:$0xff] %v3022
      %3055 = vst [vmem:[%s170 + $0xc0] sm:$0xff] %v3023
      %3056 = vst [vmem:[%s170 + $0xc8] sm:$0xff] %v3024
      %3057 = vst [vmem:[%s170 + $0xd0] sm:$0xff] %v3025
      %3058 = vst [vmem:[%s170 + $0xd8] sm:$0xff] %v3026
      %3059 = vst [vmem:[%s170 + $0xe0] sm:$0xff] %v3027
      %3060 = vst [vmem:[%s170 + $0xe8] sm:$0xff] %v3028
      %3061 = vst [vmem:[%s170 + $0xf0] sm:$0xff] %v3029
      %3062 = vst [vmem:[%s170 + $0xf8] sm:$0xff] %v3030
      %p3063 = scmp.lt.s32.totalorder %s14, 1
      %s3064 = scalar_select %p3063, %s14, 1
      %s3065 = smul.addr %s3064, 32
      %s3066 = smul.addr %s3065, 8
      %s3067 = scalar_lea.vmem %s3, %s3066
      // Predicated region
      $region33: #{conv_layer_forward.1} parent=31 // pred_check
        %p3068 = pneg %p100
      $region34: #{conv_layer_forward.1} parent=31 // pred_check_branch
        %3070 = sbr.rel (%p3068) target = $region36
      $region35: #{conv_layer_forward.1} parent=31 // pred_region
        _
      $region36: #{conv_layer_forward.1} parent=31 // pred_fallthru
        _
    $region32: #{conv_layer_forward.1} parent=5 // pred_fallthru
      _
    %p3071 = scmp.le.s32.totalorder 2, %s9
    // Predicated region
    $region37: #{conv_layer_forward.1} parent=5 // pred_check
      %p3072 = pneg %p3071
    $region38: #{conv_layer_forward.1} parent=5 // pred_check_branch
      %3074 = sbr.rel (%p3072) target = $region40
    $region39: #{conv_layer_forward.1} parent=5 // pred_region
      %s3075 = ssub.s32 %s9, 2
      // Predicated region
      $region41: #{conv_layer_forward.1} parent=39 // pred_check
        %p3076 = pneg %p106
      $region42: #{conv_layer_forward.1} parent=39 // pred_check_branch
        %3078 = sbr.rel (%p3076) target = $region44
      $region43: #{conv_layer_forward.1} parent=39 // pred_region
        %p3079 = scmp.lt.s32.totalorder %s15, 1
        %s3080 = scalar_select %p3079, %s15, 1
        %s3081 = smul.addr %s3080, 32
        %s3082 = smul.addr %s3081, 8
        %s3083 = scalar_lea.vmem %s3, %s3082
      $region44: #{conv_layer_forward.1} parent=39 // pred_fallthru
        _
    $region40: #{conv_layer_forward.1} parent=5 // pred_fallthru
      _
  $region6: #{conv_layer_forward.1} parent=0 // loop_footer
    %s13 = sadd.s32 1, %s9
  $region7: #{conv_layer_forward.1} parent=0 // loop_footer_branch
    %8 = sbr.rel target = $region3
  $region8: #{conv_layer_forward.1} parent=0 // loop_exit
    _

</llo_original>
